<compile_context>
chip_gen: v7x
topology: tpu7x:2x2x1
jax: 0.10.0
libtpu: 0.0.40
codegen_flags: <defaults>
</compile_context>

<pallas_src>
import jax
import jax.numpy as jnp
from jax import lax
from jax.experimental import pallas as pl
from jax.experimental.pallas import tpu as pltpu

# small, consistent dims (orig: D=513 GRU hidden, F=64 fc out)
B = 2    # batch of pairs
T = 8    # sequence length
D = 32   # GRU input & hidden size
F = 16   # fc output size
N = 2 * B
EPS = 1e-5  # BatchNorm1d default eps


# -------------------- single fused kernel: 2-layer GRU + head --------------------
def speaker_kernel(x_ref,
                   wi0_ref, wh0_ref, bi0_ref, bh0_ref,
                   wi1_ref, wh1_ref, bi1_ref, bh1_ref,
                   gamma_ref, beta_ref, wfc_ref, bfc_ref,
                   wl_ref, bl_ref,
                   out_ref):
    # x_ref:  [T*N, D] time-major slab.
    # wi*/wh*: [D, 3D] packed gate weights (r,z,n).  bi*/bh*: [1, 3D].
    # gamma/beta: [1, D].  wfc: [D, F], bfc: [1, F].  wl/bl: (1,1) SMEM scalars.
    # out_ref: [B, 1].

    # ---- hoist weights / pre-fold r,z biases (bh_n must stay inside r*(...)) ----
    wi0 = wi0_ref[...]; wh0 = wh0_ref[...]
    wi1 = wi1_ref[...]; wh1 = wh1_ref[...]
    bi0 = bi0_ref[...]; bh0 = bh0_ref[...]
    bi1 = bi1_ref[...]; bh1 = bh1_ref[...]
    b_rz0 = bi0[:, :2 * D] + bh0[:, :2 * D]
    bi_n0 = bi0[:, 2 * D:]
    bh_n0 = bh0[:, 2 * D:]
    b_rz1 = bi1[:, :2 * D] + bh1[:, :2 * D]
    bi_n1 = bi1[:, 2 * D:]
    bh_n1 = bh1[:, 2 * D:]

    # ---- layer-0 input projection hoisted off the recurrent critical path ----
    xw0 = jnp.dot(x_ref[...], wi0, preferred_element_type=jnp.float32)  # [T*N, 3D]

    def gru_cell(xg, h, wh, b_rz, bi_n, bh_n):
        # xg: [N, 3D] input-side gate pre-activations (x_t @ Wi), packed (r,z,n)
        hg = jnp.dot(h, wh, preferred_element_type=jnp.float32)          # [N, 3D]
        rz = jax.nn.sigmoid(xg[:, :2 * D] + hg[:, :2 * D] + b_rz)        # [N, 2D]
        r = rz[:, :D]
        z = rz[:, D:]
        n_g = jnp.tanh(xg[:, 2 * D:] + bi_n + r * (hg[:, 2 * D:] + bh_n))
        return (1.0 - z) * n_g + z * h

    # ---- fully unrolled static time loop; hidden state lives in vregs ----
    h0 = jnp.zeros((N, D), jnp.float32)
    h1 = jnp.zeros((N, D), jnp.float32)
    for t in range(T):
        xg0 = xw0[t * N:(t + 1) * N, :]                                   # static slice
        h0 = gru_cell(xg0, h0, wh0, b_rz0, bi_n0, bh_n0)                  # layer 0
        xg1 = jnp.dot(h0, wi1, preferred_element_type=jnp.float32)        # layer-1 input proj
        h1 = gru_cell(xg1, h1, wh1, b_rz1, bi_n1, bh_n1)                  # layer 1

    # ---- fused head ----
    gamma = gamma_ref[...]; beta = beta_ref[...]
    wfc = wfc_ref[...]; bfc = bfc_ref[...]

    def fc(o):
        # BatchNorm1d, training mode: per-call batch stats, biased variance
        mu = jnp.mean(o, axis=0, keepdims=True)
        var = jnp.mean((o - mu) ** 2, axis=0, keepdims=True)
        xhat = (o - mu) * lax.rsqrt(var + EPS)
        y = xhat * gamma + beta
        return jnp.tanh(jnp.dot(y, wfc, preferred_element_type=jnp.float32) + bfc)

    f1 = fc(h1[:B, :])                                                    # pair element 0
    f2 = fc(h1[B:, :])                                                    # pair element 1
    s = jax.nn.sigmoid(jnp.sum(f1 * f2, axis=-1, keepdims=True))          # [B, 1]
    out_ref[...] = jax.nn.sigmoid(s * wl_ref[0, 0] + bl_ref[0, 0])


def speaker_iden_forward(samples, gru_params, head_params):
    b, _, t, d = samples.shape
    n = 2 * b
    # single transpose+reshape (no concatenate): [B,2,T,D] -> [T,2,B,D] -> [T*2B, D]
    # for each timestep t: first B rows = samples[:,0,t], next B rows = samples[:,1,t]
    x2d = jnp.transpose(samples, (2, 1, 0, 3)).reshape(t * n, d).astype(jnp.float32)

    vmem = lambda: pl.BlockSpec(memory_space=pltpu.MemorySpace.VMEM)
    smem = lambda: pl.BlockSpec(memory_space=pltpu.MemorySpace.SMEM)
    gamma, beta, wfc, bfc, wl, bl = head_params

    out = pl.pallas_call(
        speaker_kernel,
        out_shape=jax.ShapeDtypeStruct((b, 1), jnp.float32),
        in_specs=[vmem() for _ in range(1 + len(gru_params) + 4)] + [smem(), smem()],
        out_specs=vmem(),
    )(x2d, *gru_params, gamma, beta, wfc, bfc, wl, bl)
    return out[:, 0]                                                      # [B]


if __name__ == "__main__":
    root = jax.random.PRNGKey(0)
    k = jax.random.split(root, 12)
    kgru = 1.0 / float(jnp.sqrt(jnp.float32(D)))

    def u(key, shape, bound):
        return jax.random.uniform(key, shape, jnp.float32, -bound, bound)

    # GRU layers 0/1 (D -> D), PyTorch init U(-1/sqrt(H), 1/sqrt(H)).
    # Gate weights packed along the output axis: [D, 3D] = concat(Wr, Wz, Wn).
    wi0 = u(k[0], (D, 3 * D), kgru)
    wh0 = u(k[1], (D, 3 * D), kgru)
    bi0 = u(k[2], (1, 3 * D), kgru)
    bh0 = u(k[3], (1, 3 * D), kgru)
    wi1 = u(k[4], (D, 3 * D), kgru)
    wh1 = u(k[5], (D, 3 * D), kgru)
    bi1 = u(k[6], (1, 3 * D), kgru)
    bh1 = u(k[7], (1, 3 * D), kgru)
    gru_params = (wi0, wh0, bi0, bh0, wi1, wh1, bi1, bh1)

    # fc_layers: BatchNorm1d(D) (gamma=1, beta=0), Linear(D, F) xavier_normal_, Tanh
    gamma = jnp.ones((1, D), jnp.float32)
    beta = jnp.zeros((1, D), jnp.float32)
    wfc = jax.random.normal(k[8], (D, F), jnp.float32) * jnp.sqrt(2.0 / (D + F))
    bfc = u(k[9], (1, F), 1.0 / float(jnp.sqrt(jnp.float32(D))))
    # last_layer: Linear(1, 1) default init (bound = 1/sqrt(1) = 1)
    wl = u(k[10], (1, 1), 1.0)
    bl = u(k[11], (1, 1), 1.0)
    head_params = (gamma, beta, wfc, bfc, wl, bl)

    samples = jax.random.normal(jax.random.PRNGKey(42), (B, 2, T, D), jnp.float32)

    out = speaker_iden_forward(samples, gru_params, head_params)
    out = jax.block_until_ready(out)
    assert out.shape == (B,), out.shape
    assert bool(jnp.all(jnp.isfinite(out)))
    assert bool(jnp.all((out > 0.0) & (out < 1.0)))  # sigmoid output
    print("KERNEL_OK")
</pallas_src>

<mosaic_0001>
module attributes {stable_mosaic.version = 11 : i64} {
  func.func @speaker_kernel(%arg0: memref<32x32xf32, #tpu.memory_space<vmem>>, %arg1: memref<32x96xf32, #tpu.memory_space<vmem>>, %arg2: memref<32x96xf32, #tpu.memory_space<vmem>>, %arg3: memref<1x96xf32, #tpu.memory_space<vmem>>, %arg4: memref<1x96xf32, #tpu.memory_space<vmem>>, %arg5: memref<32x96xf32, #tpu.memory_space<vmem>>, %arg6: memref<32x96xf32, #tpu.memory_space<vmem>>, %arg7: memref<1x96xf32, #tpu.memory_space<vmem>>, %arg8: memref<1x96xf32, #tpu.memory_space<vmem>>, %arg9: memref<1x32xf32, #tpu.memory_space<vmem>>, %arg10: memref<1x32xf32, #tpu.memory_space<vmem>>, %arg11: memref<32x16xf32, #tpu.memory_space<vmem>>, %arg12: memref<1x16xf32, #tpu.memory_space<vmem>>, %arg13: memref<1x1xf32, #tpu.memory_space<smem>>, %arg14: memref<1x1xf32, #tpu.memory_space<smem>>, %arg15: memref<2x1xf32, #tpu.memory_space<vmem>>) attributes {dimension_semantics = [], scalar_prefetch = 0 : i64, scratch_operands = 0 : i64, tpu.core_type = #tpu.core_type<tc>} {
    %c0 = arith.constant 0 : index
    %c0_0 = arith.constant 0 : index
    %0 = vector.load %arg1[%c0, %c0_0] : memref<32x96xf32, #tpu.memory_space<vmem>>, vector<32x96xf32>
    %c0_1 = arith.constant 0 : index
    %c0_2 = arith.constant 0 : index
    %1 = vector.load %arg2[%c0_1, %c0_2] : memref<32x96xf32, #tpu.memory_space<vmem>>, vector<32x96xf32>
    %c0_3 = arith.constant 0 : index
    %c0_4 = arith.constant 0 : index
    %2 = vector.load %arg5[%c0_3, %c0_4] : memref<32x96xf32, #tpu.memory_space<vmem>>, vector<32x96xf32>
    %c0_5 = arith.constant 0 : index
    %c0_6 = arith.constant 0 : index
    %3 = vector.load %arg6[%c0_5, %c0_6] : memref<32x96xf32, #tpu.memory_space<vmem>>, vector<32x96xf32>
    %c0_7 = arith.constant 0 : index
    %c0_8 = arith.constant 0 : index
    %4 = vector.load %arg3[%c0_7, %c0_8] : memref<1x96xf32, #tpu.memory_space<vmem>>, vector<1x96xf32>
    %c0_9 = arith.constant 0 : index
    %c0_10 = arith.constant 0 : index
    %5 = vector.load %arg4[%c0_9, %c0_10] : memref<1x96xf32, #tpu.memory_space<vmem>>, vector<1x96xf32>
    %c0_11 = arith.constant 0 : index
    %c0_12 = arith.constant 0 : index
    %6 = vector.load %arg7[%c0_11, %c0_12] : memref<1x96xf32, #tpu.memory_space<vmem>>, vector<1x96xf32>
    %c0_13 = arith.constant 0 : index
    %c0_14 = arith.constant 0 : index
    %7 = vector.load %arg8[%c0_13, %c0_14] : memref<1x96xf32, #tpu.memory_space<vmem>>, vector<1x96xf32>
    %8 = vector.extract_strided_slice %4 {offsets = [0, 0], sizes = [1, 64], strides = [1, 1]} : vector<1x96xf32> to vector<1x64xf32>
    %9 = vector.extract_strided_slice %5 {offsets = [0, 0], sizes = [1, 64], strides = [1, 1]} : vector<1x96xf32> to vector<1x64xf32>
    %10 = arith.addf %8, %9 : vector<1x64xf32>
    %11 = vector.extract_strided_slice %4 {offsets = [0, 64], sizes = [1, 32], strides = [1, 1]} : vector<1x96xf32> to vector<1x32xf32>
    %12 = vector.extract_strided_slice %5 {offsets = [0, 64], sizes = [1, 32], strides = [1, 1]} : vector<1x96xf32> to vector<1x32xf32>
    %13 = vector.extract_strided_slice %6 {offsets = [0, 0], sizes = [1, 64], strides = [1, 1]} : vector<1x96xf32> to vector<1x64xf32>
    %14 = vector.extract_strided_slice %7 {offsets = [0, 0], sizes = [1, 64], strides = [1, 1]} : vector<1x96xf32> to vector<1x64xf32>
    %15 = arith.addf %13, %14 : vector<1x64xf32>
    %16 = vector.extract_strided_slice %6 {offsets = [0, 64], sizes = [1, 32], strides = [1, 1]} : vector<1x96xf32> to vector<1x32xf32>
    %17 = vector.extract_strided_slice %7 {offsets = [0, 64], sizes = [1, 32], strides = [1, 1]} : vector<1x96xf32> to vector<1x32xf32>
    %c0_15 = arith.constant 0 : index
    %c0_16 = arith.constant 0 : index
    %18 = vector.load %arg0[%c0_15, %c0_16] : memref<32x32xf32, #tpu.memory_space<vmem>>, vector<32x32xf32>
    %cst = arith.constant dense<0.000000e+00> : vector<32x96xf32>
    %19 = tpu.matmul %18, %0, %cst {dimension_numbers = #tpu.dot_dimension_numbers<[1], [0], [0], [1], [0, 0, 1, 1], [], []>} : vector<32x32xf32>, vector<32x96xf32>, vector<32x96xf32> -> vector<32x96xf32>
    %cst_17 = arith.constant 0.000000e+00 : f32
    %20 = vector.broadcast %cst_17 : f32 to vector<4x32xf32>
    %cst_18 = arith.constant 0.000000e+00 : f32
    %21 = vector.broadcast %cst_18 : f32 to vector<4x32xf32>
    %22 = vector.extract_strided_slice %19 {offsets = [0, 0], sizes = [4, 96], strides = [1, 1]} : vector<32x96xf32> to vector<4x96xf32>
    %cst_19 = arith.constant dense<0.000000e+00> : vector<4x96xf32>
    %23 = tpu.matmul %20, %1, %cst_19 {dimension_numbers = #tpu.dot_dimension_numbers<[1], [0], [0], [1], [0, 0, 1, 1], [], []>} : vector<4x32xf32>, vector<32x96xf32>, vector<4x96xf32> -> vector<4x96xf32>
    %24 = vector.extract_strided_slice %22 {offsets = [0, 0], sizes = [4, 64], strides = [1, 1]} : vector<4x96xf32> to vector<4x64xf32>
    %25 = vector.extract_strided_slice %23 {offsets = [0, 0], sizes = [4, 64], strides = [1, 1]} : vector<4x96xf32> to vector<4x64xf32>
    %26 = arith.addf %24, %25 : vector<4x64xf32>
    %27 = vector.broadcast %10 : vector<1x64xf32> to vector<4x64xf32>
    %28 = arith.addf %26, %27 : vector<4x64xf32>
    %29 = arith.negf %28 : vector<4x64xf32>
    %30 = math.exp %29 : vector<4x64xf32>
    %cst_20 = arith.constant 1.000000e+00 : f32
    %31 = vector.broadcast %cst_20 : f32 to vector<4x64xf32>
    %32 = arith.addf %31, %30 : vector<4x64xf32>
    %33 = arith.divf %31, %32 : vector<4x64xf32>
    %34 = vector.extract_strided_slice %33 {offsets = [0, 0], sizes = [4, 32], strides = [1, 1]} : vector<4x64xf32> to vector<4x32xf32>
    %35 = vector.extract_strided_slice %33 {offsets = [0, 32], sizes = [4, 32], strides = [1, 1]} : vector<4x64xf32> to vector<4x32xf32>
    %36 = vector.extract_strided_slice %22 {offsets = [0, 64], sizes = [4, 32], strides = [1, 1]} : vector<4x96xf32> to vector<4x32xf32>
    %37 = vector.broadcast %11 : vector<1x32xf32> to vector<4x32xf32>
    %38 = arith.addf %36, %37 : vector<4x32xf32>
    %39 = vector.extract_strided_slice %23 {offsets = [0, 64], sizes = [4, 32], strides = [1, 1]} : vector<4x96xf32> to vector<4x32xf32>
    %40 = vector.broadcast %12 : vector<1x32xf32> to vector<4x32xf32>
    %41 = arith.addf %39, %40 : vector<4x32xf32>
    %42 = arith.mulf %34, %41 : vector<4x32xf32>
    %43 = arith.addf %38, %42 : vector<4x32xf32>
    %44 = math.tanh %43 : vector<4x32xf32>
    %cst_21 = arith.constant 1.000000e+00 : f32
    %45 = vector.broadcast %cst_21 : f32 to vector<4x32xf32>
    %46 = arith.subf %45, %35 : vector<4x32xf32>
    %47 = arith.mulf %46, %44 : vector<4x32xf32>
    %48 = arith.mulf %35, %20 : vector<4x32xf32>
    %49 = arith.addf %47, %48 : vector<4x32xf32>
    %cst_22 = arith.constant dense<0.000000e+00> : vector<4x96xf32>
    %50 = tpu.matmul %49, %2, %cst_22 {dimension_numbers = #tpu.dot_dimension_numbers<[1], [0], [0], [1], [0, 0, 1, 1], [], []>} : vector<4x32xf32>, vector<32x96xf32>, vector<4x96xf32> -> vector<4x96xf32>
    %cst_23 = arith.constant dense<0.000000e+00> : vector<4x96xf32>
    %51 = tpu.matmul %21, %3, %cst_23 {dimension_numbers = #tpu.dot_dimension_numbers<[1], [0], [0], [1], [0, 0, 1, 1], [], []>} : vector<4x32xf32>, vector<32x96xf32>, vector<4x96xf32> -> vector<4x96xf32>
    %52 = vector.extract_strided_slice %50 {offsets = [0, 0], sizes = [4, 64], strides = [1, 1]} : vector<4x96xf32> to vector<4x64xf32>
    %53 = vector.extract_strided_slice %51 {offsets = [0, 0], sizes = [4, 64], strides = [1, 1]} : vector<4x96xf32> to vector<4x64xf32>
    %54 = arith.addf %52, %53 : vector<4x64xf32>
    %55 = vector.broadcast %15 : vector<1x64xf32> to vector<4x64xf32>
    %56 = arith.addf %54, %55 : vector<4x64xf32>
    %57 = arith.negf %56 : vector<4x64xf32>
    %58 = math.exp %57 : vector<4x64xf32>
    %cst_24 = arith.constant 1.000000e+00 : f32
    %59 = vector.broadcast %cst_24 : f32 to vector<4x64xf32>
    %60 = arith.addf %59, %58 : vector<4x64xf32>
    %61 = arith.divf %59, %60 : vector<4x64xf32>
    %62 = vector.extract_strided_slice %61 {offsets = [0, 0], sizes = [4, 32], strides = [1, 1]} : vector<4x64xf32> to vector<4x32xf32>
    %63 = vector.extract_strided_slice %61 {offsets = [0, 32], sizes = [4, 32], strides = [1, 1]} : vector<4x64xf32> to vector<4x32xf32>
    %64 = vector.extract_strided_slice %50 {offsets = [0, 64], sizes = [4, 32], strides = [1, 1]} : vector<4x96xf32> to vector<4x32xf32>
    %65 = vector.broadcast %16 : vector<1x32xf32> to vector<4x32xf32>
    %66 = arith.addf %64, %65 : vector<4x32xf32>
    %67 = vector.extract_strided_slice %51 {offsets = [0, 64], sizes = [4, 32], strides = [1, 1]} : vector<4x96xf32> to vector<4x32xf32>
    %68 = vector.broadcast %17 : vector<1x32xf32> to vector<4x32xf32>
    %69 = arith.addf %67, %68 : vector<4x32xf32>
    %70 = arith.mulf %62, %69 : vector<4x32xf32>
    %71 = arith.addf %66, %70 : vector<4x32xf32>
    %72 = math.tanh %71 : vector<4x32xf32>
    %cst_25 = arith.constant 1.000000e+00 : f32
    %73 = vector.broadcast %cst_25 : f32 to vector<4x32xf32>
    %74 = arith.subf %73, %63 : vector<4x32xf32>
    %75 = arith.mulf %74, %72 : vector<4x32xf32>
    %76 = arith.mulf %63, %21 : vector<4x32xf32>
    %77 = arith.addf %75, %76 : vector<4x32xf32>
    %78 = vector.extract_strided_slice %19 {offsets = [4, 0], sizes = [4, 96], strides = [1, 1]} : vector<32x96xf32> to vector<4x96xf32>
    %cst_26 = arith.constant dense<0.000000e+00> : vector<4x96xf32>
    %79 = tpu.matmul %49, %1, %cst_26 {dimension_numbers = #tpu.dot_dimension_numbers<[1], [0], [0], [1], [0, 0, 1, 1], [], []>} : vector<4x32xf32>, vector<32x96xf32>, vector<4x96xf32> -> vector<4x96xf32>
    %80 = vector.extract_strided_slice %78 {offsets = [0, 0], sizes = [4, 64], strides = [1, 1]} : vector<4x96xf32> to vector<4x64xf32>
    %81 = vector.extract_strided_slice %79 {offsets = [0, 0], sizes = [4, 64], strides = [1, 1]} : vector<4x96xf32> to vector<4x64xf32>
    %82 = arith.addf %80, %81 : vector<4x64xf32>
    %83 = vector.broadcast %10 : vector<1x64xf32> to vector<4x64xf32>
    %84 = arith.addf %82, %83 : vector<4x64xf32>
    %85 = arith.negf %84 : vector<4x64xf32>
    %86 = math.exp %85 : vector<4x64xf32>
    %cst_27 = arith.constant 1.000000e+00 : f32
    %87 = vector.broadcast %cst_27 : f32 to vector<4x64xf32>
    %88 = arith.addf %87, %86 : vector<4x64xf32>
    %89 = arith.divf %87, %88 : vector<4x64xf32>
    %90 = vector.extract_strided_slice %89 {offsets = [0, 0], sizes = [4, 32], strides = [1, 1]} : vector<4x64xf32> to vector<4x32xf32>
    %91 = vector.extract_strided_slice %89 {offsets = [0, 32], sizes = [4, 32], strides = [1, 1]} : vector<4x64xf32> to vector<4x32xf32>
    %92 = vector.extract_strided_slice %78 {offsets = [0, 64], sizes = [4, 32], strides = [1, 1]} : vector<4x96xf32> to vector<4x32xf32>
    %93 = vector.broadcast %11 : vector<1x32xf32> to vector<4x32xf32>
    %94 = arith.addf %92, %93 : vector<4x32xf32>
    %95 = vector.extract_strided_slice %79 {offsets = [0, 64], sizes = [4, 32], strides = [1, 1]} : vector<4x96xf32> to vector<4x32xf32>
    %96 = vector.broadcast %12 : vector<1x32xf32> to vector<4x32xf32>
    %97 = arith.addf %95, %96 : vector<4x32xf32>
    %98 = arith.mulf %90, %97 : vector<4x32xf32>
    %99 = arith.addf %94, %98 : vector<4x32xf32>
    %100 = math.tanh %99 : vector<4x32xf32>
    %cst_28 = arith.constant 1.000000e+00 : f32
    %101 = vector.broadcast %cst_28 : f32 to vector<4x32xf32>
    %102 = arith.subf %101, %91 : vector<4x32xf32>
    %103 = arith.mulf %102, %100 : vector<4x32xf32>
    %104 = arith.mulf %91, %49 : vector<4x32xf32>
    %105 = arith.addf %103, %104 : vector<4x32xf32>
    %cst_29 = arith.constant dense<0.000000e+00> : vector<4x96xf32>
    %106 = tpu.matmul %105, %2, %cst_29 {dimension_numbers = #tpu.dot_dimension_numbers<[1], [0], [0], [1], [0, 0, 1, 1], [], []>} : vector<4x32xf32>, vector<32x96xf32>, vector<4x96xf32> -> vector<4x96xf32>
    %cst_30 = arith.constant dense<0.000000e+00> : vector<4x96xf32>
    %107 = tpu.matmul %77, %3, %cst_30 {dimension_numbers = #tpu.dot_dimension_numbers<[1], [0], [0], [1], [0, 0, 1, 1], [], []>} : vector<4x32xf32>, vector<32x96xf32>, vector<4x96xf32> -> vector<4x96xf32>
    %108 = vector.extract_strided_slice %106 {offsets = [0, 0], sizes = [4, 64], strides = [1, 1]} : vector<4x96xf32> to vector<4x64xf32>
    %109 = vector.extract_strided_slice %107 {offsets = [0, 0], sizes = [4, 64], strides = [1, 1]} : vector<4x96xf32> to vector<4x64xf32>
    %110 = arith.addf %108, %109 : vector<4x64xf32>
    %111 = vector.broadcast %15 : vector<1x64xf32> to vector<4x64xf32>
    %112 = arith.addf %110, %111 : vector<4x64xf32>
    %113 = arith.negf %112 : vector<4x64xf32>
    %114 = math.exp %113 : vector<4x64xf32>
    %cst_31 = arith.constant 1.000000e+00 : f32
    %115 = vector.broadcast %cst_31 : f32 to vector<4x64xf32>
    %116 = arith.addf %115, %114 : vector<4x64xf32>
    %117 = arith.divf %115, %116 : vector<4x64xf32>
    %118 = vector.extract_strided_slice %117 {offsets = [0, 0], sizes = [4, 32], strides = [1, 1]} : vector<4x64xf32> to vector<4x32xf32>
    %119 = vector.extract_strided_slice %117 {offsets = [0, 32], sizes = [4, 32], strides = [1, 1]} : vector<4x64xf32> to vector<4x32xf32>
    %120 = vector.extract_strided_slice %106 {offsets = [0, 64], sizes = [4, 32], strides = [1, 1]} : vector<4x96xf32> to vector<4x32xf32>
    %121 = vector.broadcast %16 : vector<1x32xf32> to vector<4x32xf32>
    %122 = arith.addf %120, %121 : vector<4x32xf32>
    %123 = vector.extract_strided_slice %107 {offsets = [0, 64], sizes = [4, 32], strides = [1, 1]} : vector<4x96xf32> to vector<4x32xf32>
    %124 = vector.broadcast %17 : vector<1x32xf32> to vector<4x32xf32>
    %125 = arith.addf %123, %124 : vector<4x32xf32>
    %126 = arith.mulf %118, %125 : vector<4x32xf32>
    %127 = arith.addf %122, %126 : vector<4x32xf32>
    %128 = math.tanh %127 : vector<4x32xf32>
    %cst_32 = arith.constant 1.000000e+00 : f32
    %129 = vector.broadcast %cst_32 : f32 to vector<4x32xf32>
    %130 = arith.subf %129, %119 : vector<4x32xf32>
    %131 = arith.mulf %130, %128 : vector<4x32xf32>
    %132 = arith.mulf %119, %77 : vector<4x32xf32>
    %133 = arith.addf %131, %132 : vector<4x32xf32>
    %134 = vector.extract_strided_slice %19 {offsets = [8, 0], sizes = [4, 96], strides = [1, 1]} : vector<32x96xf32> to vector<4x96xf32>
    %cst_33 = arith.constant dense<0.000000e+00> : vector<4x96xf32>
    %135 = tpu.matmul %105, %1, %cst_33 {dimension_numbers = #tpu.dot_dimension_numbers<[1], [0], [0], [1], [0, 0, 1, 1], [], []>} : vector<4x32xf32>, vector<32x96xf32>, vector<4x96xf32> -> vector<4x96xf32>
    %136 = vector.extract_strided_slice %134 {offsets = [0, 0], sizes = [4, 64], strides = [1, 1]} : vector<4x96xf32> to vector<4x64xf32>
    %137 = vector.extract_strided_slice %135 {offsets = [0, 0], sizes = [4, 64], strides = [1, 1]} : vector<4x96xf32> to vector<4x64xf32>
    %138 = arith.addf %136, %137 : vector<4x64xf32>
    %139 = vector.broadcast %10 : vector<1x64xf32> to vector<4x64xf32>
    %140 = arith.addf %138, %139 : vector<4x64xf32>
    %141 = arith.negf %140 : vector<4x64xf32>
    %142 = math.exp %141 : vector<4x64xf32>
    %cst_34 = arith.constant 1.000000e+00 : f32
    %143 = vector.broadcast %cst_34 : f32 to vector<4x64xf32>
    %144 = arith.addf %143, %142 : vector<4x64xf32>
    %145 = arith.divf %143, %144 : vector<4x64xf32>
    %146 = vector.extract_strided_slice %145 {offsets = [0, 0], sizes = [4, 32], strides = [1, 1]} : vector<4x64xf32> to vector<4x32xf32>
    %147 = vector.extract_strided_slice %145 {offsets = [0, 32], sizes = [4, 32], strides = [1, 1]} : vector<4x64xf32> to vector<4x32xf32>
    %148 = vector.extract_strided_slice %134 {offsets = [0, 64], sizes = [4, 32], strides = [1, 1]} : vector<4x96xf32> to vector<4x32xf32>
    %149 = vector.broadcast %11 : vector<1x32xf32> to vector<4x32xf32>
    %150 = arith.addf %148, %149 : vector<4x32xf32>
    %151 = vector.extract_strided_slice %135 {offsets = [0, 64], sizes = [4, 32], strides = [1, 1]} : vector<4x96xf32> to vector<4x32xf32>
    %152 = vector.broadcast %12 : vector<1x32xf32> to vector<4x32xf32>
    %153 = arith.addf %151, %152 : vector<4x32xf32>
    %154 = arith.mulf %146, %153 : vector<4x32xf32>
    %155 = arith.addf %150, %154 : vector<4x32xf32>
    %156 = math.tanh %155 : vector<4x32xf32>
    %cst_35 = arith.constant 1.000000e+00 : f32
    %157 = vector.broadcast %cst_35 : f32 to vector<4x32xf32>
    %158 = arith.subf %157, %147 : vector<4x32xf32>
    %159 = arith.mulf %158, %156 : vector<4x32xf32>
    %160 = arith.mulf %147, %105 : vector<4x32xf32>
    %161 = arith.addf %159, %160 : vector<4x32xf32>
    %cst_36 = arith.constant dense<0.000000e+00> : vector<4x96xf32>
    %162 = tpu.matmul %161, %2, %cst_36 {dimension_numbers = #tpu.dot_dimension_numbers<[1], [0], [0], [1], [0, 0, 1, 1], [], []>} : vector<4x32xf32>, vector<32x96xf32>, vector<4x96xf32> -> vector<4x96xf32>
    %cst_37 = arith.constant dense<0.000000e+00> : vector<4x96xf32>
    %163 = tpu.matmul %133, %3, %cst_37 {dimension_numbers = #tpu.dot_dimension_numbers<[1], [0], [0], [1], [0, 0, 1, 1], [], []>} : vector<4x32xf32>, vector<32x96xf32>, vector<4x96xf32> -> vector<4x96xf32>
    %164 = vector.extract_strided_slice %162 {offsets = [0, 0], sizes = [4, 64], strides = [1, 1]} : vector<4x96xf32> to vector<4x64xf32>
    %165 = vector.extract_strided_slice %163 {offsets = [0, 0], sizes = [4, 64], strides = [1, 1]} : vector<4x96xf32> to vector<4x64xf32>
    %166 = arith.addf %164, %165 : vector<4x64xf32>
    %167 = vector.broadcast %15 : vector<1x64xf32> to vector<4x64xf32>
    %168 = arith.addf %166, %167 : vector<4x64xf32>
    %169 = arith.negf %168 : vector<4x64xf32>
    %170 = math.exp %169 : vector<4x64xf32>
    %cst_38 = arith.constant 1.000000e+00 : f32
    %171 = vector.broadcast %cst_38 : f32 to vector<4x64xf32>
    %172 = arith.addf %171, %170 : vector<4x64xf32>
    %173 = arith.divf %171, %172 : vector<4x64xf32>
    %174 = vector.extract_strided_slice %173 {offsets = [0, 0], sizes = [4, 32], strides = [1, 1]} : vector<4x64xf32> to vector<4x32xf32>
    %175 = vector.extract_strided_slice %173 {offsets = [0, 32], sizes = [4, 32], strides = [1, 1]} : vector<4x64xf32> to vector<4x32xf32>
    %176 = vector.extract_strided_slice %162 {offsets = [0, 64], sizes = [4, 32], strides = [1, 1]} : vector<4x96xf32> to vector<4x32xf32>
    %177 = vector.broadcast %16 : vector<1x32xf32> to vector<4x32xf32>
    %178 = arith.addf %176, %177 : vector<4x32xf32>
    %179 = vector.extract_strided_slice %163 {offsets = [0, 64], sizes = [4, 32], strides = [1, 1]} : vector<4x96xf32> to vector<4x32xf32>
    %180 = vector.broadcast %17 : vector<1x32xf32> to vector<4x32xf32>
    %181 = arith.addf %179, %180 : vector<4x32xf32>
    %182 = arith.mulf %174, %181 : vector<4x32xf32>
    %183 = arith.addf %178, %182 : vector<4x32xf32>
    %184 = math.tanh %183 : vector<4x32xf32>
    %cst_39 = arith.constant 1.000000e+00 : f32
    %185 = vector.broadcast %cst_39 : f32 to vector<4x32xf32>
    %186 = arith.subf %185, %175 : vector<4x32xf32>
    %187 = arith.mulf %186, %184 : vector<4x32xf32>
    %188 = arith.mulf %175, %133 : vector<4x32xf32>
    %189 = arith.addf %187, %188 : vector<4x32xf32>
    %190 = vector.extract_strided_slice %19 {offsets = [12, 0], sizes = [4, 96], strides = [1, 1]} : vector<32x96xf32> to vector<4x96xf32>
    %cst_40 = arith.constant dense<0.000000e+00> : vector<4x96xf32>
    %191 = tpu.matmul %161, %1, %cst_40 {dimension_numbers = #tpu.dot_dimension_numbers<[1], [0], [0], [1], [0, 0, 1, 1], [], []>} : vector<4x32xf32>, vector<32x96xf32>, vector<4x96xf32> -> vector<4x96xf32>
    %192 = vector.extract_strided_slice %190 {offsets = [0, 0], sizes = [4, 64], strides = [1, 1]} : vector<4x96xf32> to vector<4x64xf32>
    %193 = vector.extract_strided_slice %191 {offsets = [0, 0], sizes = [4, 64], strides = [1, 1]} : vector<4x96xf32> to vector<4x64xf32>
    %194 = arith.addf %192, %193 : vector<4x64xf32>
    %195 = vector.broadcast %10 : vector<1x64xf32> to vector<4x64xf32>
    %196 = arith.addf %194, %195 : vector<4x64xf32>
    %197 = arith.negf %196 : vector<4x64xf32>
    %198 = math.exp %197 : vector<4x64xf32>
    %cst_41 = arith.constant 1.000000e+00 : f32
    %199 = vector.broadcast %cst_41 : f32 to vector<4x64xf32>
    %200 = arith.addf %199, %198 : vector<4x64xf32>
    %201 = arith.divf %199, %200 : vector<4x64xf32>
    %202 = vector.extract_strided_slice %201 {offsets = [0, 0], sizes = [4, 32], strides = [1, 1]} : vector<4x64xf32> to vector<4x32xf32>
    %203 = vector.extract_strided_slice %201 {offsets = [0, 32], sizes = [4, 32], strides = [1, 1]} : vector<4x64xf32> to vector<4x32xf32>
    %204 = vector.extract_strided_slice %190 {offsets = [0, 64], sizes = [4, 32], strides = [1, 1]} : vector<4x96xf32> to vector<4x32xf32>
    %205 = vector.broadcast %11 : vector<1x32xf32> to vector<4x32xf32>
    %206 = arith.addf %204, %205 : vector<4x32xf32>
    %207 = vector.extract_strided_slice %191 {offsets = [0, 64], sizes = [4, 32], strides = [1, 1]} : vector<4x96xf32> to vector<4x32xf32>
    %208 = vector.broadcast %12 : vector<1x32xf32> to vector<4x32xf32>
    %209 = arith.addf %207, %208 : vector<4x32xf32>
    %210 = arith.mulf %202, %209 : vector<4x32xf32>
    %211 = arith.addf %206, %210 : vector<4x32xf32>
    %212 = math.tanh %211 : vector<4x32xf32>
    %cst_42 = arith.constant 1.000000e+00 : f32
    %213 = vector.broadcast %cst_42 : f32 to vector<4x32xf32>
    %214 = arith.subf %213, %203 : vector<4x32xf32>
    %215 = arith.mulf %214, %212 : vector<4x32xf32>
    %216 = arith.mulf %203, %161 : vector<4x32xf32>
    %217 = arith.addf %215, %216 : vector<4x32xf32>
    %cst_43 = arith.constant dense<0.000000e+00> : vector<4x96xf32>
    %218 = tpu.matmul %217, %2, %cst_43 {dimension_numbers = #tpu.dot_dimension_numbers<[1], [0], [0], [1], [0, 0, 1, 1], [], []>} : vector<4x32xf32>, vector<32x96xf32>, vector<4x96xf32> -> vector<4x96xf32>
    %cst_44 = arith.constant dense<0.000000e+00> : vector<4x96xf32>
    %219 = tpu.matmul %189, %3, %cst_44 {dimension_numbers = #tpu.dot_dimension_numbers<[1], [0], [0], [1], [0, 0, 1, 1], [], []>} : vector<4x32xf32>, vector<32x96xf32>, vector<4x96xf32> -> vector<4x96xf32>
    %220 = vector.extract_strided_slice %218 {offsets = [0, 0], sizes = [4, 64], strides = [1, 1]} : vector<4x96xf32> to vector<4x64xf32>
    %221 = vector.extract_strided_slice %219 {offsets = [0, 0], sizes = [4, 64], strides = [1, 1]} : vector<4x96xf32> to vector<4x64xf32>
    %222 = arith.addf %220, %221 : vector<4x64xf32>
    %223 = vector.broadcast %15 : vector<1x64xf32> to vector<4x64xf32>
    %224 = arith.addf %222, %223 : vector<4x64xf32>
    %225 = arith.negf %224 : vector<4x64xf32>
    %226 = math.exp %225 : vector<4x64xf32>
    %cst_45 = arith.constant 1.000000e+00 : f32
    %227 = vector.broadcast %cst_45 : f32 to vector<4x64xf32>
    %228 = arith.addf %227, %226 : vector<4x64xf32>
    %229 = arith.divf %227, %228 : vector<4x64xf32>
    %230 = vector.extract_strided_slice %229 {offsets = [0, 0], sizes = [4, 32], strides = [1, 1]} : vector<4x64xf32> to vector<4x32xf32>
    %231 = vector.extract_strided_slice %229 {offsets = [0, 32], sizes = [4, 32], strides = [1, 1]} : vector<4x64xf32> to vector<4x32xf32>
    %232 = vector.extract_strided_slice %218 {offsets = [0, 64], sizes = [4, 32], strides = [1, 1]} : vector<4x96xf32> to vector<4x32xf32>
    %233 = vector.broadcast %16 : vector<1x32xf32> to vector<4x32xf32>
    %234 = arith.addf %232, %233 : vector<4x32xf32>
    %235 = vector.extract_strided_slice %219 {offsets = [0, 64], sizes = [4, 32], strides = [1, 1]} : vector<4x96xf32> to vector<4x32xf32>
    %236 = vector.broadcast %17 : vector<1x32xf32> to vector<4x32xf32>
    %237 = arith.addf %235, %236 : vector<4x32xf32>
    %238 = arith.mulf %230, %237 : vector<4x32xf32>
    %239 = arith.addf %234, %238 : vector<4x32xf32>
    %240 = math.tanh %239 : vector<4x32xf32>
    %cst_46 = arith.constant 1.000000e+00 : f32
    %241 = vector.broadcast %cst_46 : f32 to vector<4x32xf32>
    %242 = arith.subf %241, %231 : vector<4x32xf32>
    %243 = arith.mulf %242, %240 : vector<4x32xf32>
    %244 = arith.mulf %231, %189 : vector<4x32xf32>
    %245 = arith.addf %243, %244 : vector<4x32xf32>
    %246 = vector.extract_strided_slice %19 {offsets = [16, 0], sizes = [4, 96], strides = [1, 1]} : vector<32x96xf32> to vector<4x96xf32>
    %cst_47 = arith.constant dense<0.000000e+00> : vector<4x96xf32>
    %247 = tpu.matmul %217, %1, %cst_47 {dimension_numbers = #tpu.dot_dimension_numbers<[1], [0], [0], [1], [0, 0, 1, 1], [], []>} : vector<4x32xf32>, vector<32x96xf32>, vector<4x96xf32> -> vector<4x96xf32>
    %248 = vector.extract_strided_slice %246 {offsets = [0, 0], sizes = [4, 64], strides = [1, 1]} : vector<4x96xf32> to vector<4x64xf32>
    %249 = vector.extract_strided_slice %247 {offsets = [0, 0], sizes = [4, 64], strides = [1, 1]} : vector<4x96xf32> to vector<4x64xf32>
    %250 = arith.addf %248, %249 : vector<4x64xf32>
    %251 = vector.broadcast %10 : vector<1x64xf32> to vector<4x64xf32>
    %252 = arith.addf %250, %251 : vector<4x64xf32>
    %253 = arith.negf %252 : vector<4x64xf32>
    %254 = math.exp %253 : vector<4x64xf32>
    %cst_48 = arith.constant 1.000000e+00 : f32
    %255 = vector.broadcast %cst_48 : f32 to vector<4x64xf32>
    %256 = arith.addf %255, %254 : vector<4x64xf32>
    %257 = arith.divf %255, %256 : vector<4x64xf32>
    %258 = vector.extract_strided_slice %257 {offsets = [0, 0], sizes = [4, 32], strides = [1, 1]} : vector<4x64xf32> to vector<4x32xf32>
    %259 = vector.extract_strided_slice %257 {offsets = [0, 32], sizes = [4, 32], strides = [1, 1]} : vector<4x64xf32> to vector<4x32xf32>
    %260 = vector.extract_strided_slice %246 {offsets = [0, 64], sizes = [4, 32], strides = [1, 1]} : vector<4x96xf32> to vector<4x32xf32>
    %261 = vector.broadcast %11 : vector<1x32xf32> to vector<4x32xf32>
    %262 = arith.addf %260, %261 : vector<4x32xf32>
    %263 = vector.extract_strided_slice %247 {offsets = [0, 64], sizes = [4, 32], strides = [1, 1]} : vector<4x96xf32> to vector<4x32xf32>
    %264 = vector.broadcast %12 : vector<1x32xf32> to vector<4x32xf32>
    %265 = arith.addf %263, %264 : vector<4x32xf32>
    %266 = arith.mulf %258, %265 : vector<4x32xf32>
    %267 = arith.addf %262, %266 : vector<4x32xf32>
    %268 = math.tanh %267 : vector<4x32xf32>
    %cst_49 = arith.constant 1.000000e+00 : f32
    %269 = vector.broadcast %cst_49 : f32 to vector<4x32xf32>
    %270 = arith.subf %269, %259 : vector<4x32xf32>
    %271 = arith.mulf %270, %268 : vector<4x32xf32>
    %272 = arith.mulf %259, %217 : vector<4x32xf32>
    %273 = arith.addf %271, %272 : vector<4x32xf32>
    %cst_50 = arith.constant dense<0.000000e+00> : vector<4x96xf32>
    %274 = tpu.matmul %273, %2, %cst_50 {dimension_numbers = #tpu.dot_dimension_numbers<[1], [0], [0], [1], [0, 0, 1, 1], [], []>} : vector<4x32xf32>, vector<32x96xf32>, vector<4x96xf32> -> vector<4x96xf32>
    %cst_51 = arith.constant dense<0.000000e+00> : vector<4x96xf32>
    %275 = tpu.matmul %245, %3, %cst_51 {dimension_numbers = #tpu.dot_dimension_numbers<[1], [0], [0], [1], [0, 0, 1, 1], [], []>} : vector<4x32xf32>, vector<32x96xf32>, vector<4x96xf32> -> vector<4x96xf32>
    %276 = vector.extract_strided_slice %274 {offsets = [0, 0], sizes = [4, 64], strides = [1, 1]} : vector<4x96xf32> to vector<4x64xf32>
    %277 = vector.extract_strided_slice %275 {offsets = [0, 0], sizes = [4, 64], strides = [1, 1]} : vector<4x96xf32> to vector<4x64xf32>
    %278 = arith.addf %276, %277 : vector<4x64xf32>
    %279 = vector.broadcast %15 : vector<1x64xf32> to vector<4x64xf32>
    %280 = arith.addf %278, %279 : vector<4x64xf32>
    %281 = arith.negf %280 : vector<4x64xf32>
    %282 = math.exp %281 : vector<4x64xf32>
    %cst_52 = arith.constant 1.000000e+00 : f32
    %283 = vector.broadcast %cst_52 : f32 to vector<4x64xf32>
    %284 = arith.addf %283, %282 : vector<4x64xf32>
    %285 = arith.divf %283, %284 : vector<4x64xf32>
    %286 = vector.extract_strided_slice %285 {offsets = [0, 0], sizes = [4, 32], strides = [1, 1]} : vector<4x64xf32> to vector<4x32xf32>
    %287 = vector.extract_strided_slice %285 {offsets = [0, 32], sizes = [4, 32], strides = [1, 1]} : vector<4x64xf32> to vector<4x32xf32>
    %288 = vector.extract_strided_slice %274 {offsets = [0, 64], sizes = [4, 32], strides = [1, 1]} : vector<4x96xf32> to vector<4x32xf32>
    %289 = vector.broadcast %16 : vector<1x32xf32> to vector<4x32xf32>
    %290 = arith.addf %288, %289 : vector<4x32xf32>
    %291 = vector.extract_strided_slice %275 {offsets = [0, 64], sizes = [4, 32], strides = [1, 1]} : vector<4x96xf32> to vector<4x32xf32>
    %292 = vector.broadcast %17 : vector<1x32xf32> to vector<4x32xf32>
    %293 = arith.addf %291, %292 : vector<4x32xf32>
    %294 = arith.mulf %286, %293 : vector<4x32xf32>
    %295 = arith.addf %290, %294 : vector<4x32xf32>
    %296 = math.tanh %295 : vector<4x32xf32>
    %cst_53 = arith.constant 1.000000e+00 : f32
    %297 = vector.broadcast %cst_53 : f32 to vector<4x32xf32>
    %298 = arith.subf %297, %287 : vector<4x32xf32>
    %299 = arith.mulf %298, %296 : vector<4x32xf32>
    %300 = arith.mulf %287, %245 : vector<4x32xf32>
    %301 = arith.addf %299, %300 : vector<4x32xf32>
    %302 = vector.extract_strided_slice %19 {offsets = [20, 0], sizes = [4, 96], strides = [1, 1]} : vector<32x96xf32> to vector<4x96xf32>
    %cst_54 = arith.constant dense<0.000000e+00> : vector<4x96xf32>
    %303 = tpu.matmul %273, %1, %cst_54 {dimension_numbers = #tpu.dot_dimension_numbers<[1], [0], [0], [1], [0, 0, 1, 1], [], []>} : vector<4x32xf32>, vector<32x96xf32>, vector<4x96xf32> -> vector<4x96xf32>
    %304 = vector.extract_strided_slice %302 {offsets = [0, 0], sizes = [4, 64], strides = [1, 1]} : vector<4x96xf32> to vector<4x64xf32>
    %305 = vector.extract_strided_slice %303 {offsets = [0, 0], sizes = [4, 64], strides = [1, 1]} : vector<4x96xf32> to vector<4x64xf32>
    %306 = arith.addf %304, %305 : vector<4x64xf32>
    %307 = vector.broadcast %10 : vector<1x64xf32> to vector<4x64xf32>
    %308 = arith.addf %306, %307 : vector<4x64xf32>
    %309 = arith.negf %308 : vector<4x64xf32>
    %310 = math.exp %309 : vector<4x64xf32>
    %cst_55 = arith.constant 1.000000e+00 : f32
    %311 = vector.broadcast %cst_55 : f32 to vector<4x64xf32>
    %312 = arith.addf %311, %310 : vector<4x64xf32>
    %313 = arith.divf %311, %312 : vector<4x64xf32>
    %314 = vector.extract_strided_slice %313 {offsets = [0, 0], sizes = [4, 32], strides = [1, 1]} : vector<4x64xf32> to vector<4x32xf32>
    %315 = vector.extract_strided_slice %313 {offsets = [0, 32], sizes = [4, 32], strides = [1, 1]} : vector<4x64xf32> to vector<4x32xf32>
    %316 = vector.extract_strided_slice %302 {offsets = [0, 64], sizes = [4, 32], strides = [1, 1]} : vector<4x96xf32> to vector<4x32xf32>
    %317 = vector.broadcast %11 : vector<1x32xf32> to vector<4x32xf32>
    %318 = arith.addf %316, %317 : vector<4x32xf32>
    %319 = vector.extract_strided_slice %303 {offsets = [0, 64], sizes = [4, 32], strides = [1, 1]} : vector<4x96xf32> to vector<4x32xf32>
    %320 = vector.broadcast %12 : vector<1x32xf32> to vector<4x32xf32>
    %321 = arith.addf %319, %320 : vector<4x32xf32>
    %322 = arith.mulf %314, %321 : vector<4x32xf32>
    %323 = arith.addf %318, %322 : vector<4x32xf32>
    %324 = math.tanh %323 : vector<4x32xf32>
    %cst_56 = arith.constant 1.000000e+00 : f32
    %325 = vector.broadcast %cst_56 : f32 to vector<4x32xf32>
    %326 = arith.subf %325, %315 : vector<4x32xf32>
    %327 = arith.mulf %326, %324 : vector<4x32xf32>
    %328 = arith.mulf %315, %273 : vector<4x32xf32>
    %329 = arith.addf %327, %328 : vector<4x32xf32>
    %cst_57 = arith.constant dense<0.000000e+00> : vector<4x96xf32>
    %330 = tpu.matmul %329, %2, %cst_57 {dimension_numbers = #tpu.dot_dimension_numbers<[1], [0], [0], [1], [0, 0, 1, 1], [], []>} : vector<4x32xf32>, vector<32x96xf32>, vector<4x96xf32> -> vector<4x96xf32>
    %cst_58 = arith.constant dense<0.000000e+00> : vector<4x96xf32>
    %331 = tpu.matmul %301, %3, %cst_58 {dimension_numbers = #tpu.dot_dimension_numbers<[1], [0], [0], [1], [0, 0, 1, 1], [], []>} : vector<4x32xf32>, vector<32x96xf32>, vector<4x96xf32> -> vector<4x96xf32>
    %332 = vector.extract_strided_slice %330 {offsets = [0, 0], sizes = [4, 64], strides = [1, 1]} : vector<4x96xf32> to vector<4x64xf32>
    %333 = vector.extract_strided_slice %331 {offsets = [0, 0], sizes = [4, 64], strides = [1, 1]} : vector<4x96xf32> to vector<4x64xf32>
    %334 = arith.addf %332, %333 : vector<4x64xf32>
    %335 = vector.broadcast %15 : vector<1x64xf32> to vector<4x64xf32>
    %336 = arith.addf %334, %335 : vector<4x64xf32>
    %337 = arith.negf %336 : vector<4x64xf32>
    %338 = math.exp %337 : vector<4x64xf32>
    %cst_59 = arith.constant 1.000000e+00 : f32
    %339 = vector.broadcast %cst_59 : f32 to vector<4x64xf32>
    %340 = arith.addf %339, %338 : vector<4x64xf32>
    %341 = arith.divf %339, %340 : vector<4x64xf32>
    %342 = vector.extract_strided_slice %341 {offsets = [0, 0], sizes = [4, 32], strides = [1, 1]} : vector<4x64xf32> to vector<4x32xf32>
    %343 = vector.extract_strided_slice %341 {offsets = [0, 32], sizes = [4, 32], strides = [1, 1]} : vector<4x64xf32> to vector<4x32xf32>
    %344 = vector.extract_strided_slice %330 {offsets = [0, 64], sizes = [4, 32], strides = [1, 1]} : vector<4x96xf32> to vector<4x32xf32>
    %345 = vector.broadcast %16 : vector<1x32xf32> to vector<4x32xf32>
    %346 = arith.addf %344, %345 : vector<4x32xf32>
    %347 = vector.extract_strided_slice %331 {offsets = [0, 64], sizes = [4, 32], strides = [1, 1]} : vector<4x96xf32> to vector<4x32xf32>
    %348 = vector.broadcast %17 : vector<1x32xf32> to vector<4x32xf32>
    %349 = arith.addf %347, %348 : vector<4x32xf32>
    %350 = arith.mulf %342, %349 : vector<4x32xf32>
    %351 = arith.addf %346, %350 : vector<4x32xf32>
    %352 = math.tanh %351 : vector<4x32xf32>
    %cst_60 = arith.constant 1.000000e+00 : f32
    %353 = vector.broadcast %cst_60 : f32 to vector<4x32xf32>
    %354 = arith.subf %353, %343 : vector<4x32xf32>
    %355 = arith.mulf %354, %352 : vector<4x32xf32>
    %356 = arith.mulf %343, %301 : vector<4x32xf32>
    %357 = arith.addf %355, %356 : vector<4x32xf32>
    %358 = vector.extract_strided_slice %19 {offsets = [24, 0], sizes = [4, 96], strides = [1, 1]} : vector<32x96xf32> to vector<4x96xf32>
    %cst_61 = arith.constant dense<0.000000e+00> : vector<4x96xf32>
    %359 = tpu.matmul %329, %1, %cst_61 {dimension_numbers = #tpu.dot_dimension_numbers<[1], [0], [0], [1], [0, 0, 1, 1], [], []>} : vector<4x32xf32>, vector<32x96xf32>, vector<4x96xf32> -> vector<4x96xf32>
    %360 = vector.extract_strided_slice %358 {offsets = [0, 0], sizes = [4, 64], strides = [1, 1]} : vector<4x96xf32> to vector<4x64xf32>
    %361 = vector.extract_strided_slice %359 {offsets = [0, 0], sizes = [4, 64], strides = [1, 1]} : vector<4x96xf32> to vector<4x64xf32>
    %362 = arith.addf %360, %361 : vector<4x64xf32>
    %363 = vector.broadcast %10 : vector<1x64xf32> to vector<4x64xf32>
    %364 = arith.addf %362, %363 : vector<4x64xf32>
    %365 = arith.negf %364 : vector<4x64xf32>
    %366 = math.exp %365 : vector<4x64xf32>
    %cst_62 = arith.constant 1.000000e+00 : f32
    %367 = vector.broadcast %cst_62 : f32 to vector<4x64xf32>
    %368 = arith.addf %367, %366 : vector<4x64xf32>
    %369 = arith.divf %367, %368 : vector<4x64xf32>
    %370 = vector.extract_strided_slice %369 {offsets = [0, 0], sizes = [4, 32], strides = [1, 1]} : vector<4x64xf32> to vector<4x32xf32>
    %371 = vector.extract_strided_slice %369 {offsets = [0, 32], sizes = [4, 32], strides = [1, 1]} : vector<4x64xf32> to vector<4x32xf32>
    %372 = vector.extract_strided_slice %358 {offsets = [0, 64], sizes = [4, 32], strides = [1, 1]} : vector<4x96xf32> to vector<4x32xf32>
    %373 = vector.broadcast %11 : vector<1x32xf32> to vector<4x32xf32>
    %374 = arith.addf %372, %373 : vector<4x32xf32>
    %375 = vector.extract_strided_slice %359 {offsets = [0, 64], sizes = [4, 32], strides = [1, 1]} : vector<4x96xf32> to vector<4x32xf32>
    %376 = vector.broadcast %12 : vector<1x32xf32> to vector<4x32xf32>
    %377 = arith.addf %375, %376 : vector<4x32xf32>
    %378 = arith.mulf %370, %377 : vector<4x32xf32>
    %379 = arith.addf %374, %378 : vector<4x32xf32>
    %380 = math.tanh %379 : vector<4x32xf32>
    %cst_63 = arith.constant 1.000000e+00 : f32
    %381 = vector.broadcast %cst_63 : f32 to vector<4x32xf32>
    %382 = arith.subf %381, %371 : vector<4x32xf32>
    %383 = arith.mulf %382, %380 : vector<4x32xf32>
    %384 = arith.mulf %371, %329 : vector<4x32xf32>
    %385 = arith.addf %383, %384 : vector<4x32xf32>
    %cst_64 = arith.constant dense<0.000000e+00> : vector<4x96xf32>
    %386 = tpu.matmul %385, %2, %cst_64 {dimension_numbers = #tpu.dot_dimension_numbers<[1], [0], [0], [1], [0, 0, 1, 1], [], []>} : vector<4x32xf32>, vector<32x96xf32>, vector<4x96xf32> -> vector<4x96xf32>
    %cst_65 = arith.constant dense<0.000000e+00> : vector<4x96xf32>
    %387 = tpu.matmul %357, %3, %cst_65 {dimension_numbers = #tpu.dot_dimension_numbers<[1], [0], [0], [1], [0, 0, 1, 1], [], []>} : vector<4x32xf32>, vector<32x96xf32>, vector<4x96xf32> -> vector<4x96xf32>
    %388 = vector.extract_strided_slice %386 {offsets = [0, 0], sizes = [4, 64], strides = [1, 1]} : vector<4x96xf32> to vector<4x64xf32>
    %389 = vector.extract_strided_slice %387 {offsets = [0, 0], sizes = [4, 64], strides = [1, 1]} : vector<4x96xf32> to vector<4x64xf32>
    %390 = arith.addf %388, %389 : vector<4x64xf32>
    %391 = vector.broadcast %15 : vector<1x64xf32> to vector<4x64xf32>
    %392 = arith.addf %390, %391 : vector<4x64xf32>
    %393 = arith.negf %392 : vector<4x64xf32>
    %394 = math.exp %393 : vector<4x64xf32>
    %cst_66 = arith.constant 1.000000e+00 : f32
    %395 = vector.broadcast %cst_66 : f32 to vector<4x64xf32>
    %396 = arith.addf %395, %394 : vector<4x64xf32>
    %397 = arith.divf %395, %396 : vector<4x64xf32>
    %398 = vector.extract_strided_slice %397 {offsets = [0, 0], sizes = [4, 32], strides = [1, 1]} : vector<4x64xf32> to vector<4x32xf32>
    %399 = vector.extract_strided_slice %397 {offsets = [0, 32], sizes = [4, 32], strides = [1, 1]} : vector<4x64xf32> to vector<4x32xf32>
    %400 = vector.extract_strided_slice %386 {offsets = [0, 64], sizes = [4, 32], strides = [1, 1]} : vector<4x96xf32> to vector<4x32xf32>
    %401 = vector.broadcast %16 : vector<1x32xf32> to vector<4x32xf32>
    %402 = arith.addf %400, %401 : vector<4x32xf32>
    %403 = vector.extract_strided_slice %387 {offsets = [0, 64], sizes = [4, 32], strides = [1, 1]} : vector<4x96xf32> to vector<4x32xf32>
    %404 = vector.broadcast %17 : vector<1x32xf32> to vector<4x32xf32>
    %405 = arith.addf %403, %404 : vector<4x32xf32>
    %406 = arith.mulf %398, %405 : vector<4x32xf32>
    %407 = arith.addf %402, %406 : vector<4x32xf32>
    %408 = math.tanh %407 : vector<4x32xf32>
    %cst_67 = arith.constant 1.000000e+00 : f32
    %409 = vector.broadcast %cst_67 : f32 to vector<4x32xf32>
    %410 = arith.subf %409, %399 : vector<4x32xf32>
    %411 = arith.mulf %410, %408 : vector<4x32xf32>
    %412 = arith.mulf %399, %357 : vector<4x32xf32>
    %413 = arith.addf %411, %412 : vector<4x32xf32>
    %414 = vector.extract_strided_slice %19 {offsets = [28, 0], sizes = [4, 96], strides = [1, 1]} : vector<32x96xf32> to vector<4x96xf32>
    %cst_68 = arith.constant dense<0.000000e+00> : vector<4x96xf32>
    %415 = tpu.matmul %385, %1, %cst_68 {dimension_numbers = #tpu.dot_dimension_numbers<[1], [0], [0], [1], [0, 0, 1, 1], [], []>} : vector<4x32xf32>, vector<32x96xf32>, vector<4x96xf32> -> vector<4x96xf32>
    %416 = vector.extract_strided_slice %414 {offsets = [0, 0], sizes = [4, 64], strides = [1, 1]} : vector<4x96xf32> to vector<4x64xf32>
    %417 = vector.extract_strided_slice %415 {offsets = [0, 0], sizes = [4, 64], strides = [1, 1]} : vector<4x96xf32> to vector<4x64xf32>
    %418 = arith.addf %416, %417 : vector<4x64xf32>
    %419 = vector.broadcast %10 : vector<1x64xf32> to vector<4x64xf32>
    %420 = arith.addf %418, %419 : vector<4x64xf32>
    %421 = arith.negf %420 : vector<4x64xf32>
    %422 = math.exp %421 : vector<4x64xf32>
    %cst_69 = arith.constant 1.000000e+00 : f32
    %423 = vector.broadcast %cst_69 : f32 to vector<4x64xf32>
    %424 = arith.addf %423, %422 : vector<4x64xf32>
    %425 = arith.divf %423, %424 : vector<4x64xf32>
    %426 = vector.extract_strided_slice %425 {offsets = [0, 0], sizes = [4, 32], strides = [1, 1]} : vector<4x64xf32> to vector<4x32xf32>
    %427 = vector.extract_strided_slice %425 {offsets = [0, 32], sizes = [4, 32], strides = [1, 1]} : vector<4x64xf32> to vector<4x32xf32>
    %428 = vector.extract_strided_slice %414 {offsets = [0, 64], sizes = [4, 32], strides = [1, 1]} : vector<4x96xf32> to vector<4x32xf32>
    %429 = vector.broadcast %11 : vector<1x32xf32> to vector<4x32xf32>
    %430 = arith.addf %428, %429 : vector<4x32xf32>
    %431 = vector.extract_strided_slice %415 {offsets = [0, 64], sizes = [4, 32], strides = [1, 1]} : vector<4x96xf32> to vector<4x32xf32>
    %432 = vector.broadcast %12 : vector<1x32xf32> to vector<4x32xf32>
    %433 = arith.addf %431, %432 : vector<4x32xf32>
    %434 = arith.mulf %426, %433 : vector<4x32xf32>
    %435 = arith.addf %430, %434 : vector<4x32xf32>
    %436 = math.tanh %435 : vector<4x32xf32>
    %cst_70 = arith.constant 1.000000e+00 : f32
    %437 = vector.broadcast %cst_70 : f32 to vector<4x32xf32>
    %438 = arith.subf %437, %427 : vector<4x32xf32>
    %439 = arith.mulf %438, %436 : vector<4x32xf32>
    %440 = arith.mulf %427, %385 : vector<4x32xf32>
    %441 = arith.addf %439, %440 : vector<4x32xf32>
    %cst_71 = arith.constant dense<0.000000e+00> : vector<4x96xf32>
    %442 = tpu.matmul %441, %2, %cst_71 {dimension_numbers = #tpu.dot_dimension_numbers<[1], [0], [0], [1], [0, 0, 1, 1], [], []>} : vector<4x32xf32>, vector<32x96xf32>, vector<4x96xf32> -> vector<4x96xf32>
    %cst_72 = arith.constant dense<0.000000e+00> : vector<4x96xf32>
    %443 = tpu.matmul %413, %3, %cst_72 {dimension_numbers = #tpu.dot_dimension_numbers<[1], [0], [0], [1], [0, 0, 1, 1], [], []>} : vector<4x32xf32>, vector<32x96xf32>, vector<4x96xf32> -> vector<4x96xf32>
    %444 = vector.extract_strided_slice %442 {offsets = [0, 0], sizes = [4, 64], strides = [1, 1]} : vector<4x96xf32> to vector<4x64xf32>
    %445 = vector.extract_strided_slice %443 {offsets = [0, 0], sizes = [4, 64], strides = [1, 1]} : vector<4x96xf32> to vector<4x64xf32>
    %446 = arith.addf %444, %445 : vector<4x64xf32>
    %447 = vector.broadcast %15 : vector<1x64xf32> to vector<4x64xf32>
    %448 = arith.addf %446, %447 : vector<4x64xf32>
    %449 = arith.negf %448 : vector<4x64xf32>
    %450 = math.exp %449 : vector<4x64xf32>
    %cst_73 = arith.constant 1.000000e+00 : f32
    %451 = vector.broadcast %cst_73 : f32 to vector<4x64xf32>
    %452 = arith.addf %451, %450 : vector<4x64xf32>
    %453 = arith.divf %451, %452 : vector<4x64xf32>
    %454 = vector.extract_strided_slice %453 {offsets = [0, 0], sizes = [4, 32], strides = [1, 1]} : vector<4x64xf32> to vector<4x32xf32>
    %455 = vector.extract_strided_slice %453 {offsets = [0, 32], sizes = [4, 32], strides = [1, 1]} : vector<4x64xf32> to vector<4x32xf32>
    %456 = vector.extract_strided_slice %442 {offsets = [0, 64], sizes = [4, 32], strides = [1, 1]} : vector<4x96xf32> to vector<4x32xf32>
    %457 = vector.broadcast %16 : vector<1x32xf32> to vector<4x32xf32>
    %458 = arith.addf %456, %457 : vector<4x32xf32>
    %459 = vector.extract_strided_slice %443 {offsets = [0, 64], sizes = [4, 32], strides = [1, 1]} : vector<4x96xf32> to vector<4x32xf32>
    %460 = vector.broadcast %17 : vector<1x32xf32> to vector<4x32xf32>
    %461 = arith.addf %459, %460 : vector<4x32xf32>
    %462 = arith.mulf %454, %461 : vector<4x32xf32>
    %463 = arith.addf %458, %462 : vector<4x32xf32>
    %464 = math.tanh %463 : vector<4x32xf32>
    %cst_74 = arith.constant 1.000000e+00 : f32
    %465 = vector.broadcast %cst_74 : f32 to vector<4x32xf32>
    %466 = arith.subf %465, %455 : vector<4x32xf32>
    %467 = arith.mulf %466, %464 : vector<4x32xf32>
    %468 = arith.mulf %455, %413 : vector<4x32xf32>
    %469 = arith.addf %467, %468 : vector<4x32xf32>
    %c0_75 = arith.constant 0 : index
    %c0_76 = arith.constant 0 : index
    %470 = vector.load %arg9[%c0_75, %c0_76] : memref<1x32xf32, #tpu.memory_space<vmem>>, vector<1x32xf32>
    %c0_77 = arith.constant 0 : index
    %c0_78 = arith.constant 0 : index
    %471 = vector.load %arg10[%c0_77, %c0_78] : memref<1x32xf32, #tpu.memory_space<vmem>>, vector<1x32xf32>
    %c0_79 = arith.constant 0 : index
    %c0_80 = arith.constant 0 : index
    %472 = vector.load %arg11[%c0_79, %c0_80] : memref<32x16xf32, #tpu.memory_space<vmem>>, vector<32x16xf32>
    %c0_81 = arith.constant 0 : index
    %c0_82 = arith.constant 0 : index
    %473 = vector.load %arg12[%c0_81, %c0_82] : memref<1x16xf32, #tpu.memory_space<vmem>>, vector<1x16xf32>
    %474 = vector.extract_strided_slice %469 {offsets = [0, 0], sizes = [2, 32], strides = [1, 1]} : vector<4x32xf32> to vector<2x32xf32>
    %cst_83 = arith.constant dense<0.000000e+00> : vector<32xf32>
    %475 = vector.multi_reduction <add>, %474, %cst_83 [0] : vector<2x32xf32> to vector<32xf32>
    %476 = vector.shape_cast %475 : vector<32xf32> to vector<1x32xf32>
    %cst_84 = arith.constant 2.000000e+00 : f32
    %477 = vector.broadcast %cst_84 : f32 to vector<1x32xf32>
    %478 = arith.divf %476, %477 : vector<1x32xf32>
    %479 = vector.broadcast %478 : vector<1x32xf32> to vector<2x32xf32>
    %480 = arith.subf %474, %479 : vector<2x32xf32>
    %481 = arith.mulf %480, %480 : vector<2x32xf32>
    %cst_85 = arith.constant dense<0.000000e+00> : vector<32xf32>
    %482 = vector.multi_reduction <add>, %481, %cst_85 [0] : vector<2x32xf32> to vector<32xf32>
    %483 = vector.shape_cast %482 : vector<32xf32> to vector<1x32xf32>
    %cst_86 = arith.constant 2.000000e+00 : f32
    %484 = vector.broadcast %cst_86 : f32 to vector<1x32xf32>
    %485 = arith.divf %483, %484 : vector<1x32xf32>
    %486 = vector.broadcast %478 : vector<1x32xf32> to vector<2x32xf32>
    %487 = arith.subf %474, %486 : vector<2x32xf32>
    %cst_87 = arith.constant 9.99999974E-6 : f32
    %488 = vector.broadcast %cst_87 : f32 to vector<1x32xf32>
    %489 = arith.addf %485, %488 : vector<1x32xf32>
    %490 = math.rsqrt %489 : vector<1x32xf32>
    %491 = vector.broadcast %490 : vector<1x32xf32> to vector<2x32xf32>
    %492 = arith.mulf %487, %491 : vector<2x32xf32>
    %493 = vector.broadcast %470 : vector<1x32xf32> to vector<2x32xf32>
    %494 = arith.mulf %492, %493 : vector<2x32xf32>
    %495 = vector.broadcast %471 : vector<1x32xf32> to vector<2x32xf32>
    %496 = arith.addf %494, %495 : vector<2x32xf32>
    %cst_88 = arith.constant dense<0.000000e+00> : vector<2x16xf32>
    %497 = tpu.matmul %496, %472, %cst_88 {dimension_numbers = #tpu.dot_dimension_numbers<[1], [0], [0], [1], [0, 0, 1, 1], [], []>} : vector<2x32xf32>, vector<32x16xf32>, vector<2x16xf32> -> vector<2x16xf32>
    %498 = vector.broadcast %473 : vector<1x16xf32> to vector<2x16xf32>
    %499 = arith.addf %497, %498 : vector<2x16xf32>
    %500 = math.tanh %499 : vector<2x16xf32>
    %501 = vector.extract_strided_slice %469 {offsets = [2, 0], sizes = [2, 32], strides = [1, 1]} : vector<4x32xf32> to vector<2x32xf32>
    %cst_89 = arith.constant dense<0.000000e+00> : vector<32xf32>
    %502 = vector.multi_reduction <add>, %501, %cst_89 [0] : vector<2x32xf32> to vector<32xf32>
    %503 = vector.shape_cast %502 : vector<32xf32> to vector<1x32xf32>
    %cst_90 = arith.constant 2.000000e+00 : f32
    %504 = vector.broadcast %cst_90 : f32 to vector<1x32xf32>
    %505 = arith.divf %503, %504 : vector<1x32xf32>
    %506 = vector.broadcast %505 : vector<1x32xf32> to vector<2x32xf32>
    %507 = arith.subf %501, %506 : vector<2x32xf32>
    %508 = arith.mulf %507, %507 : vector<2x32xf32>
    %cst_91 = arith.constant dense<0.000000e+00> : vector<32xf32>
    %509 = vector.multi_reduction <add>, %508, %cst_91 [0] : vector<2x32xf32> to vector<32xf32>
    %510 = vector.shape_cast %509 : vector<32xf32> to vector<1x32xf32>
    %cst_92 = arith.constant 2.000000e+00 : f32
    %511 = vector.broadcast %cst_92 : f32 to vector<1x32xf32>
    %512 = arith.divf %510, %511 : vector<1x32xf32>
    %513 = vector.broadcast %505 : vector<1x32xf32> to vector<2x32xf32>
    %514 = arith.subf %501, %513 : vector<2x32xf32>
    %cst_93 = arith.constant 9.99999974E-6 : f32
    %515 = vector.broadcast %cst_93 : f32 to vector<1x32xf32>
    %516 = arith.addf %512, %515 : vector<1x32xf32>
    %517 = math.rsqrt %516 : vector<1x32xf32>
    %518 = vector.broadcast %517 : vector<1x32xf32> to vector<2x32xf32>
    %519 = arith.mulf %514, %518 : vector<2x32xf32>
    %520 = vector.broadcast %470 : vector<1x32xf32> to vector<2x32xf32>
    %521 = arith.mulf %519, %520 : vector<2x32xf32>
    %522 = vector.broadcast %471 : vector<1x32xf32> to vector<2x32xf32>
    %523 = arith.addf %521, %522 : vector<2x32xf32>
    %cst_94 = arith.constant dense<0.000000e+00> : vector<2x16xf32>
    %524 = tpu.matmul %523, %472, %cst_94 {dimension_numbers = #tpu.dot_dimension_numbers<[1], [0], [0], [1], [0, 0, 1, 1], [], []>} : vector<2x32xf32>, vector<32x16xf32>, vector<2x16xf32> -> vector<2x16xf32>
    %525 = vector.broadcast %473 : vector<1x16xf32> to vector<2x16xf32>
    %526 = arith.addf %524, %525 : vector<2x16xf32>
    %527 = math.tanh %526 : vector<2x16xf32>
    %528 = arith.mulf %500, %527 : vector<2x16xf32>
    %cst_95 = arith.constant dense<0.000000e+00> : vector<2xf32>
    %529 = vector.multi_reduction <add>, %528, %cst_95 [1] : vector<2x16xf32> to vector<2xf32>
    %530 = vector.shape_cast %529 : vector<2xf32> to vector<2x1xf32>
    %531 = arith.negf %530 : vector<2x1xf32>
    %532 = math.exp %531 : vector<2x1xf32>
    %cst_96 = arith.constant 1.000000e+00 : f32
    %533 = vector.broadcast %cst_96 : f32 to vector<2x1xf32>
    %534 = arith.addf %533, %532 : vector<2x1xf32>
    %535 = arith.divf %533, %534 : vector<2x1xf32>
    %c0_97 = arith.constant 0 : index
    %c0_98 = arith.constant 0 : index
    %536 = memref.load %arg13[%c0_97, %c0_98] : memref<1x1xf32, #tpu.memory_space<smem>>
    %537 = vector.broadcast %536 : f32 to vector<2x1xf32>
    %538 = arith.mulf %535, %537 : vector<2x1xf32>
    %c0_99 = arith.constant 0 : index
    %c0_100 = arith.constant 0 : index
    %539 = memref.load %arg14[%c0_99, %c0_100] : memref<1x1xf32, #tpu.memory_space<smem>>
    %540 = vector.broadcast %539 : f32 to vector<2x1xf32>
    %541 = arith.addf %538, %540 : vector<2x1xf32>
    %542 = arith.negf %541 : vector<2x1xf32>
    %543 = math.exp %542 : vector<2x1xf32>
    %cst_101 = arith.constant 1.000000e+00 : f32
    %544 = vector.broadcast %cst_101 : f32 to vector<2x1xf32>
    %545 = arith.addf %544, %543 : vector<2x1xf32>
    %546 = arith.divf %544, %545 : vector<2x1xf32>
    %c0_102 = arith.constant 0 : index
    %c0_103 = arith.constant 0 : index
    %547 = vector.load %arg15[%c0_102, %c0_103] : memref<2x1xf32, #tpu.memory_space<vmem>>, vector<2x1xf32>
    tpu.vector_store %arg15[%c0_102, %c0_103], %546 {strides = array<i32>} : memref<2x1xf32, #tpu.memory_space<vmem>>, vector<2x1xf32>,
    return
  }
}

</mosaic_0001>

<llo_original>
// kernel: tpu_custom_call.1
$region0: #{tpu_custom_call.1}
  #allocation0 [shape = 'u32[]', space=smem, size = 0x4, offset = 0x4, fixed_abs, tag = 'smem constant byte address 0x4 - core index']
  #allocation1 [shape = 'u32[144,128]{1,0:T(1,128)}', space=vmem, size = 0x12000, scoped, tag = 'internal scratch']
  #allocation2 [shape = 'f32[1,1]{1,0:T(1,128)S(6)}', space=smem, size = 0x200, scoped, tag = 'scoped memory for tpu_custom_call.1']
  #allocation3 [shape = 'f32[1,1]{1,0:T(1,128)S(6)}', space=smem, size = 0x200, scoped, tag = 'scoped memory for tpu_custom_call.1']
  %s0 = inlined_call_operand.vmem [shape: f32[32,32], index: 0, kind: input, shape index: {}]
  %s1 = inlined_call_operand.hbm [shape: f32[32,96], index: 1, kind: input, shape index: {}]
  %s2 = inlined_call_operand.hbm [shape: f32[32,96], index: 2, kind: input, shape index: {}]
  %s3 = inlined_call_operand.vmem [shape: f32[1,96], index: 3, kind: input, shape index: {}]
  %s4 = inlined_call_operand.vmem [shape: f32[1,96], index: 4, kind: input, shape index: {}]
  %s5 = inlined_call_operand.vmem [shape: f32[32,96], index: 5, kind: input, shape index: {}]
  %s6 = inlined_call_operand.hbm [shape: f32[32,96], index: 6, kind: input, shape index: {}]
  %s7 = inlined_call_operand.hbm [shape: f32[1,96], index: 7, kind: input, shape index: {}]
  %s8 = inlined_call_operand.vmem [shape: f32[1,96], index: 8, kind: input, shape index: {}]
  %s9 = inlined_call_operand.vmem [shape: f32[1,32], index: 9, kind: input, shape index: {}]
  %s10 = inlined_call_operand.vmem [shape: f32[1,32], index: 10, kind: input, shape index: {}]
  %s11 = inlined_call_operand.vmem [shape: f32[32,16], index: 11, kind: input, shape index: {}]
  %s12 = inlined_call_operand.vmem [shape: f32[1,16], index: 12, kind: input, shape index: {}]
  %s13 = inlined_call_operand.<no memory space> [shape: f32[1,1], index: 13, kind: input, shape index: {}]
  %s14 = inlined_call_operand.<no memory space> [shape: f32[1,1], index: 14, kind: input, shape index: {}]
  %s15 = inlined_call_operand.vmem [shape: f32[2,1], index: 15, kind: output, shape index: {}]
  %s16 = sld [smem:[#allocation0]]
  $region86: #{tpu_custom_call.1} parent=0
    _
  %s18 = ssub.s32 1, %s16
  %s19 = scalar_select 0, %s18, %s16
  %20 = sst [smem:[#allocation2]] %s13
  %21 = sst [smem:[#allocation3]] %s14
  $region1: #{tpu_custom_call.1} parent=0
    #allocation4 [shape = 'u8[16384]{0}', space=vmem, size = 0x4000, scoped, tag = 'input window, operand 1, single buffered']
    #allocation5 [shape = 's32[1]{0}', space=sflag, size = 0x4, scoped, tag = 'scoped memory for tpu_custom_call.1']
    #allocation6 [shape = 'u8[16384]{0}', space=vmem, size = 0x4000, scoped, tag = 'input window, operand 2, single buffered']
    #allocation7 [shape = 's32[1]{0}', space=sflag, size = 0x4, scoped, tag = 'scoped memory for tpu_custom_call.1']
    #allocation8 [shape = 'u8[16384]{0}', space=vmem, size = 0x4000, scoped, tag = 'input window, operand 6, single buffered']
    #allocation9 [shape = 'u8[512]{0}', space=vmem, size = 0x400, scoped, tag = 'input window, operand 7, single buffered']
    #allocation10 [shape = 's32[1]{0}', space=sflag, size = 0x4, scoped, tag = 'scoped memory for tpu_custom_call.1']
    %22 = vsyncpa [#allocation5], 0
    %23 = vsyncpa [#allocation7], 0
    %24 = vsyncpa [#allocation10], 0
    // Predicated region
    $region2: #{tpu_custom_call.1} parent=1 // pred_check
      _
    $region3: #{tpu_custom_call.1} parent=1 // pred_check_branch
      %26 = sbr.rel (0) target = $region5
    $region4: #{tpu_custom_call.1} parent=1 // pred_region
      _
    $region5: #{tpu_custom_call.1} parent=1 // pred_fallthru
      _
    // Predicated region
    $region6: #{tpu_custom_call.1} parent=1 // pred_check
      _
    $region7: #{tpu_custom_call.1} parent=1 // pred_check_branch
      %28 = sbr.rel (0) target = $region9
    $region8: #{tpu_custom_call.1} parent=1 // pred_region
      %s30 = ssub.s32 512, 512
      %31 = vsyncadd [#allocation5], %s30
      %s32 = sshll.u32 [#allocation4], 4
      %s33 = int_to_ptr.vmem [resolvable:$true] %s32
      %38 = dma.hbm_to_vmem [thread:$0]  %s1, 512, %s33, [#allocation5], 128, 128, 8
    $region9: #{tpu_custom_call.1} parent=1 // pred_fallthru
      _
    // Predicated region
    $region10: #{tpu_custom_call.1} parent=1 // pred_check
      _
    $region11: #{tpu_custom_call.1} parent=1 // pred_check_branch
      %40 = sbr.rel (0) target = $region13
    $region12: #{tpu_custom_call.1} parent=1 // pred_region
      %s42 = ssub.s32 512, 512
      %43 = vsyncadd [#allocation7], %s42
      %s44 = sshll.u32 [#allocation6], 4
      %s45 = int_to_ptr.vmem [resolvable:$true] %s44
      %50 = dma.hbm_to_vmem [thread:$0]  %s2, 512, %s45, [#allocation7], 128, 128, 8
    $region13: #{tpu_custom_call.1} parent=1 // pred_fallthru
      _
    // Predicated region
    $region14: #{tpu_custom_call.1} parent=1 // pred_check
      _
    $region15: #{tpu_custom_call.1} parent=1 // pred_check_branch
      %52 = sbr.rel (0) target = $region17
    $region16: #{tpu_custom_call.1} parent=1 // pred_region
      _
    $region17: #{tpu_custom_call.1} parent=1 // pred_fallthru
      _
    // Predicated region
    $region18: #{tpu_custom_call.1} parent=1 // pred_check
      _
    $region19: #{tpu_custom_call.1} parent=1 // pred_check_branch
      %54 = sbr.rel (0) target = $region21
    $region20: #{tpu_custom_call.1} parent=1 // pred_region
      _
    $region21: #{tpu_custom_call.1} parent=1 // pred_fallthru
      _
    // Predicated region
    $region22: #{tpu_custom_call.1} parent=1 // pred_check
      _
    $region23: #{tpu_custom_call.1} parent=1 // pred_check_branch
      %56 = sbr.rel (0) target = $region25
    $region24: #{tpu_custom_call.1} parent=1 // pred_region
      _
    $region25: #{tpu_custom_call.1} parent=1 // pred_fallthru
      _
    // Predicated region
    $region26: #{tpu_custom_call.1} parent=1 // pred_check
      _
    $region27: #{tpu_custom_call.1} parent=1 // pred_check_branch
      %58 = sbr.rel (0) target = $region29
    $region28: #{tpu_custom_call.1} parent=1 // pred_region
      %s60 = ssub.s32 512, 512
      %61 = vsyncadd [#allocation7], %s60
      %s62 = sshll.u32 [#allocation8], 4
      %s63 = int_to_ptr.vmem [resolvable:$true] %s62
      %68 = dma.hbm_to_vmem [thread:$0]  %s6, 512, %s63, [#allocation7], 128, 128, 8
    $region29: #{tpu_custom_call.1} parent=1 // pred_fallthru
      _
    // Predicated region
    $region30: #{tpu_custom_call.1} parent=1 // pred_check
      _
    $region31: #{tpu_custom_call.1} parent=1 // pred_check_branch
      %70 = sbr.rel (0) target = $region33
    $region32: #{tpu_custom_call.1} parent=1 // pred_region
      %s72 = ssub.s32 16, 16
      %73 = vsyncadd [#allocation10], %s72
      %s75 = sshll.u32 [#allocation9], 4
      %s76 = int_to_ptr.vmem [resolvable:$true] %s75
      %78 = dma.hbm_to_vmem [thread:$0]  %s7, 16, %s76, [#allocation10]
    $region33: #{tpu_custom_call.1} parent=1 // pred_fallthru
      _
    // Predicated region
    $region34: #{tpu_custom_call.1} parent=1 // pred_check
      _
    $region35: #{tpu_custom_call.1} parent=1 // pred_check_branch
      %80 = sbr.rel (0) target = $region37
    $region36: #{tpu_custom_call.1} parent=1 // pred_region
      _
    $region37: #{tpu_custom_call.1} parent=1 // pred_fallthru
      _
    // Predicated region
    $region38: #{tpu_custom_call.1} parent=1 // pred_check
      _
    $region39: #{tpu_custom_call.1} parent=1 // pred_check_branch
      %82 = sbr.rel (0) target = $region41
    $region40: #{tpu_custom_call.1} parent=1 // pred_region
      _
    $region41: #{tpu_custom_call.1} parent=1 // pred_fallthru
      _
    // Predicated region
    $region42: #{tpu_custom_call.1} parent=1 // pred_check
      _
    $region43: #{tpu_custom_call.1} parent=1 // pred_check_branch
      %84 = sbr.rel (0) target = $region45
    $region44: #{tpu_custom_call.1} parent=1 // pred_region
      _
    $region45: #{tpu_custom_call.1} parent=1 // pred_fallthru
      _
    // Predicated region
    $region46: #{tpu_custom_call.1} parent=1 // pred_check
      _
    $region47: #{tpu_custom_call.1} parent=1 // pred_check_branch
      %86 = sbr.rel (0) target = $region49
    $region48: #{tpu_custom_call.1} parent=1 // pred_region
      _
    $region49: #{tpu_custom_call.1} parent=1 // pred_fallthru
      _
    // Predicated region
    $region50: #{tpu_custom_call.1} parent=1 // pred_check
      _
    $region51: #{tpu_custom_call.1} parent=1 // pred_check_branch
      %88 = sbr.rel (0) target = $region53
    $region52: #{tpu_custom_call.1} parent=1 // pred_region
      _
    $region53: #{tpu_custom_call.1} parent=1 // pred_fallthru
      _
    // Predicated region
    $region54: #{tpu_custom_call.1} parent=1 // pred_check
      _
    $region55: #{tpu_custom_call.1} parent=1 // pred_check_branch
      %90 = sbr.rel (0) target = $region57
    $region56: #{tpu_custom_call.1} parent=1 // pred_region
      _
    $region57: #{tpu_custom_call.1} parent=1 // pred_fallthru
      _
    // Predicated region
    $region58: #{tpu_custom_call.1} parent=1 // pred_check
      _
    $region59: #{tpu_custom_call.1} parent=1 // pred_check_branch
      %92 = sbr.rel (0) target = $region61
    $region60: #{tpu_custom_call.1} parent=1 // pred_region
      _
    $region61: #{tpu_custom_call.1} parent=1 // pred_fallthru
      _
    // Predicated region
    $region62: #{tpu_custom_call.1} parent=1 // pred_check
      _
    $region63: #{tpu_custom_call.1} parent=1 // pred_check_branch
      %94 = sbr.rel (0) target = $region65
    $region64: #{tpu_custom_call.1} parent=1 // pred_region
      %95 = dma.done [#allocation5], 512
    $region65: #{tpu_custom_call.1} parent=1 // pred_fallthru
      _
    // Predicated region
    $region66: #{tpu_custom_call.1} parent=1 // pred_check
      _
    $region67: #{tpu_custom_call.1} parent=1 // pred_check_branch
      %97 = sbr.rel (0) target = $region69
    $region68: #{tpu_custom_call.1} parent=1 // pred_region
      %98 = dma.done [#allocation7], 512
    $region69: #{tpu_custom_call.1} parent=1 // pred_fallthru
      _
    // Predicated region
    $region70: #{tpu_custom_call.1} parent=1 // pred_check
      _
    $region71: #{tpu_custom_call.1} parent=1 // pred_check_branch
      %100 = sbr.rel (0) target = $region73
    $region72: #{tpu_custom_call.1} parent=1 // pred_region
      %101 = dma.done [#allocation7], 512
    $region73: #{tpu_custom_call.1} parent=1 // pred_fallthru
      _
    // Predicated region
    $region74: #{tpu_custom_call.1} parent=1 // pred_check
      _
    $region75: #{tpu_custom_call.1} parent=1 // pred_check_branch
      %103 = sbr.rel (0) target = $region77
    $region76: #{tpu_custom_call.1} parent=1 // pred_region
      %104 = dma.done [#allocation10], 16
    $region77: #{tpu_custom_call.1} parent=1 // pred_fallthru
      _
    %v105 = vld [vmem:[#allocation4] sm:$0xff]
    %v106 = vld [vmem:[#allocation4 + $0x8] sm:$0xff]
    %v107 = vld [vmem:[#allocation4 + $0x10] sm:$0xff]
    %v108 = vld [vmem:[#allocation4 + $0x18] sm:$0xff]
    %v109 = vld [vmem:[#allocation6] sm:$0xff]
    %v110 = vld [vmem:[#allocation6 + $0x8] sm:$0xff]
    %v111 = vld [vmem:[#allocation6 + $0x10] sm:$0xff]
    %v112 = vld [vmem:[#allocation6 + $0x18] sm:$0xff]
    %v113 = vld [vmem:[%s5] sm:$0xff]
    %v114 = vld [vmem:[%s5 + $0x8] sm:$0xff]
    %v115 = vld [vmem:[%s5 + $0x10] sm:$0xff]
    %v116 = vld [vmem:[%s5 + $0x18] sm:$0xff]
    %v117 = vld [vmem:[#allocation8] sm:$0xff]
    %v118 = vld [vmem:[#allocation8 + $0x8] sm:$0xff]
    %v119 = vld [vmem:[#allocation8 + $0x10] sm:$0xff]
    %v120 = vld [vmem:[#allocation8 + $0x18] sm:$0xff]
    %v121 = vld [vmem:[%s3] sm:$0x1]
    %v122 = vld [vmem:[%s4] sm:$0x1]
    %v123 = vld [vmem:[#allocation9] sm:$0x1]
    %v124 = vld [vmem:[%s8] sm:$0x1]
    %v125 = vadd.f32 %v121, %v122
    %v126 = vadd.f32 %v123, %v124
    %v127 = vld [vmem:[%s0] sm:$0xff]
    %v128 = vld [vmem:[%s0 + $0x8] sm:$0xff]
    %v129 = vld [vmem:[%s0 + $0x10] sm:$0xff]
    %v130 = vld [vmem:[%s0 + $0x18] sm:$0xff]
    %vm131 = vcmask 261120
    %v133 = vsel %vm131, %v127, 0
    %v136 = vsel %vm131, %v128, 0
    %v139 = vsel %vm131, %v129, 0
    %v142 = vsel %vm131, %v130, 0
    %144 = vmatprep.subr.mxu0 0.0
    %145 = vmatpush1.msra.mxu0 %v105
    %146 = vmatprep.subr.mxu0 0.0
    %147 = vmatpush1.msra.mxu0 %v106
    %148 = vmatprep.subr.mxu0 0.0
    %149 = vmatpush1.msra.mxu0 %v107
    %150 = vmatprep.subr.mxu0 0.0
    %151 = vmatpush1.msra.mxu0 %v108
    %152 = vmatprep.subr.mxu0 0.0
    %153 = vmatpush1.msra.mxu0 0.0
    %154 = vmatprep.subr.mxu0 0.0
    %155 = vmatpush1.msra.mxu0 0.0
    %156 = vmatprep.subr.mxu0 0.0
    %157 = vmatpush1.msra.mxu0 0.0
    %158 = vmatprep.subr.mxu0 0.0
    %159 = vmatpush1.msra.mxu0 0.0
    %160 = vmatprep.subr.mxu0 0.0
    %161 = vmatpush1.msra.mxu0 0.0
    %162 = vmatprep.subr.mxu0 0.0
    %163 = vmatpush1.msra.mxu0 0.0
    %164 = vmatprep.subr.mxu0 0.0
    %165 = vmatpush1.msra.mxu0 0.0
    %166 = vmatprep.subr.mxu0 0.0
    %167 = vmatpush1.msra.mxu0 0.0
    %168 = vmatprep.subr.mxu0 0.0
    %169 = vmatpush1.msra.mxu0 0.0
    %170 = vmatprep.subr.mxu0 0.0
    %171 = vmatpush1.msra.mxu0 0.0
    %172 = vmatprep.subr.mxu0 0.0
    %173 = vmatpush1.msra.mxu0 0.0
    %174 = vmatprep.subr.mxu0 0.0
    %175 = vmatpush1.msra.mxu0 0.0
    %176 = vmatprep.subr.mxu0 0.0
    %177 = vmatpush1.msra.mxu0 0.0
    %178 = vmatprep.subr.mxu0 0.0
    %179 = vmatpush1.msra.mxu0 0.0
    %180 = vmatprep.subr.mxu0 0.0
    %181 = vmatpush1.msra.mxu0 0.0
    %182 = vmatprep.subr.mxu0 0.0
    %183 = vmatpush1.msra.mxu0 0.0
    %184 = vmatprep.subr.mxu0 0.0
    %185 = vmatpush1.msra.mxu0 0.0
    %186 = vmatprep.subr.mxu0 0.0
    %187 = vmatpush1.msra.mxu0 0.0
    %188 = vmatprep.subr.mxu0 0.0
    %189 = vmatpush1.msra.mxu0 0.0
    %190 = vmatprep.subr.mxu0 0.0
    %191 = vmatpush1.msra.mxu0 0.0
    %192 = vmatprep.subr.mxu0 0.0
    %193 = vmatpush1.msra.mxu0 0.0
    %194 = vmatprep.subr.mxu0 0.0
    %195 = vmatpush1.msra.mxu0 0.0
    %196 = vmatprep.subr.mxu0 0.0
    %197 = vmatpush1.msra.mxu0 0.0
    %198 = vmatprep.subr.mxu0 0.0
    %199 = vmatpush1.msra.mxu0 0.0
    %200 = vmatprep.subr.mxu0 0.0
    %201 = vmatpush1.msra.mxu0 0.0
    %202 = vmatprep.subr.mxu0 0.0
    %203 = vmatpush1.msra.mxu0 0.0
    %204 = vmatprep.subr.mxu0 0.0
    %205 = vmatpush1.msra.mxu0 0.0
    %206 = vmatprep.subr.mxu0 0.0
    %207 = vmatpush1.msra.mxu0 0.0
    %208 = vmatprep.mubr.f32.mxu0 0.0
    %209 = vmatmul.mubr.f32.gmra.mrb[0].mxu0 %v133
    %v210 = vpop.f32.mrb[0].mxu0
    %v211 = vadd.f32 0.0, %v210
    %v212 = vpop.f32.mrb[0].mxu0
    %213 = vmatprep.mubr.f32.mxu0 0.0
    %214 = vmatmul.mubr.f32.gmra.mrb[0].mxu0 %v136
    %v215 = vpop.f32.mrb[0].mxu0
    %v216 = vadd.f32 0.0, %v215
    %v217 = vpop.f32.mrb[0].mxu0
    %218 = vmatprep.mubr.f32.mxu0 0.0
    %219 = vmatmul.mubr.f32.gmra.mrb[0].mxu0 %v139
    %v220 = vpop.f32.mrb[0].mxu0
    %v221 = vadd.f32 0.0, %v220
    %v222 = vpop.f32.mrb[0].mxu0
    %223 = vmatprep.mubr.f32.mxu0 0.0
    %224 = vmatmul.mubr.f32.gmra.mrb[0].mxu0 %v142
    %v225 = vpop.f32.mrb[0].mxu0
    %v226 = vadd.f32 0.0, %v225
    %v227 = vpop.f32.mrb[0].mxu0
    %228 = vdwg.mxu0
    %v230 = vsel %vm131, 0.0, 0
    %232 = vmatprep.subr.mxu0 0.0
    %233 = vmatpush1.msra.mxu0 %v109
    %234 = vmatprep.subr.mxu0 0.0
    %235 = vmatpush1.msra.mxu0 %v110
    %236 = vmatprep.subr.mxu0 0.0
    %237 = vmatpush1.msra.mxu0 %v111
    %238 = vmatprep.subr.mxu0 0.0
    %239 = vmatpush1.msra.mxu0 %v112
    %240 = vmatprep.subr.mxu0 0.0
    %241 = vmatpush1.msra.mxu0 0.0
    %242 = vmatprep.subr.mxu0 0.0
    %243 = vmatpush1.msra.mxu0 0.0
    %244 = vmatprep.subr.mxu0 0.0
    %245 = vmatpush1.msra.mxu0 0.0
    %246 = vmatprep.subr.mxu0 0.0
    %247 = vmatpush1.msra.mxu0 0.0
    %248 = vmatprep.subr.mxu0 0.0
    %249 = vmatpush1.msra.mxu0 0.0
    %250 = vmatprep.subr.mxu0 0.0
    %251 = vmatpush1.msra.mxu0 0.0
    %252 = vmatprep.subr.mxu0 0.0
    %253 = vmatpush1.msra.mxu0 0.0
    %254 = vmatprep.subr.mxu0 0.0
    %255 = vmatpush1.msra.mxu0 0.0
    %256 = vmatprep.subr.mxu0 0.0
    %257 = vmatpush1.msra.mxu0 0.0
    %258 = vmatprep.subr.mxu0 0.0
    %259 = vmatpush1.msra.mxu0 0.0
    %260 = vmatprep.subr.mxu0 0.0
    %261 = vmatpush1.msra.mxu0 0.0
    %262 = vmatprep.subr.mxu0 0.0
    %263 = vmatpush1.msra.mxu0 0.0
    %264 = vmatprep.subr.mxu0 0.0
    %265 = vmatpush1.msra.mxu0 0.0
    %266 = vmatprep.subr.mxu0 0.0
    %267 = vmatpush1.msra.mxu0 0.0
    %268 = vmatprep.subr.mxu0 0.0
    %269 = vmatpush1.msra.mxu0 0.0
    %270 = vmatprep.subr.mxu0 0.0
    %271 = vmatpush1.msra.mxu0 0.0
    %272 = vmatprep.subr.mxu0 0.0
    %273 = vmatpush1.msra.mxu0 0.0
    %274 = vmatprep.subr.mxu0 0.0
    %275 = vmatpush1.msra.mxu0 0.0
    %276 = vmatprep.subr.mxu0 0.0
    %277 = vmatpush1.msra.mxu0 0.0
    %278 = vmatprep.subr.mxu0 0.0
    %279 = vmatpush1.msra.mxu0 0.0
    %280 = vmatprep.subr.mxu0 0.0
    %281 = vmatpush1.msra.mxu0 0.0
    %282 = vmatprep.subr.mxu0 0.0
    %283 = vmatpush1.msra.mxu0 0.0
    %284 = vmatprep.subr.mxu0 0.0
    %285 = vmatpush1.msra.mxu0 0.0
    %286 = vmatprep.subr.mxu0 0.0
    %287 = vmatpush1.msra.mxu0 0.0
    %288 = vmatprep.subr.mxu0 0.0
    %289 = vmatpush1.msra.mxu0 0.0
    %290 = vmatprep.subr.mxu0 0.0
    %291 = vmatpush1.msra.mxu0 0.0
    %292 = vmatprep.subr.mxu0 0.0
    %293 = vmatpush1.msra.mxu0 0.0
    %294 = vmatprep.subr.mxu0 0.0
    %295 = vmatpush1.msra.mxu0 0.0
    %296 = vmatprep.mubr.f32.mxu0 0.0
    %297 = vmatmul.mubr.f32.gmra.mrb[0].mxu0 %v230
    %v298 = vpop.f32.mrb[0].mxu0
    %v299 = vadd.f32 0.0, %v298
    %v300 = vpop.f32.mrb[0].mxu0
    %301 = vdwg.mxu0
    %v302 = vadd.f32 %v211, %v299
    %v304 = vlaneseq
    %v305 = vshrl.u32 %v304, 7
    %v306 = vsub.s32 0, %v305
    %v307 = vrot.slane %v125, %v306
    %v309 = vadd.f32 %v302, %v307
    %v310 = vxor.u32 %v309, 2147483648
    %v311 = vmul.f32 %v310, 1.442695
    %v312 = vpow.pop %v311
    %v313 = vadd.f32 %v312, 1.0
    %v314 = vrcp.pop %v313
    %v315 = vmul.f32 1.0, %v314
    %v317 = vlaneseq
    %v318 = vshrl.u32 %v317, 7
    %v319 = vsub.s32 0, %v318
    %v320 = vrot.slane %v121, %v319
    %v322 = vadd.f32 %v211, %v320
    %v324 = vlaneseq
    %v325 = vshrl.u32 %v324, 7
    %v326 = vsub.s32 0, %v325
    %v327 = vrot.slane %v122, %v326
    %v329 = vadd.f32 %v299, %v327
    %331 = vrot.lane.b32.xlu0 %v329, 64
    %v332 = vpop.permute.xlu0 %331
    %v334 = vmul.f32 %v315, %v332
    %336 = vrot.lane.b32.xlu0 %v334, 64
    %v337 = vpop.permute.xlu0 %336
    %v339 = vadd.f32 %v322, %v337
    %v340 = vtanh.pop %v339
    %v341 = vsub.f32 1.0, %v315
    %343 = vrot.lane.b32.xlu0 %v340, 96
    %v344 = vpop.permute.xlu0 %343
    %v346 = vmul.f32 %v341, %v344
    %v347 = vmul.f32 %v315, 0.0
    %v348 = vadd.f32 %v346, %v347
    %350 = vrot.lane.b32.xlu0 %v348, 96
    %v351 = vpop.permute.xlu0 %350
    %v352 = vsel %vm131, %v351, 0
    %354 = vmatprep.subr.mxu0 0.0
    %355 = vmatpush1.msra.mxu0 %v113
    %356 = vmatprep.subr.mxu0 0.0
    %357 = vmatpush1.msra.mxu0 %v114
    %358 = vmatprep.subr.mxu0 0.0
    %359 = vmatpush1.msra.mxu0 %v115
    %360 = vmatprep.subr.mxu0 0.0
    %361 = vmatpush1.msra.mxu0 %v116
    %362 = vmatprep.subr.mxu0 0.0
    %363 = vmatpush1.msra.mxu0 0.0
    %364 = vmatprep.subr.mxu0 0.0
    %365 = vmatpush1.msra.mxu0 0.0
    %366 = vmatprep.subr.mxu0 0.0
    %367 = vmatpush1.msra.mxu0 0.0
    %368 = vmatprep.subr.mxu0 0.0
    %369 = vmatpush1.msra.mxu0 0.0
    %370 = vmatprep.subr.mxu0 0.0
    %371 = vmatpush1.msra.mxu0 0.0
    %372 = vmatprep.subr.mxu0 0.0
    %373 = vmatpush1.msra.mxu0 0.0
    %374 = vmatprep.subr.mxu0 0.0
    %375 = vmatpush1.msra.mxu0 0.0
    %376 = vmatprep.subr.mxu0 0.0
    %377 = vmatpush1.msra.mxu0 0.0
    %378 = vmatprep.subr.mxu0 0.0
    %379 = vmatpush1.msra.mxu0 0.0
    %380 = vmatprep.subr.mxu0 0.0
    %381 = vmatpush1.msra.mxu0 0.0
    %382 = vmatprep.subr.mxu0 0.0
    %383 = vmatpush1.msra.mxu0 0.0
    %384 = vmatprep.subr.mxu0 0.0
    %385 = vmatpush1.msra.mxu0 0.0
    %386 = vmatprep.subr.mxu0 0.0
    %387 = vmatpush1.msra.mxu0 0.0
    %388 = vmatprep.subr.mxu0 0.0
    %389 = vmatpush1.msra.mxu0 0.0
    %390 = vmatprep.subr.mxu0 0.0
    %391 = vmatpush1.msra.mxu0 0.0
    %392 = vmatprep.subr.mxu0 0.0
    %393 = vmatpush1.msra.mxu0 0.0
    %394 = vmatprep.subr.mxu0 0.0
    %395 = vmatpush1.msra.mxu0 0.0
    %396 = vmatprep.subr.mxu0 0.0
    %397 = vmatpush1.msra.mxu0 0.0
    %398 = vmatprep.subr.mxu0 0.0
    %399 = vmatpush1.msra.mxu0 0.0
    %400 = vmatprep.subr.mxu0 0.0
    %401 = vmatpush1.msra.mxu0 0.0
    %402 = vmatprep.subr.mxu0 0.0
    %403 = vmatpush1.msra.mxu0 0.0
    %404 = vmatprep.subr.mxu0 0.0
    %405 = vmatpush1.msra.mxu0 0.0
    %406 = vmatprep.subr.mxu0 0.0
    %407 = vmatpush1.msra.mxu0 0.0
    %408 = vmatprep.subr.mxu0 0.0
    %409 = vmatpush1.msra.mxu0 0.0
    %410 = vmatprep.subr.mxu0 0.0
    %411 = vmatpush1.msra.mxu0 0.0
    %412 = vmatprep.subr.mxu0 0.0
    %413 = vmatpush1.msra.mxu0 0.0
    %414 = vmatprep.subr.mxu0 0.0
    %415 = vmatpush1.msra.mxu0 0.0
    %416 = vmatprep.subr.mxu0 0.0
    %417 = vmatpush1.msra.mxu0 0.0
    %418 = vmatprep.mubr.f32.mxu0 0.0
    %419 = vmatmul.mubr.f32.gmra.mrb[0].mxu0 %v352
    %v420 = vpop.f32.mrb[0].mxu0
    %v421 = vadd.f32 0.0, %v420
    %v422 = vpop.f32.mrb[0].mxu0
    %423 = vdwg.mxu0
    %424 = vmatprep.subr.mxu0 0.0
    %425 = vmatpush1.msra.mxu0 %v117
    %426 = vmatprep.subr.mxu0 0.0
    %427 = vmatpush1.msra.mxu0 %v118
    %428 = vmatprep.subr.mxu0 0.0
    %429 = vmatpush1.msra.mxu0 %v119
    %430 = vmatprep.subr.mxu0 0.0
    %431 = vmatpush1.msra.mxu0 %v120
    %432 = vmatprep.subr.mxu0 0.0
    %433 = vmatpush1.msra.mxu0 0.0
    %434 = vmatprep.subr.mxu0 0.0
    %435 = vmatpush1.msra.mxu0 0.0
    %436 = vmatprep.subr.mxu0 0.0
    %437 = vmatpush1.msra.mxu0 0.0
    %438 = vmatprep.subr.mxu0 0.0
    %439 = vmatpush1.msra.mxu0 0.0
    %440 = vmatprep.subr.mxu0 0.0
    %441 = vmatpush1.msra.mxu0 0.0
    %442 = vmatprep.subr.mxu0 0.0
    %443 = vmatpush1.msra.mxu0 0.0
    %444 = vmatprep.subr.mxu0 0.0
    %445 = vmatpush1.msra.mxu0 0.0
    %446 = vmatprep.subr.mxu0 0.0
    %447 = vmatpush1.msra.mxu0 0.0
    %448 = vmatprep.subr.mxu0 0.0
    %449 = vmatpush1.msra.mxu0 0.0
    %450 = vmatprep.subr.mxu0 0.0
    %451 = vmatpush1.msra.mxu0 0.0
    %452 = vmatprep.subr.mxu0 0.0
    %453 = vmatpush1.msra.mxu0 0.0
    %454 = vmatprep.subr.mxu0 0.0
    %455 = vmatpush1.msra.mxu0 0.0
    %456 = vmatprep.subr.mxu0 0.0
    %457 = vmatpush1.msra.mxu0 0.0
    %458 = vmatprep.subr.mxu0 0.0
    %459 = vmatpush1.msra.mxu0 0.0
    %460 = vmatprep.subr.mxu0 0.0
    %461 = vmatpush1.msra.mxu0 0.0
    %462 = vmatprep.subr.mxu0 0.0
    %463 = vmatpush1.msra.mxu0 0.0
    %464 = vmatprep.subr.mxu0 0.0
    %465 = vmatpush1.msra.mxu0 0.0
    %466 = vmatprep.subr.mxu0 0.0
    %467 = vmatpush1.msra.mxu0 0.0
    %468 = vmatprep.subr.mxu0 0.0
    %469 = vmatpush1.msra.mxu0 0.0
    %470 = vmatprep.subr.mxu0 0.0
    %471 = vmatpush1.msra.mxu0 0.0
    %472 = vmatprep.subr.mxu0 0.0
    %473 = vmatpush1.msra.mxu0 0.0
    %474 = vmatprep.subr.mxu0 0.0
    %475 = vmatpush1.msra.mxu0 0.0
    %476 = vmatprep.subr.mxu0 0.0
    %477 = vmatpush1.msra.mxu0 0.0
    %478 = vmatprep.subr.mxu0 0.0
    %479 = vmatpush1.msra.mxu0 0.0
    %480 = vmatprep.subr.mxu0 0.0
    %481 = vmatpush1.msra.mxu0 0.0
    %482 = vmatprep.subr.mxu0 0.0
    %483 = vmatpush1.msra.mxu0 0.0
    %484 = vmatprep.subr.mxu0 0.0
    %485 = vmatpush1.msra.mxu0 0.0
    %486 = vmatprep.subr.mxu0 0.0
    %487 = vmatpush1.msra.mxu0 0.0
    %488 = vmatprep.mubr.f32.mxu0 0.0
    %489 = vmatmul.mubr.f32.gmra.mrb[0].mxu0 %v230
    %v490 = vpop.f32.mrb[0].mxu0
    %v491 = vadd.f32 0.0, %v490
    %v492 = vpop.f32.mrb[0].mxu0
    %493 = vdwg.mxu0
    %v494 = vadd.f32 %v421, %v491
    %v496 = vlaneseq
    %v497 = vshrl.u32 %v496, 7
    %v498 = vsub.s32 0, %v497
    %v499 = vrot.slane %v126, %v498
    %v501 = vadd.f32 %v494, %v499
    %v502 = vxor.u32 %v501, 2147483648
    %v503 = vmul.f32 %v502, 1.442695
    %v504 = vpow.pop %v503
    %v505 = vadd.f32 %v504, 1.0
    %v506 = vrcp.pop %v505
    %v507 = vmul.f32 1.0, %v506
    %v509 = vlaneseq
    %v510 = vshrl.u32 %v509, 7
    %v511 = vsub.s32 0, %v510
    %v512 = vrot.slane %v123, %v511
    %v514 = vadd.f32 %v421, %v512
    %v516 = vlaneseq
    %v517 = vshrl.u32 %v516, 7
    %v518 = vsub.s32 0, %v517
    %v519 = vrot.slane %v124, %v518
    %v521 = vadd.f32 %v491, %v519
    %523 = vrot.lane.b32.xlu0 %v521, 64
    %v524 = vpop.permute.xlu0 %523
    %v526 = vmul.f32 %v507, %v524
    %528 = vrot.lane.b32.xlu0 %v526, 64
    %v529 = vpop.permute.xlu0 %528
    %v531 = vadd.f32 %v514, %v529
    %v532 = vtanh.pop %v531
    %v533 = vsub.f32 1.0, %v507
    %535 = vrot.lane.b32.xlu0 %v532, 96
    %v536 = vpop.permute.xlu0 %535
    %v538 = vmul.f32 %v533, %v536
    %v539 = vmul.f32 %v507, 0.0
    %v540 = vadd.f32 %v538, %v539
    %541 = vmatprep.subr.mxu0 0.0
    %542 = vmatpush1.msra.mxu0 %v109
    %543 = vmatprep.subr.mxu0 0.0
    %544 = vmatpush1.msra.mxu0 %v110
    %545 = vmatprep.subr.mxu0 0.0
    %546 = vmatpush1.msra.mxu0 %v111
    %547 = vmatprep.subr.mxu0 0.0
    %548 = vmatpush1.msra.mxu0 %v112
    %549 = vmatprep.subr.mxu0 0.0
    %550 = vmatpush1.msra.mxu0 0.0
    %551 = vmatprep.subr.mxu0 0.0
    %552 = vmatpush1.msra.mxu0 0.0
    %553 = vmatprep.subr.mxu0 0.0
    %554 = vmatpush1.msra.mxu0 0.0
    %555 = vmatprep.subr.mxu0 0.0
    %556 = vmatpush1.msra.mxu0 0.0
    %557 = vmatprep.subr.mxu0 0.0
    %558 = vmatpush1.msra.mxu0 0.0
    %559 = vmatprep.subr.mxu0 0.0
    %560 = vmatpush1.msra.mxu0 0.0
    %561 = vmatprep.subr.mxu0 0.0
    %562 = vmatpush1.msra.mxu0 0.0
    %563 = vmatprep.subr.mxu0 0.0
    %564 = vmatpush1.msra.mxu0 0.0
    %565 = vmatprep.subr.mxu0 0.0
    %566 = vmatpush1.msra.mxu0 0.0
    %567 = vmatprep.subr.mxu0 0.0
    %568 = vmatpush1.msra.mxu0 0.0
    %569 = vmatprep.subr.mxu0 0.0
    %570 = vmatpush1.msra.mxu0 0.0
    %571 = vmatprep.subr.mxu0 0.0
    %572 = vmatpush1.msra.mxu0 0.0
    %573 = vmatprep.subr.mxu0 0.0
    %574 = vmatpush1.msra.mxu0 0.0
    %575 = vmatprep.subr.mxu0 0.0
    %576 = vmatpush1.msra.mxu0 0.0
    %577 = vmatprep.subr.mxu0 0.0
    %578 = vmatpush1.msra.mxu0 0.0
    %579 = vmatprep.subr.mxu0 0.0
    %580 = vmatpush1.msra.mxu0 0.0
    %581 = vmatprep.subr.mxu0 0.0
    %582 = vmatpush1.msra.mxu0 0.0
    %583 = vmatprep.subr.mxu0 0.0
    %584 = vmatpush1.msra.mxu0 0.0
    %585 = vmatprep.subr.mxu0 0.0
    %586 = vmatpush1.msra.mxu0 0.0
    %587 = vmatprep.subr.mxu0 0.0
    %588 = vmatpush1.msra.mxu0 0.0
    %589 = vmatprep.subr.mxu0 0.0
    %590 = vmatpush1.msra.mxu0 0.0
    %591 = vmatprep.subr.mxu0 0.0
    %592 = vmatpush1.msra.mxu0 0.0
    %593 = vmatprep.subr.mxu0 0.0
    %594 = vmatpush1.msra.mxu0 0.0
    %595 = vmatprep.subr.mxu0 0.0
    %596 = vmatpush1.msra.mxu0 0.0
    %597 = vmatprep.subr.mxu0 0.0
    %598 = vmatpush1.msra.mxu0 0.0
    %599 = vmatprep.subr.mxu0 0.0
    %600 = vmatpush1.msra.mxu0 0.0
    %601 = vmatprep.subr.mxu0 0.0
    %602 = vmatpush1.msra.mxu0 0.0
    %603 = vmatprep.subr.mxu0 0.0
    %604 = vmatpush1.msra.mxu0 0.0
    %605 = vmatprep.mubr.f32.mxu0 0.0
    %606 = vmatmul.mubr.f32.gmra.mrb[0].mxu0 %v352
    %v607 = vpop.f32.mrb[0].mxu0
    %v608 = vadd.f32 0.0, %v607
    %v609 = vpop.f32.mrb[0].mxu0
    %610 = vdwg.mxu0
    %v612 = vrot.slane %v608, 4
    %v614 = vadd.f32 %v211, %v612
    %v615 = vadd.f32 %v614, %v307
    %v616 = vxor.u32 %v615, 2147483648
    %v617 = vmul.f32 %v616, 1.442695
    %v618 = vpow.pop %v617
    %v619 = vadd.f32 %v618, 1.0
    %v620 = vrcp.pop %v619
    %v621 = vmul.f32 1.0, %v620
    %v622 = vadd.f32 %v608, %v327
    %v624 = vrot.slane %v622, 4
    %625 = vrot.lane.b32.xlu0 %v624, 64
    %v626 = vpop.permute.xlu0 %625
    %v628 = vmul.f32 %v621, %v626
    %630 = vrot.lane.b32.xlu0 %v628, 64
    %v631 = vpop.permute.xlu0 %630
    %v633 = vadd.f32 %v322, %v631
    %v634 = vtanh.pop %v633
    %v635 = vsub.f32 1.0, %v621
    %637 = vrot.lane.b32.xlu0 %v634, 96
    %v638 = vpop.permute.xlu0 %637
    %v640 = vmul.f32 %v635, %v638
    %v641 = vrot.slane %v348, 4
    %v643 = vmul.f32 %v621, %v641
    %v644 = vadd.f32 %v640, %v643
    %v646 = vrot.slane %v644, 4
    %647 = vrot.lane.b32.xlu0 %v646, 96
    %v648 = vpop.permute.xlu0 %647
    %v649 = vsel %vm131, %v648, 0
    %651 = vmatprep.subr.mxu0 0.0
    %652 = vmatpush1.msra.mxu0 %v113
    %653 = vmatprep.subr.mxu0 0.0
    %654 = vmatpush1.msra.mxu0 %v114
    %655 = vmatprep.subr.mxu0 0.0
    %656 = vmatpush1.msra.mxu0 %v115
    %657 = vmatprep.subr.mxu0 0.0
    %658 = vmatpush1.msra.mxu0 %v116
    %659 = vmatprep.subr.mxu0 0.0
    %660 = vmatpush1.msra.mxu0 0.0
    %661 = vmatprep.subr.mxu0 0.0
    %662 = vmatpush1.msra.mxu0 0.0
    %663 = vmatprep.subr.mxu0 0.0
    %664 = vmatpush1.msra.mxu0 0.0
    %665 = vmatprep.subr.mxu0 0.0
    %666 = vmatpush1.msra.mxu0 0.0
    %667 = vmatprep.subr.mxu0 0.0
    %668 = vmatpush1.msra.mxu0 0.0
    %669 = vmatprep.subr.mxu0 0.0
    %670 = vmatpush1.msra.mxu0 0.0
    %671 = vmatprep.subr.mxu0 0.0
    %672 = vmatpush1.msra.mxu0 0.0
    %673 = vmatprep.subr.mxu0 0.0
    %674 = vmatpush1.msra.mxu0 0.0
    %675 = vmatprep.subr.mxu0 0.0
    %676 = vmatpush1.msra.mxu0 0.0
    %677 = vmatprep.subr.mxu0 0.0
    %678 = vmatpush1.msra.mxu0 0.0
    %679 = vmatprep.subr.mxu0 0.0
    %680 = vmatpush1.msra.mxu0 0.0
    %681 = vmatprep.subr.mxu0 0.0
    %682 = vmatpush1.msra.mxu0 0.0
    %683 = vmatprep.subr.mxu0 0.0
    %684 = vmatpush1.msra.mxu0 0.0
    %685 = vmatprep.subr.mxu0 0.0
    %686 = vmatpush1.msra.mxu0 0.0
    %687 = vmatprep.subr.mxu0 0.0
    %688 = vmatpush1.msra.mxu0 0.0
    %689 = vmatprep.subr.mxu0 0.0
    %690 = vmatpush1.msra.mxu0 0.0
    %691 = vmatprep.subr.mxu0 0.0
    %692 = vmatpush1.msra.mxu0 0.0
    %693 = vmatprep.subr.mxu0 0.0
    %694 = vmatpush1.msra.mxu0 0.0
    %695 = vmatprep.subr.mxu0 0.0
    %696 = vmatpush1.msra.mxu0 0.0
    %697 = vmatprep.subr.mxu0 0.0
    %698 = vmatpush1.msra.mxu0 0.0
    %699 = vmatprep.subr.mxu0 0.0
    %700 = vmatpush1.msra.mxu0 0.0
    %701 = vmatprep.subr.mxu0 0.0
    %702 = vmatpush1.msra.mxu0 0.0
    %703 = vmatprep.subr.mxu0 0.0
    %704 = vmatpush1.msra.mxu0 0.0
    %705 = vmatprep.subr.mxu0 0.0
    %706 = vmatpush1.msra.mxu0 0.0
    %707 = vmatprep.subr.mxu0 0.0
    %708 = vmatpush1.msra.mxu0 0.0
    %709 = vmatprep.subr.mxu0 0.0
    %710 = vmatpush1.msra.mxu0 0.0
    %711 = vmatprep.subr.mxu0 0.0
    %712 = vmatpush1.msra.mxu0 0.0
    %713 = vmatprep.subr.mxu0 0.0
    %714 = vmatpush1.msra.mxu0 0.0
    %715 = vmatprep.mubr.f32.mxu0 0.0
    %716 = vmatmul.mubr.f32.gmra.mrb[0].mxu0 %v649
    %v717 = vpop.f32.mrb[0].mxu0
    %v718 = vadd.f32 0.0, %v717
    %v719 = vpop.f32.mrb[0].mxu0
    %720 = vdwg.mxu0
    %722 = vrot.lane.b32.xlu0 %v540, 96
    %v723 = vpop.permute.xlu0 %722
    %v724 = vsel %vm131, %v723, 0
    %726 = vmatprep.subr.mxu0 0.0
    %727 = vmatpush1.msra.mxu0 %v117
    %728 = vmatprep.subr.mxu0 0.0
    %729 = vmatpush1.msra.mxu0 %v118
    %730 = vmatprep.subr.mxu0 0.0
    %731 = vmatpush1.msra.mxu0 %v119
    %732 = vmatprep.subr.mxu0 0.0
    %733 = vmatpush1.msra.mxu0 %v120
    %734 = vmatprep.subr.mxu0 0.0
    %735 = vmatpush1.msra.mxu0 0.0
    %736 = vmatprep.subr.mxu0 0.0
    %737 = vmatpush1.msra.mxu0 0.0
    %738 = vmatprep.subr.mxu0 0.0
    %739 = vmatpush1.msra.mxu0 0.0
    %740 = vmatprep.subr.mxu0 0.0
    %741 = vmatpush1.msra.mxu0 0.0
    %742 = vmatprep.subr.mxu0 0.0
    %743 = vmatpush1.msra.mxu0 0.0
    %744 = vmatprep.subr.mxu0 0.0
    %745 = vmatpush1.msra.mxu0 0.0
    %746 = vmatprep.subr.mxu0 0.0
    %747 = vmatpush1.msra.mxu0 0.0
    %748 = vmatprep.subr.mxu0 0.0
    %749 = vmatpush1.msra.mxu0 0.0
    %750 = vmatprep.subr.mxu0 0.0
    %751 = vmatpush1.msra.mxu0 0.0
    %752 = vmatprep.subr.mxu0 0.0
    %753 = vmatpush1.msra.mxu0 0.0
    %754 = vmatprep.subr.mxu0 0.0
    %755 = vmatpush1.msra.mxu0 0.0
    %756 = vmatprep.subr.mxu0 0.0
    %757 = vmatpush1.msra.mxu0 0.0
    %758 = vmatprep.subr.mxu0 0.0
    %759 = vmatpush1.msra.mxu0 0.0
    %760 = vmatprep.subr.mxu0 0.0
    %761 = vmatpush1.msra.mxu0 0.0
    %762 = vmatprep.subr.mxu0 0.0
    %763 = vmatpush1.msra.mxu0 0.0
    %764 = vmatprep.subr.mxu0 0.0
    %765 = vmatpush1.msra.mxu0 0.0
    %766 = vmatprep.subr.mxu0 0.0
    %767 = vmatpush1.msra.mxu0 0.0
    %768 = vmatprep.subr.mxu0 0.0
    %769 = vmatpush1.msra.mxu0 0.0
    %770 = vmatprep.subr.mxu0 0.0
    %771 = vmatpush1.msra.mxu0 0.0
    %772 = vmatprep.subr.mxu0 0.0
    %773 = vmatpush1.msra.mxu0 0.0
    %774 = vmatprep.subr.mxu0 0.0
    %775 = vmatpush1.msra.mxu0 0.0
    %776 = vmatprep.subr.mxu0 0.0
    %777 = vmatpush1.msra.mxu0 0.0
    %778 = vmatprep.subr.mxu0 0.0
    %779 = vmatpush1.msra.mxu0 0.0
    %780 = vmatprep.subr.mxu0 0.0
    %781 = vmatpush1.msra.mxu0 0.0
    %782 = vmatprep.subr.mxu0 0.0
    %783 = vmatpush1.msra.mxu0 0.0
    %784 = vmatprep.subr.mxu0 0.0
    %785 = vmatpush1.msra.mxu0 0.0
    %786 = vmatprep.subr.mxu0 0.0
    %787 = vmatpush1.msra.mxu0 0.0
    %788 = vmatprep.subr.mxu0 0.0
    %789 = vmatpush1.msra.mxu0 0.0
    %790 = vmatprep.mubr.f32.mxu0 0.0
    %791 = vmatmul.mubr.f32.gmra.mrb[0].mxu0 %v724
    %v792 = vpop.f32.mrb[0].mxu0
    %v793 = vadd.f32 0.0, %v792
    %v794 = vpop.f32.mrb[0].mxu0
    %795 = vdwg.mxu0
    %v796 = vadd.f32 %v718, %v793
    %v797 = vadd.f32 %v796, %v499
    %v798 = vxor.u32 %v797, 2147483648
    %v799 = vmul.f32 %v798, 1.442695
    %v800 = vpow.pop %v799
    %v801 = vadd.f32 %v800, 1.0
    %v802 = vrcp.pop %v801
    %v803 = vmul.f32 1.0, %v802
    %v804 = vadd.f32 %v718, %v512
    %v805 = vadd.f32 %v793, %v519
    %807 = vrot.lane.b32.xlu0 %v805, 64
    %v808 = vpop.permute.xlu0 %807
    %v810 = vmul.f32 %v803, %v808
    %812 = vrot.lane.b32.xlu0 %v810, 64
    %v813 = vpop.permute.xlu0 %812
    %v815 = vadd.f32 %v804, %v813
    %v816 = vtanh.pop %v815
    %v817 = vsub.f32 1.0, %v803
    %819 = vrot.lane.b32.xlu0 %v816, 96
    %v820 = vpop.permute.xlu0 %819
    %v822 = vmul.f32 %v817, %v820
    %v823 = vmul.f32 %v803, %v540
    %v824 = vadd.f32 %v822, %v823
    %825 = vmatprep.subr.mxu0 0.0
    %826 = vmatpush1.msra.mxu0 %v109
    %827 = vmatprep.subr.mxu0 0.0
    %828 = vmatpush1.msra.mxu0 %v110
    %829 = vmatprep.subr.mxu0 0.0
    %830 = vmatpush1.msra.mxu0 %v111
    %831 = vmatprep.subr.mxu0 0.0
    %832 = vmatpush1.msra.mxu0 %v112
    %833 = vmatprep.subr.mxu0 0.0
    %834 = vmatpush1.msra.mxu0 0.0
    %835 = vmatprep.subr.mxu0 0.0
    %836 = vmatpush1.msra.mxu0 0.0
    %837 = vmatprep.subr.mxu0 0.0
    %838 = vmatpush1.msra.mxu0 0.0
    %839 = vmatprep.subr.mxu0 0.0
    %840 = vmatpush1.msra.mxu0 0.0
    %841 = vmatprep.subr.mxu0 0.0
    %842 = vmatpush1.msra.mxu0 0.0
    %843 = vmatprep.subr.mxu0 0.0
    %844 = vmatpush1.msra.mxu0 0.0
    %845 = vmatprep.subr.mxu0 0.0
    %846 = vmatpush1.msra.mxu0 0.0
    %847 = vmatprep.subr.mxu0 0.0
    %848 = vmatpush1.msra.mxu0 0.0
    %849 = vmatprep.subr.mxu0 0.0
    %850 = vmatpush1.msra.mxu0 0.0
    %851 = vmatprep.subr.mxu0 0.0
    %852 = vmatpush1.msra.mxu0 0.0
    %853 = vmatprep.subr.mxu0 0.0
    %854 = vmatpush1.msra.mxu0 0.0
    %855 = vmatprep.subr.mxu0 0.0
    %856 = vmatpush1.msra.mxu0 0.0
    %857 = vmatprep.subr.mxu0 0.0
    %858 = vmatpush1.msra.mxu0 0.0
    %859 = vmatprep.subr.mxu0 0.0
    %860 = vmatpush1.msra.mxu0 0.0
    %861 = vmatprep.subr.mxu0 0.0
    %862 = vmatpush1.msra.mxu0 0.0
    %863 = vmatprep.subr.mxu0 0.0
    %864 = vmatpush1.msra.mxu0 0.0
    %865 = vmatprep.subr.mxu0 0.0
    %866 = vmatpush1.msra.mxu0 0.0
    %867 = vmatprep.subr.mxu0 0.0
    %868 = vmatpush1.msra.mxu0 0.0
    %869 = vmatprep.subr.mxu0 0.0
    %870 = vmatpush1.msra.mxu0 0.0
    %871 = vmatprep.subr.mxu0 0.0
    %872 = vmatpush1.msra.mxu0 0.0
    %873 = vmatprep.subr.mxu0 0.0
    %874 = vmatpush1.msra.mxu0 0.0
    %875 = vmatprep.subr.mxu0 0.0
    %876 = vmatpush1.msra.mxu0 0.0
    %877 = vmatprep.subr.mxu0 0.0
    %878 = vmatpush1.msra.mxu0 0.0
    %879 = vmatprep.subr.mxu0 0.0
    %880 = vmatpush1.msra.mxu0 0.0
    %881 = vmatprep.subr.mxu0 0.0
    %882 = vmatpush1.msra.mxu0 0.0
    %883 = vmatprep.subr.mxu0 0.0
    %884 = vmatpush1.msra.mxu0 0.0
    %885 = vmatprep.subr.mxu0 0.0
    %886 = vmatpush1.msra.mxu0 0.0
    %887 = vmatprep.subr.mxu0 0.0
    %888 = vmatpush1.msra.mxu0 0.0
    %889 = vmatprep.mubr.f32.mxu0 0.0
    %890 = vmatmul.mubr.f32.gmra.mrb[0].mxu0 %v649
    %v891 = vpop.f32.mrb[0].mxu0
    %v892 = vadd.f32 0.0, %v891
    %v893 = vpop.f32.mrb[0].mxu0
    %894 = vdwg.mxu0
    %v895 = vadd.f32 %v216, %v892
    %v896 = vadd.f32 %v895, %v307
    %v897 = vxor.u32 %v896, 2147483648
    %v898 = vmul.f32 %v897, 1.442695
    %v899 = vpow.pop %v898
    %v900 = vadd.f32 %v899, 1.0
    %v901 = vrcp.pop %v900
    %v902 = vmul.f32 1.0, %v901
    %v903 = vadd.f32 %v216, %v320
    %v904 = vadd.f32 %v892, %v327
    %906 = vrot.lane.b32.xlu0 %v904, 64
    %v907 = vpop.permute.xlu0 %906
    %v909 = vmul.f32 %v902, %v907
    %911 = vrot.lane.b32.xlu0 %v909, 64
    %v912 = vpop.permute.xlu0 %911
    %v914 = vadd.f32 %v903, %v912
    %v915 = vtanh.pop %v914
    %v916 = vsub.f32 1.0, %v902
    %918 = vrot.lane.b32.xlu0 %v915, 96
    %v919 = vpop.permute.xlu0 %918
    %v921 = vmul.f32 %v916, %v919
    %v923 = vmul.f32 %v902, %v646
    %v924 = vadd.f32 %v921, %v923
    %926 = vrot.lane.b32.xlu0 %v924, 96
    %v927 = vpop.permute.xlu0 %926
    %v928 = vsel %vm131, %v927, 0
    %930 = vmatprep.subr.mxu0 0.0
    %931 = vmatpush1.msra.mxu0 %v113
    %932 = vmatprep.subr.mxu0 0.0
    %933 = vmatpush1.msra.mxu0 %v114
    %934 = vmatprep.subr.mxu0 0.0
    %935 = vmatpush1.msra.mxu0 %v115
    %936 = vmatprep.subr.mxu0 0.0
    %937 = vmatpush1.msra.mxu0 %v116
    %938 = vmatprep.subr.mxu0 0.0
    %939 = vmatpush1.msra.mxu0 0.0
    %940 = vmatprep.subr.mxu0 0.0
    %941 = vmatpush1.msra.mxu0 0.0
    %942 = vmatprep.subr.mxu0 0.0
    %943 = vmatpush1.msra.mxu0 0.0
    %944 = vmatprep.subr.mxu0 0.0
    %945 = vmatpush1.msra.mxu0 0.0
    %946 = vmatprep.subr.mxu0 0.0
    %947 = vmatpush1.msra.mxu0 0.0
    %948 = vmatprep.subr.mxu0 0.0
    %949 = vmatpush1.msra.mxu0 0.0
    %950 = vmatprep.subr.mxu0 0.0
    %951 = vmatpush1.msra.mxu0 0.0
    %952 = vmatprep.subr.mxu0 0.0
    %953 = vmatpush1.msra.mxu0 0.0
    %954 = vmatprep.subr.mxu0 0.0
    %955 = vmatpush1.msra.mxu0 0.0
    %956 = vmatprep.subr.mxu0 0.0
    %957 = vmatpush1.msra.mxu0 0.0
    %958 = vmatprep.subr.mxu0 0.0
    %959 = vmatpush1.msra.mxu0 0.0
    %960 = vmatprep.subr.mxu0 0.0
    %961 = vmatpush1.msra.mxu0 0.0
    %962 = vmatprep.subr.mxu0 0.0
    %963 = vmatpush1.msra.mxu0 0.0
    %964 = vmatprep.subr.mxu0 0.0
    %965 = vmatpush1.msra.mxu0 0.0
    %966 = vmatprep.subr.mxu0 0.0
    %967 = vmatpush1.msra.mxu0 0.0
    %968 = vmatprep.subr.mxu0 0.0
    %969 = vmatpush1.msra.mxu0 0.0
    %970 = vmatprep.subr.mxu0 0.0
    %971 = vmatpush1.msra.mxu0 0.0
    %972 = vmatprep.subr.mxu0 0.0
    %973 = vmatpush1.msra.mxu0 0.0
    %974 = vmatprep.subr.mxu0 0.0
    %975 = vmatpush1.msra.mxu0 0.0
    %976 = vmatprep.subr.mxu0 0.0
    %977 = vmatpush1.msra.mxu0 0.0
    %978 = vmatprep.subr.mxu0 0.0
    %979 = vmatpush1.msra.mxu0 0.0
    %980 = vmatprep.subr.mxu0 0.0
    %981 = vmatpush1.msra.mxu0 0.0
    %982 = vmatprep.subr.mxu0 0.0
    %983 = vmatpush1.msra.mxu0 0.0
    %984 = vmatprep.subr.mxu0 0.0
    %985 = vmatpush1.msra.mxu0 0.0
    %986 = vmatprep.subr.mxu0 0.0
    %987 = vmatpush1.msra.mxu0 0.0
    %988 = vmatprep.subr.mxu0 0.0
    %989 = vmatpush1.msra.mxu0 0.0
    %990 = vmatprep.subr.mxu0 0.0
    %991 = vmatpush1.msra.mxu0 0.0
    %992 = vmatprep.subr.mxu0 0.0
    %993 = vmatpush1.msra.mxu0 0.0
    %994 = vmatprep.mubr.f32.mxu0 0.0
    %995 = vmatmul.mubr.f32.gmra.mrb[0].mxu0 %v928
    %v996 = vpop.f32.mrb[0].mxu0
    %v997 = vadd.f32 0.0, %v996
    %v998 = vpop.f32.mrb[0].mxu0
    %999 = vdwg.mxu0
    %1001 = vrot.lane.b32.xlu0 %v824, 96
    %v1002 = vpop.permute.xlu0 %1001
    %v1003 = vsel %vm131, %v1002, 0
    %1005 = vmatprep.subr.mxu0 0.0
    %1006 = vmatpush1.msra.mxu0 %v117
    %1007 = vmatprep.subr.mxu0 0.0
    %1008 = vmatpush1.msra.mxu0 %v118
    %1009 = vmatprep.subr.mxu0 0.0
    %1010 = vmatpush1.msra.mxu0 %v119
    %1011 = vmatprep.subr.mxu0 0.0
    %1012 = vmatpush1.msra.mxu0 %v120
    %1013 = vmatprep.subr.mxu0 0.0
    %1014 = vmatpush1.msra.mxu0 0.0
    %1015 = vmatprep.subr.mxu0 0.0
    %1016 = vmatpush1.msra.mxu0 0.0
    %1017 = vmatprep.subr.mxu0 0.0
    %1018 = vmatpush1.msra.mxu0 0.0
    %1019 = vmatprep.subr.mxu0 0.0
    %1020 = vmatpush1.msra.mxu0 0.0
    %1021 = vmatprep.subr.mxu0 0.0
    %1022 = vmatpush1.msra.mxu0 0.0
    %1023 = vmatprep.subr.mxu0 0.0
    %1024 = vmatpush1.msra.mxu0 0.0
    %1025 = vmatprep.subr.mxu0 0.0
    %1026 = vmatpush1.msra.mxu0 0.0
    %1027 = vmatprep.subr.mxu0 0.0
    %1028 = vmatpush1.msra.mxu0 0.0
    %1029 = vmatprep.subr.mxu0 0.0
    %1030 = vmatpush1.msra.mxu0 0.0
    %1031 = vmatprep.subr.mxu0 0.0
    %1032 = vmatpush1.msra.mxu0 0.0
    %1033 = vmatprep.subr.mxu0 0.0
    %1034 = vmatpush1.msra.mxu0 0.0
    %1035 = vmatprep.subr.mxu0 0.0
    %1036 = vmatpush1.msra.mxu0 0.0
    %1037 = vmatprep.subr.mxu0 0.0
    %1038 = vmatpush1.msra.mxu0 0.0
    %1039 = vmatprep.subr.mxu0 0.0
    %1040 = vmatpush1.msra.mxu0 0.0
    %1041 = vmatprep.subr.mxu0 0.0
    %1042 = vmatpush1.msra.mxu0 0.0
    %1043 = vmatprep.subr.mxu0 0.0
    %1044 = vmatpush1.msra.mxu0 0.0
    %1045 = vmatprep.subr.mxu0 0.0
    %1046 = vmatpush1.msra.mxu0 0.0
    %1047 = vmatprep.subr.mxu0 0.0
    %1048 = vmatpush1.msra.mxu0 0.0
    %1049 = vmatprep.subr.mxu0 0.0
    %1050 = vmatpush1.msra.mxu0 0.0
    %1051 = vmatprep.subr.mxu0 0.0
    %1052 = vmatpush1.msra.mxu0 0.0
    %1053 = vmatprep.subr.mxu0 0.0
    %1054 = vmatpush1.msra.mxu0 0.0
    %1055 = vmatprep.subr.mxu0 0.0
    %1056 = vmatpush1.msra.mxu0 0.0
    %1057 = vmatprep.subr.mxu0 0.0
    %1058 = vmatpush1.msra.mxu0 0.0
    %1059 = vmatprep.subr.mxu0 0.0
    %1060 = vmatpush1.msra.mxu0 0.0
    %1061 = vmatprep.subr.mxu0 0.0
    %1062 = vmatpush1.msra.mxu0 0.0
    %1063 = vmatprep.subr.mxu0 0.0
    %1064 = vmatpush1.msra.mxu0 0.0
    %1065 = vmatprep.subr.mxu0 0.0
    %1066 = vmatpush1.msra.mxu0 0.0
    %1067 = vmatprep.subr.mxu0 0.0
    %1068 = vmatpush1.msra.mxu0 0.0
    %1069 = vmatprep.mubr.f32.mxu0 0.0
    %1070 = vmatmul.mubr.f32.gmra.mrb[0].mxu0 %v1003
    %v1071 = vpop.f32.mrb[0].mxu0
    %v1072 = vadd.f32 0.0, %v1071
    %v1073 = vpop.f32.mrb[0].mxu0
    %1074 = vdwg.mxu0
    %v1075 = vadd.f32 %v997, %v1072
    %v1076 = vadd.f32 %v1075, %v499
    %v1077 = vxor.u32 %v1076, 2147483648
    %v1078 = vmul.f32 %v1077, 1.442695
    %v1079 = vpow.pop %v1078
    %v1080 = vadd.f32 %v1079, 1.0
    %v1081 = vrcp.pop %v1080
    %v1082 = vmul.f32 1.0, %v1081
    %v1083 = vadd.f32 %v997, %v512
    %v1084 = vadd.f32 %v1072, %v519
    %1086 = vrot.lane.b32.xlu0 %v1084, 64
    %v1087 = vpop.permute.xlu0 %1086
    %v1089 = vmul.f32 %v1082, %v1087
    %1091 = vrot.lane.b32.xlu0 %v1089, 64
    %v1092 = vpop.permute.xlu0 %1091
    %v1094 = vadd.f32 %v1083, %v1092
    %v1095 = vtanh.pop %v1094
    %v1096 = vsub.f32 1.0, %v1082
    %1098 = vrot.lane.b32.xlu0 %v1095, 96
    %v1099 = vpop.permute.xlu0 %1098
    %v1101 = vmul.f32 %v1096, %v1099
    %v1102 = vmul.f32 %v1082, %v824
    %v1103 = vadd.f32 %v1101, %v1102
    %1104 = vmatprep.subr.mxu0 0.0
    %1105 = vmatpush1.msra.mxu0 %v109
    %1106 = vmatprep.subr.mxu0 0.0
    %1107 = vmatpush1.msra.mxu0 %v110
    %1108 = vmatprep.subr.mxu0 0.0
    %1109 = vmatpush1.msra.mxu0 %v111
    %1110 = vmatprep.subr.mxu0 0.0
    %1111 = vmatpush1.msra.mxu0 %v112
    %1112 = vmatprep.subr.mxu0 0.0
    %1113 = vmatpush1.msra.mxu0 0.0
    %1114 = vmatprep.subr.mxu0 0.0
    %1115 = vmatpush1.msra.mxu0 0.0
    %1116 = vmatprep.subr.mxu0 0.0
    %1117 = vmatpush1.msra.mxu0 0.0
    %1118 = vmatprep.subr.mxu0 0.0
    %1119 = vmatpush1.msra.mxu0 0.0
    %1120 = vmatprep.subr.mxu0 0.0
    %1121 = vmatpush1.msra.mxu0 0.0
    %1122 = vmatprep.subr.mxu0 0.0
    %1123 = vmatpush1.msra.mxu0 0.0
    %1124 = vmatprep.subr.mxu0 0.0
    %1125 = vmatpush1.msra.mxu0 0.0
    %1126 = vmatprep.subr.mxu0 0.0
    %1127 = vmatpush1.msra.mxu0 0.0
    %1128 = vmatprep.subr.mxu0 0.0
    %1129 = vmatpush1.msra.mxu0 0.0
    %1130 = vmatprep.subr.mxu0 0.0
    %1131 = vmatpush1.msra.mxu0 0.0
    %1132 = vmatprep.subr.mxu0 0.0
    %1133 = vmatpush1.msra.mxu0 0.0
    %1134 = vmatprep.subr.mxu0 0.0
    %1135 = vmatpush1.msra.mxu0 0.0
    %1136 = vmatprep.subr.mxu0 0.0
    %1137 = vmatpush1.msra.mxu0 0.0
    %1138 = vmatprep.subr.mxu0 0.0
    %1139 = vmatpush1.msra.mxu0 0.0
    %1140 = vmatprep.subr.mxu0 0.0
    %1141 = vmatpush1.msra.mxu0 0.0
    %1142 = vmatprep.subr.mxu0 0.0
    %1143 = vmatpush1.msra.mxu0 0.0
    %1144 = vmatprep.subr.mxu0 0.0
    %1145 = vmatpush1.msra.mxu0 0.0
    %1146 = vmatprep.subr.mxu0 0.0
    %1147 = vmatpush1.msra.mxu0 0.0
    %1148 = vmatprep.subr.mxu0 0.0
    %1149 = vmatpush1.msra.mxu0 0.0
    %1150 = vmatprep.subr.mxu0 0.0
    %1151 = vmatpush1.msra.mxu0 0.0
    %1152 = vmatprep.subr.mxu0 0.0
    %1153 = vmatpush1.msra.mxu0 0.0
    %1154 = vmatprep.subr.mxu0 0.0
    %1155 = vmatpush1.msra.mxu0 0.0
    %1156 = vmatprep.subr.mxu0 0.0
    %1157 = vmatpush1.msra.mxu0 0.0
    %1158 = vmatprep.subr.mxu0 0.0
    %1159 = vmatpush1.msra.mxu0 0.0
    %1160 = vmatprep.subr.mxu0 0.0
    %1161 = vmatpush1.msra.mxu0 0.0
    %1162 = vmatprep.subr.mxu0 0.0
    %1163 = vmatpush1.msra.mxu0 0.0
    %1164 = vmatprep.subr.mxu0 0.0
    %1165 = vmatpush1.msra.mxu0 0.0
    %1166 = vmatprep.subr.mxu0 0.0
    %1167 = vmatpush1.msra.mxu0 0.0
    %1168 = vmatprep.mubr.f32.mxu0 0.0
    %1169 = vmatmul.mubr.f32.gmra.mrb[0].mxu0 %v928
    %v1170 = vpop.f32.mrb[0].mxu0
    %v1171 = vadd.f32 0.0, %v1170
    %v1172 = vpop.f32.mrb[0].mxu0
    %1173 = vdwg.mxu0
    %v1175 = vrot.slane %v1171, 4
    %v1177 = vadd.f32 %v216, %v1175
    %v1178 = vadd.f32 %v1177, %v307
    %v1179 = vxor.u32 %v1178, 2147483648
    %v1180 = vmul.f32 %v1179, 1.442695
    %v1181 = vpow.pop %v1180
    %v1182 = vadd.f32 %v1181, 1.0
    %v1183 = vrcp.pop %v1182
    %v1184 = vmul.f32 1.0, %v1183
    %v1185 = vadd.f32 %v1171, %v327
    %v1187 = vrot.slane %v1185, 4
    %1188 = vrot.lane.b32.xlu0 %v1187, 64
    %v1189 = vpop.permute.xlu0 %1188
    %v1191 = vmul.f32 %v1184, %v1189
    %1193 = vrot.lane.b32.xlu0 %v1191, 64
    %v1194 = vpop.permute.xlu0 %1193
    %v1196 = vadd.f32 %v903, %v1194
    %v1197 = vtanh.pop %v1196
    %v1198 = vsub.f32 1.0, %v1184
    %1200 = vrot.lane.b32.xlu0 %v1197, 96
    %v1201 = vpop.permute.xlu0 %1200
    %v1203 = vmul.f32 %v1198, %v1201
    %v1204 = vrot.slane %v924, 4
    %v1206 = vmul.f32 %v1184, %v1204
    %v1207 = vadd.f32 %v1203, %v1206
    %v1209 = vrot.slane %v1207, 4
    %1210 = vrot.lane.b32.xlu0 %v1209, 96
    %v1211 = vpop.permute.xlu0 %1210
    %v1212 = vsel %vm131, %v1211, 0
    %1214 = vmatprep.subr.mxu0 0.0
    %1215 = vmatpush1.msra.mxu0 %v113
    %1216 = vmatprep.subr.mxu0 0.0
    %1217 = vmatpush1.msra.mxu0 %v114
    %1218 = vmatprep.subr.mxu0 0.0
    %1219 = vmatpush1.msra.mxu0 %v115
    %1220 = vmatprep.subr.mxu0 0.0
    %1221 = vmatpush1.msra.mxu0 %v116
    %1222 = vmatprep.subr.mxu0 0.0
    %1223 = vmatpush1.msra.mxu0 0.0
    %1224 = vmatprep.subr.mxu0 0.0
    %1225 = vmatpush1.msra.mxu0 0.0
    %1226 = vmatprep.subr.mxu0 0.0
    %1227 = vmatpush1.msra.mxu0 0.0
    %1228 = vmatprep.subr.mxu0 0.0
    %1229 = vmatpush1.msra.mxu0 0.0
    %1230 = vmatprep.subr.mxu0 0.0
    %1231 = vmatpush1.msra.mxu0 0.0
    %1232 = vmatprep.subr.mxu0 0.0
    %1233 = vmatpush1.msra.mxu0 0.0
    %1234 = vmatprep.subr.mxu0 0.0
    %1235 = vmatpush1.msra.mxu0 0.0
    %1236 = vmatprep.subr.mxu0 0.0
    %1237 = vmatpush1.msra.mxu0 0.0
    %1238 = vmatprep.subr.mxu0 0.0
    %1239 = vmatpush1.msra.mxu0 0.0
    %1240 = vmatprep.subr.mxu0 0.0
    %1241 = vmatpush1.msra.mxu0 0.0
    %1242 = vmatprep.subr.mxu0 0.0
    %1243 = vmatpush1.msra.mxu0 0.0
    %1244 = vmatprep.subr.mxu0 0.0
    %1245 = vmatpush1.msra.mxu0 0.0
    %1246 = vmatprep.subr.mxu0 0.0
    %1247 = vmatpush1.msra.mxu0 0.0
    %1248 = vmatprep.subr.mxu0 0.0
    %1249 = vmatpush1.msra.mxu0 0.0
    %1250 = vmatprep.subr.mxu0 0.0
    %1251 = vmatpush1.msra.mxu0 0.0
    %1252 = vmatprep.subr.mxu0 0.0
    %1253 = vmatpush1.msra.mxu0 0.0
    %1254 = vmatprep.subr.mxu0 0.0
    %1255 = vmatpush1.msra.mxu0 0.0
    %1256 = vmatprep.subr.mxu0 0.0
    %1257 = vmatpush1.msra.mxu0 0.0
    %1258 = vmatprep.subr.mxu0 0.0
    %1259 = vmatpush1.msra.mxu0 0.0
    %1260 = vmatprep.subr.mxu0 0.0
    %1261 = vmatpush1.msra.mxu0 0.0
    %1262 = vmatprep.subr.mxu0 0.0
    %1263 = vmatpush1.msra.mxu0 0.0
    %1264 = vmatprep.subr.mxu0 0.0
    %1265 = vmatpush1.msra.mxu0 0.0
    %1266 = vmatprep.subr.mxu0 0.0
    %1267 = vmatpush1.msra.mxu0 0.0
    %1268 = vmatprep.subr.mxu0 0.0
    %1269 = vmatpush1.msra.mxu0 0.0
    %1270 = vmatprep.subr.mxu0 0.0
    %1271 = vmatpush1.msra.mxu0 0.0
    %1272 = vmatprep.subr.mxu0 0.0
    %1273 = vmatpush1.msra.mxu0 0.0
    %1274 = vmatprep.subr.mxu0 0.0
    %1275 = vmatpush1.msra.mxu0 0.0
    %1276 = vmatprep.subr.mxu0 0.0
    %1277 = vmatpush1.msra.mxu0 0.0
    %1278 = vmatprep.mubr.f32.mxu0 0.0
    %1279 = vmatmul.mubr.f32.gmra.mrb[0].mxu0 %v1212
    %v1280 = vpop.f32.mrb[0].mxu0
    %v1281 = vadd.f32 0.0, %v1280
    %v1282 = vpop.f32.mrb[0].mxu0
    %1283 = vdwg.mxu0
    %1285 = vrot.lane.b32.xlu0 %v1103, 96
    %v1286 = vpop.permute.xlu0 %1285
    %v1287 = vsel %vm131, %v1286, 0
    %1289 = vmatprep.subr.mxu0 0.0
    %1290 = vmatpush1.msra.mxu0 %v117
    %1291 = vmatprep.subr.mxu0 0.0
    %1292 = vmatpush1.msra.mxu0 %v118
    %1293 = vmatprep.subr.mxu0 0.0
    %1294 = vmatpush1.msra.mxu0 %v119
    %1295 = vmatprep.subr.mxu0 0.0
    %1296 = vmatpush1.msra.mxu0 %v120
    %1297 = vmatprep.subr.mxu0 0.0
    %1298 = vmatpush1.msra.mxu0 0.0
    %1299 = vmatprep.subr.mxu0 0.0
    %1300 = vmatpush1.msra.mxu0 0.0
    %1301 = vmatprep.subr.mxu0 0.0
    %1302 = vmatpush1.msra.mxu0 0.0
    %1303 = vmatprep.subr.mxu0 0.0
    %1304 = vmatpush1.msra.mxu0 0.0
    %1305 = vmatprep.subr.mxu0 0.0
    %1306 = vmatpush1.msra.mxu0 0.0
    %1307 = vmatprep.subr.mxu0 0.0
    %1308 = vmatpush1.msra.mxu0 0.0
    %1309 = vmatprep.subr.mxu0 0.0
    %1310 = vmatpush1.msra.mxu0 0.0
    %1311 = vmatprep.subr.mxu0 0.0
    %1312 = vmatpush1.msra.mxu0 0.0
    %1313 = vmatprep.subr.mxu0 0.0
    %1314 = vmatpush1.msra.mxu0 0.0
    %1315 = vmatprep.subr.mxu0 0.0
    %1316 = vmatpush1.msra.mxu0 0.0
    %1317 = vmatprep.subr.mxu0 0.0
    %1318 = vmatpush1.msra.mxu0 0.0
    %1319 = vmatprep.subr.mxu0 0.0
    %1320 = vmatpush1.msra.mxu0 0.0
    %1321 = vmatprep.subr.mxu0 0.0
    %1322 = vmatpush1.msra.mxu0 0.0
    %1323 = vmatprep.subr.mxu0 0.0
    %1324 = vmatpush1.msra.mxu0 0.0
    %1325 = vmatprep.subr.mxu0 0.0
    %1326 = vmatpush1.msra.mxu0 0.0
    %1327 = vmatprep.subr.mxu0 0.0
    %1328 = vmatpush1.msra.mxu0 0.0
    %1329 = vmatprep.subr.mxu0 0.0
    %1330 = vmatpush1.msra.mxu0 0.0
    %1331 = vmatprep.subr.mxu0 0.0
    %1332 = vmatpush1.msra.mxu0 0.0
    %1333 = vmatprep.subr.mxu0 0.0
    %1334 = vmatpush1.msra.mxu0 0.0
    %1335 = vmatprep.subr.mxu0 0.0
    %1336 = vmatpush1.msra.mxu0 0.0
    %1337 = vmatprep.subr.mxu0 0.0
    %1338 = vmatpush1.msra.mxu0 0.0
    %1339 = vmatprep.subr.mxu0 0.0
    %1340 = vmatpush1.msra.mxu0 0.0
    %1341 = vmatprep.subr.mxu0 0.0
    %1342 = vmatpush1.msra.mxu0 0.0
    %1343 = vmatprep.subr.mxu0 0.0
    %1344 = vmatpush1.msra.mxu0 0.0
    %1345 = vmatprep.subr.mxu0 0.0
    %1346 = vmatpush1.msra.mxu0 0.0
    %1347 = vmatprep.subr.mxu0 0.0
    %1348 = vmatpush1.msra.mxu0 0.0
    %1349 = vmatprep.subr.mxu0 0.0
    %1350 = vmatpush1.msra.mxu0 0.0
    %1351 = vmatprep.subr.mxu0 0.0
    %1352 = vmatpush1.msra.mxu0 0.0
    %1353 = vmatprep.mubr.f32.mxu0 0.0
    %1354 = vmatmul.mubr.f32.gmra.mrb[0].mxu0 %v1287
    %v1355 = vpop.f32.mrb[0].mxu0
    %v1356 = vadd.f32 0.0, %v1355
    %v1357 = vpop.f32.mrb[0].mxu0
    %1358 = vdwg.mxu0
    %v1359 = vadd.f32 %v1281, %v1356
    %v1360 = vadd.f32 %v1359, %v499
    %v1361 = vxor.u32 %v1360, 2147483648
    %v1362 = vmul.f32 %v1361, 1.442695
    %v1363 = vpow.pop %v1362
    %v1364 = vadd.f32 %v1363, 1.0
    %v1365 = vrcp.pop %v1364
    %v1366 = vmul.f32 1.0, %v1365
    %v1367 = vadd.f32 %v1281, %v512
    %v1368 = vadd.f32 %v1356, %v519
    %1370 = vrot.lane.b32.xlu0 %v1368, 64
    %v1371 = vpop.permute.xlu0 %1370
    %v1373 = vmul.f32 %v1366, %v1371
    %1375 = vrot.lane.b32.xlu0 %v1373, 64
    %v1376 = vpop.permute.xlu0 %1375
    %v1378 = vadd.f32 %v1367, %v1376
    %v1379 = vtanh.pop %v1378
    %v1380 = vsub.f32 1.0, %v1366
    %1382 = vrot.lane.b32.xlu0 %v1379, 96
    %v1383 = vpop.permute.xlu0 %1382
    %v1385 = vmul.f32 %v1380, %v1383
    %v1386 = vmul.f32 %v1366, %v1103
    %v1387 = vadd.f32 %v1385, %v1386
    %1388 = vmatprep.subr.mxu0 0.0
    %1389 = vmatpush1.msra.mxu0 %v109
    %1390 = vmatprep.subr.mxu0 0.0
    %1391 = vmatpush1.msra.mxu0 %v110
    %1392 = vmatprep.subr.mxu0 0.0
    %1393 = vmatpush1.msra.mxu0 %v111
    %1394 = vmatprep.subr.mxu0 0.0
    %1395 = vmatpush1.msra.mxu0 %v112
    %1396 = vmatprep.subr.mxu0 0.0
    %1397 = vmatpush1.msra.mxu0 0.0
    %1398 = vmatprep.subr.mxu0 0.0
    %1399 = vmatpush1.msra.mxu0 0.0
    %1400 = vmatprep.subr.mxu0 0.0
    %1401 = vmatpush1.msra.mxu0 0.0
    %1402 = vmatprep.subr.mxu0 0.0
    %1403 = vmatpush1.msra.mxu0 0.0
    %1404 = vmatprep.subr.mxu0 0.0
    %1405 = vmatpush1.msra.mxu0 0.0
    %1406 = vmatprep.subr.mxu0 0.0
    %1407 = vmatpush1.msra.mxu0 0.0
    %1408 = vmatprep.subr.mxu0 0.0
    %1409 = vmatpush1.msra.mxu0 0.0
    %1410 = vmatprep.subr.mxu0 0.0
    %1411 = vmatpush1.msra.mxu0 0.0
    %1412 = vmatprep.subr.mxu0 0.0
    %1413 = vmatpush1.msra.mxu0 0.0
    %1414 = vmatprep.subr.mxu0 0.0
    %1415 = vmatpush1.msra.mxu0 0.0
    %1416 = vmatprep.subr.mxu0 0.0
    %1417 = vmatpush1.msra.mxu0 0.0
    %1418 = vmatprep.subr.mxu0 0.0
    %1419 = vmatpush1.msra.mxu0 0.0
    %1420 = vmatprep.subr.mxu0 0.0
    %1421 = vmatpush1.msra.mxu0 0.0
    %1422 = vmatprep.subr.mxu0 0.0
    %1423 = vmatpush1.msra.mxu0 0.0
    %1424 = vmatprep.subr.mxu0 0.0
    %1425 = vmatpush1.msra.mxu0 0.0
    %1426 = vmatprep.subr.mxu0 0.0
    %1427 = vmatpush1.msra.mxu0 0.0
    %1428 = vmatprep.subr.mxu0 0.0
    %1429 = vmatpush1.msra.mxu0 0.0
    %1430 = vmatprep.subr.mxu0 0.0
    %1431 = vmatpush1.msra.mxu0 0.0
    %1432 = vmatprep.subr.mxu0 0.0
    %1433 = vmatpush1.msra.mxu0 0.0
    %1434 = vmatprep.subr.mxu0 0.0
    %1435 = vmatpush1.msra.mxu0 0.0
    %1436 = vmatprep.subr.mxu0 0.0
    %1437 = vmatpush1.msra.mxu0 0.0
    %1438 = vmatprep.subr.mxu0 0.0
    %1439 = vmatpush1.msra.mxu0 0.0
    %1440 = vmatprep.subr.mxu0 0.0
    %1441 = vmatpush1.msra.mxu0 0.0
    %1442 = vmatprep.subr.mxu0 0.0
    %1443 = vmatpush1.msra.mxu0 0.0
    %1444 = vmatprep.subr.mxu0 0.0
    %1445 = vmatpush1.msra.mxu0 0.0
    %1446 = vmatprep.subr.mxu0 0.0
    %1447 = vmatpush1.msra.mxu0 0.0
    %1448 = vmatprep.subr.mxu0 0.0
    %1449 = vmatpush1.msra.mxu0 0.0
    %1450 = vmatprep.subr.mxu0 0.0
    %1451 = vmatpush1.msra.mxu0 0.0
    %1452 = vmatprep.mubr.f32.mxu0 0.0
    %1453 = vmatmul.mubr.f32.gmra.mrb[0].mxu0 %v1212
    %v1454 = vpop.f32.mrb[0].mxu0
    %v1455 = vadd.f32 0.0, %v1454
    %v1456 = vpop.f32.mrb[0].mxu0
    %1457 = vdwg.mxu0
    %v1458 = vadd.f32 %v221, %v1455
    %v1459 = vadd.f32 %v1458, %v307
    %v1460 = vxor.u32 %v1459, 2147483648
    %v1461 = vmul.f32 %v1460, 1.442695
    %v1462 = vpow.pop %v1461
    %v1463 = vadd.f32 %v1462, 1.0
    %v1464 = vrcp.pop %v1463
    %v1465 = vmul.f32 1.0, %v1464
    %v1466 = vadd.f32 %v221, %v320
    %v1467 = vadd.f32 %v1455, %v327
    %1469 = vrot.lane.b32.xlu0 %v1467, 64
    %v1470 = vpop.permute.xlu0 %1469
    %v1472 = vmul.f32 %v1465, %v1470
    %1474 = vrot.lane.b32.xlu0 %v1472, 64
    %v1475 = vpop.permute.xlu0 %1474
    %v1477 = vadd.f32 %v1466, %v1475
    %v1478 = vtanh.pop %v1477
    %v1479 = vsub.f32 1.0, %v1465
    %1481 = vrot.lane.b32.xlu0 %v1478, 96
    %v1482 = vpop.permute.xlu0 %1481
    %v1484 = vmul.f32 %v1479, %v1482
    %v1486 = vmul.f32 %v1465, %v1209
    %v1487 = vadd.f32 %v1484, %v1486
    %1489 = vrot.lane.b32.xlu0 %v1487, 96
    %v1490 = vpop.permute.xlu0 %1489
    %v1491 = vsel %vm131, %v1490, 0
    %1493 = vmatprep.subr.mxu0 0.0
    %1494 = vmatpush1.msra.mxu0 %v113
    %1495 = vmatprep.subr.mxu0 0.0
    %1496 = vmatpush1.msra.mxu0 %v114
    %1497 = vmatprep.subr.mxu0 0.0
    %1498 = vmatpush1.msra.mxu0 %v115
    %1499 = vmatprep.subr.mxu0 0.0
    %1500 = vmatpush1.msra.mxu0 %v116
    %1501 = vmatprep.subr.mxu0 0.0
    %1502 = vmatpush1.msra.mxu0 0.0
    %1503 = vmatprep.subr.mxu0 0.0
    %1504 = vmatpush1.msra.mxu0 0.0
    %1505 = vmatprep.subr.mxu0 0.0
    %1506 = vmatpush1.msra.mxu0 0.0
    %1507 = vmatprep.subr.mxu0 0.0
    %1508 = vmatpush1.msra.mxu0 0.0
    %1509 = vmatprep.subr.mxu0 0.0
    %1510 = vmatpush1.msra.mxu0 0.0
    %1511 = vmatprep.subr.mxu0 0.0
    %1512 = vmatpush1.msra.mxu0 0.0
    %1513 = vmatprep.subr.mxu0 0.0
    %1514 = vmatpush1.msra.mxu0 0.0
    %1515 = vmatprep.subr.mxu0 0.0
    %1516 = vmatpush1.msra.mxu0 0.0
    %1517 = vmatprep.subr.mxu0 0.0
    %1518 = vmatpush1.msra.mxu0 0.0
    %1519 = vmatprep.subr.mxu0 0.0
    %1520 = vmatpush1.msra.mxu0 0.0
    %1521 = vmatprep.subr.mxu0 0.0
    %1522 = vmatpush1.msra.mxu0 0.0
    %1523 = vmatprep.subr.mxu0 0.0
    %1524 = vmatpush1.msra.mxu0 0.0
    %1525 = vmatprep.subr.mxu0 0.0
    %1526 = vmatpush1.msra.mxu0 0.0
    %1527 = vmatprep.subr.mxu0 0.0
    %1528 = vmatpush1.msra.mxu0 0.0
    %1529 = vmatprep.subr.mxu0 0.0
    %1530 = vmatpush1.msra.mxu0 0.0
    %1531 = vmatprep.subr.mxu0 0.0
    %1532 = vmatpush1.msra.mxu0 0.0
    %1533 = vmatprep.subr.mxu0 0.0
    %1534 = vmatpush1.msra.mxu0 0.0
    %1535 = vmatprep.subr.mxu0 0.0
    %1536 = vmatpush1.msra.mxu0 0.0
    %1537 = vmatprep.subr.mxu0 0.0
    %1538 = vmatpush1.msra.mxu0 0.0
    %1539 = vmatprep.subr.mxu0 0.0
    %1540 = vmatpush1.msra.mxu0 0.0
    %1541 = vmatprep.subr.mxu0 0.0
    %1542 = vmatpush1.msra.mxu0 0.0
    %1543 = vmatprep.subr.mxu0 0.0
    %1544 = vmatpush1.msra.mxu0 0.0
    %1545 = vmatprep.subr.mxu0 0.0
    %1546 = vmatpush1.msra.mxu0 0.0
    %1547 = vmatprep.subr.mxu0 0.0
    %1548 = vmatpush1.msra.mxu0 0.0
    %1549 = vmatprep.subr.mxu0 0.0
    %1550 = vmatpush1.msra.mxu0 0.0
    %1551 = vmatprep.subr.mxu0 0.0
    %1552 = vmatpush1.msra.mxu0 0.0
    %1553 = vmatprep.subr.mxu0 0.0
    %1554 = vmatpush1.msra.mxu0 0.0
    %1555 = vmatprep.subr.mxu0 0.0
    %1556 = vmatpush1.msra.mxu0 0.0
    %1557 = vmatprep.mubr.f32.mxu0 0.0
    %1558 = vmatmul.mubr.f32.gmra.mrb[0].mxu0 %v1491
    %v1559 = vpop.f32.mrb[0].mxu0
    %v1560 = vadd.f32 0.0, %v1559
    %v1561 = vpop.f32.mrb[0].mxu0
    %1562 = vdwg.mxu0
    %1564 = vrot.lane.b32.xlu0 %v1387, 96
    %v1565 = vpop.permute.xlu0 %1564
    %v1566 = vsel %vm131, %v1565, 0
    %1568 = vmatprep.subr.mxu0 0.0
    %1569 = vmatpush1.msra.mxu0 %v117
    %1570 = vmatprep.subr.mxu0 0.0
    %1571 = vmatpush1.msra.mxu0 %v118
    %1572 = vmatprep.subr.mxu0 0.0
    %1573 = vmatpush1.msra.mxu0 %v119
    %1574 = vmatprep.subr.mxu0 0.0
    %1575 = vmatpush1.msra.mxu0 %v120
    %1576 = vmatprep.subr.mxu0 0.0
    %1577 = vmatpush1.msra.mxu0 0.0
    %1578 = vmatprep.subr.mxu0 0.0
    %1579 = vmatpush1.msra.mxu0 0.0
    %1580 = vmatprep.subr.mxu0 0.0
    %1581 = vmatpush1.msra.mxu0 0.0
    %1582 = vmatprep.subr.mxu0 0.0
    %1583 = vmatpush1.msra.mxu0 0.0
    %1584 = vmatprep.subr.mxu0 0.0
    %1585 = vmatpush1.msra.mxu0 0.0
    %1586 = vmatprep.subr.mxu0 0.0
    %1587 = vmatpush1.msra.mxu0 0.0
    %1588 = vmatprep.subr.mxu0 0.0
    %1589 = vmatpush1.msra.mxu0 0.0
    %1590 = vmatprep.subr.mxu0 0.0
    %1591 = vmatpush1.msra.mxu0 0.0
    %1592 = vmatprep.subr.mxu0 0.0
    %1593 = vmatpush1.msra.mxu0 0.0
    %1594 = vmatprep.subr.mxu0 0.0
    %1595 = vmatpush1.msra.mxu0 0.0
    %1596 = vmatprep.subr.mxu0 0.0
    %1597 = vmatpush1.msra.mxu0 0.0
    %1598 = vmatprep.subr.mxu0 0.0
    %1599 = vmatpush1.msra.mxu0 0.0
    %1600 = vmatprep.subr.mxu0 0.0
    %1601 = vmatpush1.msra.mxu0 0.0
    %1602 = vmatprep.subr.mxu0 0.0
    %1603 = vmatpush1.msra.mxu0 0.0
    %1604 = vmatprep.subr.mxu0 0.0
    %1605 = vmatpush1.msra.mxu0 0.0
    %1606 = vmatprep.subr.mxu0 0.0
    %1607 = vmatpush1.msra.mxu0 0.0
    %1608 = vmatprep.subr.mxu0 0.0
    %1609 = vmatpush1.msra.mxu0 0.0
    %1610 = vmatprep.subr.mxu0 0.0
    %1611 = vmatpush1.msra.mxu0 0.0
    %1612 = vmatprep.subr.mxu0 0.0
    %1613 = vmatpush1.msra.mxu0 0.0
    %1614 = vmatprep.subr.mxu0 0.0
    %1615 = vmatpush1.msra.mxu0 0.0
    %1616 = vmatprep.subr.mxu0 0.0
    %1617 = vmatpush1.msra.mxu0 0.0
    %1618 = vmatprep.subr.mxu0 0.0
    %1619 = vmatpush1.msra.mxu0 0.0
    %1620 = vmatprep.subr.mxu0 0.0
    %1621 = vmatpush1.msra.mxu0 0.0
    %1622 = vmatprep.subr.mxu0 0.0
    %1623 = vmatpush1.msra.mxu0 0.0
    %1624 = vmatprep.subr.mxu0 0.0
    %1625 = vmatpush1.msra.mxu0 0.0
    %1626 = vmatprep.subr.mxu0 0.0
    %1627 = vmatpush1.msra.mxu0 0.0
    %1628 = vmatprep.subr.mxu0 0.0
    %1629 = vmatpush1.msra.mxu0 0.0
    %1630 = vmatprep.subr.mxu0 0.0
    %1631 = vmatpush1.msra.mxu0 0.0
    %1632 = vmatprep.mubr.f32.mxu0 0.0
    %1633 = vmatmul.mubr.f32.gmra.mrb[0].mxu0 %v1566
    %v1634 = vpop.f32.mrb[0].mxu0
    %v1635 = vadd.f32 0.0, %v1634
    %v1636 = vpop.f32.mrb[0].mxu0
    %1637 = vdwg.mxu0
    %v1638 = vadd.f32 %v1560, %v1635
    %v1639 = vadd.f32 %v1638, %v499
    %v1640 = vxor.u32 %v1639, 2147483648
    %v1641 = vmul.f32 %v1640, 1.442695
    %v1642 = vpow.pop %v1641
    %v1643 = vadd.f32 %v1642, 1.0
    %v1644 = vrcp.pop %v1643
    %v1645 = vmul.f32 1.0, %v1644
    %v1646 = vadd.f32 %v1560, %v512
    %v1647 = vadd.f32 %v1635, %v519
    %1649 = vrot.lane.b32.xlu0 %v1647, 64
    %v1650 = vpop.permute.xlu0 %1649
    %v1652 = vmul.f32 %v1645, %v1650
    %1654 = vrot.lane.b32.xlu0 %v1652, 64
    %v1655 = vpop.permute.xlu0 %1654
    %v1657 = vadd.f32 %v1646, %v1655
    %v1658 = vtanh.pop %v1657
    %v1659 = vsub.f32 1.0, %v1645
    %1661 = vrot.lane.b32.xlu0 %v1658, 96
    %v1662 = vpop.permute.xlu0 %1661
    %v1664 = vmul.f32 %v1659, %v1662
    %v1665 = vmul.f32 %v1645, %v1387
    %v1666 = vadd.f32 %v1664, %v1665
    %1667 = vmatprep.subr.mxu0 0.0
    %1668 = vmatpush1.msra.mxu0 %v109
    %1669 = vmatprep.subr.mxu0 0.0
    %1670 = vmatpush1.msra.mxu0 %v110
    %1671 = vmatprep.subr.mxu0 0.0
    %1672 = vmatpush1.msra.mxu0 %v111
    %1673 = vmatprep.subr.mxu0 0.0
    %1674 = vmatpush1.msra.mxu0 %v112
    %1675 = vmatprep.subr.mxu0 0.0
    %1676 = vmatpush1.msra.mxu0 0.0
    %1677 = vmatprep.subr.mxu0 0.0
    %1678 = vmatpush1.msra.mxu0 0.0
    %1679 = vmatprep.subr.mxu0 0.0
    %1680 = vmatpush1.msra.mxu0 0.0
    %1681 = vmatprep.subr.mxu0 0.0
    %1682 = vmatpush1.msra.mxu0 0.0
    %1683 = vmatprep.subr.mxu0 0.0
    %1684 = vmatpush1.msra.mxu0 0.0
    %1685 = vmatprep.subr.mxu0 0.0
    %1686 = vmatpush1.msra.mxu0 0.0
    %1687 = vmatprep.subr.mxu0 0.0
    %1688 = vmatpush1.msra.mxu0 0.0
    %1689 = vmatprep.subr.mxu0 0.0
    %1690 = vmatpush1.msra.mxu0 0.0
    %1691 = vmatprep.subr.mxu0 0.0
    %1692 = vmatpush1.msra.mxu0 0.0
    %1693 = vmatprep.subr.mxu0 0.0
    %1694 = vmatpush1.msra.mxu0 0.0
    %1695 = vmatprep.subr.mxu0 0.0
    %1696 = vmatpush1.msra.mxu0 0.0
    %1697 = vmatprep.subr.mxu0 0.0
    %1698 = vmatpush1.msra.mxu0 0.0
    %1699 = vmatprep.subr.mxu0 0.0
    %1700 = vmatpush1.msra.mxu0 0.0
    %1701 = vmatprep.subr.mxu0 0.0
    %1702 = vmatpush1.msra.mxu0 0.0
    %1703 = vmatprep.subr.mxu0 0.0
    %1704 = vmatpush1.msra.mxu0 0.0
    %1705 = vmatprep.subr.mxu0 0.0
    %1706 = vmatpush1.msra.mxu0 0.0
    %1707 = vmatprep.subr.mxu0 0.0
    %1708 = vmatpush1.msra.mxu0 0.0
    %1709 = vmatprep.subr.mxu0 0.0
    %1710 = vmatpush1.msra.mxu0 0.0
    %1711 = vmatprep.subr.mxu0 0.0
    %1712 = vmatpush1.msra.mxu0 0.0
    %1713 = vmatprep.subr.mxu0 0.0
    %1714 = vmatpush1.msra.mxu0 0.0
    %1715 = vmatprep.subr.mxu0 0.0
    %1716 = vmatpush1.msra.mxu0 0.0
    %1717 = vmatprep.subr.mxu0 0.0
    %1718 = vmatpush1.msra.mxu0 0.0
    %1719 = vmatprep.subr.mxu0 0.0
    %1720 = vmatpush1.msra.mxu0 0.0
    %1721 = vmatprep.subr.mxu0 0.0
    %1722 = vmatpush1.msra.mxu0 0.0
    %1723 = vmatprep.subr.mxu0 0.0
    %1724 = vmatpush1.msra.mxu0 0.0
    %1725 = vmatprep.subr.mxu0 0.0
    %1726 = vmatpush1.msra.mxu0 0.0
    %1727 = vmatprep.subr.mxu0 0.0
    %1728 = vmatpush1.msra.mxu0 0.0
    %1729 = vmatprep.subr.mxu0 0.0
    %1730 = vmatpush1.msra.mxu0 0.0
    %1731 = vmatprep.mubr.f32.mxu0 0.0
    %1732 = vmatmul.mubr.f32.gmra.mrb[0].mxu0 %v1491
    %v1733 = vpop.f32.mrb[0].mxu0
    %v1734 = vadd.f32 0.0, %v1733
    %v1735 = vpop.f32.mrb[0].mxu0
    %1736 = vdwg.mxu0
    %v1738 = vrot.slane %v1734, 4
    %v1740 = vadd.f32 %v221, %v1738
    %v1741 = vadd.f32 %v1740, %v307
    %v1742 = vxor.u32 %v1741, 2147483648
    %v1743 = vmul.f32 %v1742, 1.442695
    %v1744 = vpow.pop %v1743
    %v1745 = vadd.f32 %v1744, 1.0
    %v1746 = vrcp.pop %v1745
    %v1747 = vmul.f32 1.0, %v1746
    %v1748 = vadd.f32 %v1734, %v327
    %v1750 = vrot.slane %v1748, 4
    %1751 = vrot.lane.b32.xlu0 %v1750, 64
    %v1752 = vpop.permute.xlu0 %1751
    %v1754 = vmul.f32 %v1747, %v1752
    %1756 = vrot.lane.b32.xlu0 %v1754, 64
    %v1757 = vpop.permute.xlu0 %1756
    %v1759 = vadd.f32 %v1466, %v1757
    %v1760 = vtanh.pop %v1759
    %v1761 = vsub.f32 1.0, %v1747
    %1763 = vrot.lane.b32.xlu0 %v1760, 96
    %v1764 = vpop.permute.xlu0 %1763
    %v1766 = vmul.f32 %v1761, %v1764
    %v1767 = vrot.slane %v1487, 4
    %v1769 = vmul.f32 %v1747, %v1767
    %v1770 = vadd.f32 %v1766, %v1769
    %v1772 = vrot.slane %v1770, 4
    %1773 = vrot.lane.b32.xlu0 %v1772, 96
    %v1774 = vpop.permute.xlu0 %1773
    %v1775 = vsel %vm131, %v1774, 0
    %1777 = vmatprep.subr.mxu0 0.0
    %1778 = vmatpush1.msra.mxu0 %v113
    %1779 = vmatprep.subr.mxu0 0.0
    %1780 = vmatpush1.msra.mxu0 %v114
    %1781 = vmatprep.subr.mxu0 0.0
    %1782 = vmatpush1.msra.mxu0 %v115
    %1783 = vmatprep.subr.mxu0 0.0
    %1784 = vmatpush1.msra.mxu0 %v116
    %1785 = vmatprep.subr.mxu0 0.0
    %1786 = vmatpush1.msra.mxu0 0.0
    %1787 = vmatprep.subr.mxu0 0.0
    %1788 = vmatpush1.msra.mxu0 0.0
    %1789 = vmatprep.subr.mxu0 0.0
    %1790 = vmatpush1.msra.mxu0 0.0
    %1791 = vmatprep.subr.mxu0 0.0
    %1792 = vmatpush1.msra.mxu0 0.0
    %1793 = vmatprep.subr.mxu0 0.0
    %1794 = vmatpush1.msra.mxu0 0.0
    %1795 = vmatprep.subr.mxu0 0.0
    %1796 = vmatpush1.msra.mxu0 0.0
    %1797 = vmatprep.subr.mxu0 0.0
    %1798 = vmatpush1.msra.mxu0 0.0
    %1799 = vmatprep.subr.mxu0 0.0
    %1800 = vmatpush1.msra.mxu0 0.0
    %1801 = vmatprep.subr.mxu0 0.0
    %1802 = vmatpush1.msra.mxu0 0.0
    %1803 = vmatprep.subr.mxu0 0.0
    %1804 = vmatpush1.msra.mxu0 0.0
    %1805 = vmatprep.subr.mxu0 0.0
    %1806 = vmatpush1.msra.mxu0 0.0
    %1807 = vmatprep.subr.mxu0 0.0
    %1808 = vmatpush1.msra.mxu0 0.0
    %1809 = vmatprep.subr.mxu0 0.0
    %1810 = vmatpush1.msra.mxu0 0.0
    %1811 = vmatprep.subr.mxu0 0.0
    %1812 = vmatpush1.msra.mxu0 0.0
    %1813 = vmatprep.subr.mxu0 0.0
    %1814 = vmatpush1.msra.mxu0 0.0
    %1815 = vmatprep.subr.mxu0 0.0
    %1816 = vmatpush1.msra.mxu0 0.0
    %1817 = vmatprep.subr.mxu0 0.0
    %1818 = vmatpush1.msra.mxu0 0.0
    %1819 = vmatprep.subr.mxu0 0.0
    %1820 = vmatpush1.msra.mxu0 0.0
    %1821 = vmatprep.subr.mxu0 0.0
    %1822 = vmatpush1.msra.mxu0 0.0
    %1823 = vmatprep.subr.mxu0 0.0
    %1824 = vmatpush1.msra.mxu0 0.0
    %1825 = vmatprep.subr.mxu0 0.0
    %1826 = vmatpush1.msra.mxu0 0.0
    %1827 = vmatprep.subr.mxu0 0.0
    %1828 = vmatpush1.msra.mxu0 0.0
    %1829 = vmatprep.subr.mxu0 0.0
    %1830 = vmatpush1.msra.mxu0 0.0
    %1831 = vmatprep.subr.mxu0 0.0
    %1832 = vmatpush1.msra.mxu0 0.0
    %1833 = vmatprep.subr.mxu0 0.0
    %1834 = vmatpush1.msra.mxu0 0.0
    %1835 = vmatprep.subr.mxu0 0.0
    %1836 = vmatpush1.msra.mxu0 0.0
    %1837 = vmatprep.subr.mxu0 0.0
    %1838 = vmatpush1.msra.mxu0 0.0
    %1839 = vmatprep.subr.mxu0 0.0
    %1840 = vmatpush1.msra.mxu0 0.0
    %1841 = vmatprep.mubr.f32.mxu0 0.0
    %1842 = vmatmul.mubr.f32.gmra.mrb[0].mxu0 %v1775
    %v1843 = vpop.f32.mrb[0].mxu0
    %v1844 = vadd.f32 0.0, %v1843
    %v1845 = vpop.f32.mrb[0].mxu0
    %1846 = vdwg.mxu0
    %1848 = vrot.lane.b32.xlu0 %v1666, 96
    %v1849 = vpop.permute.xlu0 %1848
    %v1850 = vsel %vm131, %v1849, 0
    %1852 = vmatprep.subr.mxu0 0.0
    %1853 = vmatpush1.msra.mxu0 %v117
    %1854 = vmatprep.subr.mxu0 0.0
    %1855 = vmatpush1.msra.mxu0 %v118
    %1856 = vmatprep.subr.mxu0 0.0
    %1857 = vmatpush1.msra.mxu0 %v119
    %1858 = vmatprep.subr.mxu0 0.0
    %1859 = vmatpush1.msra.mxu0 %v120
    %1860 = vmatprep.subr.mxu0 0.0
    %1861 = vmatpush1.msra.mxu0 0.0
    %1862 = vmatprep.subr.mxu0 0.0
    %1863 = vmatpush1.msra.mxu0 0.0
    %1864 = vmatprep.subr.mxu0 0.0
    %1865 = vmatpush1.msra.mxu0 0.0
    %1866 = vmatprep.subr.mxu0 0.0
    %1867 = vmatpush1.msra.mxu0 0.0
    %1868 = vmatprep.subr.mxu0 0.0
    %1869 = vmatpush1.msra.mxu0 0.0
    %1870 = vmatprep.subr.mxu0 0.0
    %1871 = vmatpush1.msra.mxu0 0.0
    %1872 = vmatprep.subr.mxu0 0.0
    %1873 = vmatpush1.msra.mxu0 0.0
    %1874 = vmatprep.subr.mxu0 0.0
    %1875 = vmatpush1.msra.mxu0 0.0
    %1876 = vmatprep.subr.mxu0 0.0
    %1877 = vmatpush1.msra.mxu0 0.0
    %1878 = vmatprep.subr.mxu0 0.0
    %1879 = vmatpush1.msra.mxu0 0.0
    %1880 = vmatprep.subr.mxu0 0.0
    %1881 = vmatpush1.msra.mxu0 0.0
    %1882 = vmatprep.subr.mxu0 0.0
    %1883 = vmatpush1.msra.mxu0 0.0
    %1884 = vmatprep.subr.mxu0 0.0
    %1885 = vmatpush1.msra.mxu0 0.0
    %1886 = vmatprep.subr.mxu0 0.0
    %1887 = vmatpush1.msra.mxu0 0.0
    %1888 = vmatprep.subr.mxu0 0.0
    %1889 = vmatpush1.msra.mxu0 0.0
    %1890 = vmatprep.subr.mxu0 0.0
    %1891 = vmatpush1.msra.mxu0 0.0
    %1892 = vmatprep.subr.mxu0 0.0
    %1893 = vmatpush1.msra.mxu0 0.0
    %1894 = vmatprep.subr.mxu0 0.0
    %1895 = vmatpush1.msra.mxu0 0.0
    %1896 = vmatprep.subr.mxu0 0.0
    %1897 = vmatpush1.msra.mxu0 0.0
    %1898 = vmatprep.subr.mxu0 0.0
    %1899 = vmatpush1.msra.mxu0 0.0
    %1900 = vmatprep.subr.mxu0 0.0
    %1901 = vmatpush1.msra.mxu0 0.0
    %1902 = vmatprep.subr.mxu0 0.0
    %1903 = vmatpush1.msra.mxu0 0.0
    %1904 = vmatprep.subr.mxu0 0.0
    %1905 = vmatpush1.msra.mxu0 0.0
    %1906 = vmatprep.subr.mxu0 0.0
    %1907 = vmatpush1.msra.mxu0 0.0
    %1908 = vmatprep.subr.mxu0 0.0
    %1909 = vmatpush1.msra.mxu0 0.0
    %1910 = vmatprep.subr.mxu0 0.0
    %1911 = vmatpush1.msra.mxu0 0.0
    %1912 = vmatprep.subr.mxu0 0.0
    %1913 = vmatpush1.msra.mxu0 0.0
    %1914 = vmatprep.subr.mxu0 0.0
    %1915 = vmatpush1.msra.mxu0 0.0
    %1916 = vmatprep.mubr.f32.mxu0 0.0
    %1917 = vmatmul.mubr.f32.gmra.mrb[0].mxu0 %v1850
    %v1918 = vpop.f32.mrb[0].mxu0
    %v1919 = vadd.f32 0.0, %v1918
    %v1920 = vpop.f32.mrb[0].mxu0
    %1921 = vdwg.mxu0
    %v1922 = vadd.f32 %v1844, %v1919
    %v1923 = vadd.f32 %v1922, %v499
    %v1924 = vxor.u32 %v1923, 2147483648
    %v1925 = vmul.f32 %v1924, 1.442695
    %v1926 = vpow.pop %v1925
    %v1927 = vadd.f32 %v1926, 1.0
    %v1928 = vrcp.pop %v1927
    %v1929 = vmul.f32 1.0, %v1928
    %v1930 = vadd.f32 %v1844, %v512
    %v1931 = vadd.f32 %v1919, %v519
    %1933 = vrot.lane.b32.xlu0 %v1931, 64
    %v1934 = vpop.permute.xlu0 %1933
    %v1936 = vmul.f32 %v1929, %v1934
    %1938 = vrot.lane.b32.xlu0 %v1936, 64
    %v1939 = vpop.permute.xlu0 %1938
    %v1941 = vadd.f32 %v1930, %v1939
    %v1942 = vtanh.pop %v1941
    %v1943 = vsub.f32 1.0, %v1929
    %1945 = vrot.lane.b32.xlu0 %v1942, 96
    %v1946 = vpop.permute.xlu0 %1945
    %v1948 = vmul.f32 %v1943, %v1946
    %v1949 = vmul.f32 %v1929, %v1666
    %v1950 = vadd.f32 %v1948, %v1949
    %1951 = vmatprep.subr.mxu0 0.0
    %1952 = vmatpush1.msra.mxu0 %v109
    %1953 = vmatprep.subr.mxu0 0.0
    %1954 = vmatpush1.msra.mxu0 %v110
    %1955 = vmatprep.subr.mxu0 0.0
    %1956 = vmatpush1.msra.mxu0 %v111
    %1957 = vmatprep.subr.mxu0 0.0
    %1958 = vmatpush1.msra.mxu0 %v112
    %1959 = vmatprep.subr.mxu0 0.0
    %1960 = vmatpush1.msra.mxu0 0.0
    %1961 = vmatprep.subr.mxu0 0.0
    %1962 = vmatpush1.msra.mxu0 0.0
    %1963 = vmatprep.subr.mxu0 0.0
    %1964 = vmatpush1.msra.mxu0 0.0
    %1965 = vmatprep.subr.mxu0 0.0
    %1966 = vmatpush1.msra.mxu0 0.0
    %1967 = vmatprep.subr.mxu0 0.0
    %1968 = vmatpush1.msra.mxu0 0.0
    %1969 = vmatprep.subr.mxu0 0.0
    %1970 = vmatpush1.msra.mxu0 0.0
    %1971 = vmatprep.subr.mxu0 0.0
    %1972 = vmatpush1.msra.mxu0 0.0
    %1973 = vmatprep.subr.mxu0 0.0
    %1974 = vmatpush1.msra.mxu0 0.0
    %1975 = vmatprep.subr.mxu0 0.0
    %1976 = vmatpush1.msra.mxu0 0.0
    %1977 = vmatprep.subr.mxu0 0.0
    %1978 = vmatpush1.msra.mxu0 0.0
    %1979 = vmatprep.subr.mxu0 0.0
    %1980 = vmatpush1.msra.mxu0 0.0
    %1981 = vmatprep.subr.mxu0 0.0
    %1982 = vmatpush1.msra.mxu0 0.0
    %1983 = vmatprep.subr.mxu0 0.0
    %1984 = vmatpush1.msra.mxu0 0.0
    %1985 = vmatprep.subr.mxu0 0.0
    %1986 = vmatpush1.msra.mxu0 0.0
    %1987 = vmatprep.subr.mxu0 0.0
    %1988 = vmatpush1.msra.mxu0 0.0
    %1989 = vmatprep.subr.mxu0 0.0
    %1990 = vmatpush1.msra.mxu0 0.0
    %1991 = vmatprep.subr.mxu0 0.0
    %1992 = vmatpush1.msra.mxu0 0.0
    %1993 = vmatprep.subr.mxu0 0.0
    %1994 = vmatpush1.msra.mxu0 0.0
    %1995 = vmatprep.subr.mxu0 0.0
    %1996 = vmatpush1.msra.mxu0 0.0
    %1997 = vmatprep.subr.mxu0 0.0
    %1998 = vmatpush1.msra.mxu0 0.0
    %1999 = vmatprep.subr.mxu0 0.0
    %2000 = vmatpush1.msra.mxu0 0.0
    %2001 = vmatprep.subr.mxu0 0.0
    %2002 = vmatpush1.msra.mxu0 0.0
    %2003 = vmatprep.subr.mxu0 0.0
    %2004 = vmatpush1.msra.mxu0 0.0
    %2005 = vmatprep.subr.mxu0 0.0
    %2006 = vmatpush1.msra.mxu0 0.0
    %2007 = vmatprep.subr.mxu0 0.0
    %2008 = vmatpush1.msra.mxu0 0.0
    %2009 = vmatprep.subr.mxu0 0.0
    %2010 = vmatpush1.msra.mxu0 0.0
    %2011 = vmatprep.subr.mxu0 0.0
    %2012 = vmatpush1.msra.mxu0 0.0
    %2013 = vmatprep.subr.mxu0 0.0
    %2014 = vmatpush1.msra.mxu0 0.0
    %2015 = vmatprep.mubr.f32.mxu0 0.0
    %2016 = vmatmul.mubr.f32.gmra.mrb[0].mxu0 %v1775
    %v2017 = vpop.f32.mrb[0].mxu0
    %v2018 = vadd.f32 0.0, %v2017
    %v2019 = vpop.f32.mrb[0].mxu0
    %2020 = vdwg.mxu0
    %v2021 = vadd.f32 %v226, %v2018
    %v2022 = vadd.f32 %v2021, %v307
    %v2023 = vxor.u32 %v2022, 2147483648
    %v2024 = vmul.f32 %v2023, 1.442695
    %v2025 = vpow.pop %v2024
    %v2026 = vadd.f32 %v2025, 1.0
    %v2027 = vrcp.pop %v2026
    %v2028 = vmul.f32 1.0, %v2027
    %v2029 = vadd.f32 %v226, %v320
    %v2030 = vadd.f32 %v2018, %v327
    %2032 = vrot.lane.b32.xlu0 %v2030, 64
    %v2033 = vpop.permute.xlu0 %2032
    %v2035 = vmul.f32 %v2028, %v2033
    %2037 = vrot.lane.b32.xlu0 %v2035, 64
    %v2038 = vpop.permute.xlu0 %2037
    %v2040 = vadd.f32 %v2029, %v2038
    %v2041 = vtanh.pop %v2040
    %v2042 = vsub.f32 1.0, %v2028
    %2044 = vrot.lane.b32.xlu0 %v2041, 96
    %v2045 = vpop.permute.xlu0 %2044
    %v2047 = vmul.f32 %v2042, %v2045
    %v2049 = vmul.f32 %v2028, %v1772
    %v2050 = vadd.f32 %v2047, %v2049
    %2052 = vrot.lane.b32.xlu0 %v2050, 96
    %v2053 = vpop.permute.xlu0 %2052
    %v2054 = vsel %vm131, %v2053, 0
    %2056 = vmatprep.subr.mxu0 0.0
    %2057 = vmatpush1.msra.mxu0 %v113
    %2058 = vmatprep.subr.mxu0 0.0
    %2059 = vmatpush1.msra.mxu0 %v114
    %2060 = vmatprep.subr.mxu0 0.0
    %2061 = vmatpush1.msra.mxu0 %v115
    %2062 = vmatprep.subr.mxu0 0.0
    %2063 = vmatpush1.msra.mxu0 %v116
    %2064 = vmatprep.subr.mxu0 0.0
    %2065 = vmatpush1.msra.mxu0 0.0
    %2066 = vmatprep.subr.mxu0 0.0
    %2067 = vmatpush1.msra.mxu0 0.0
    %2068 = vmatprep.subr.mxu0 0.0
    %2069 = vmatpush1.msra.mxu0 0.0
    %2070 = vmatprep.subr.mxu0 0.0
    %2071 = vmatpush1.msra.mxu0 0.0
    %2072 = vmatprep.subr.mxu0 0.0
    %2073 = vmatpush1.msra.mxu0 0.0
    %2074 = vmatprep.subr.mxu0 0.0
    %2075 = vmatpush1.msra.mxu0 0.0
    %2076 = vmatprep.subr.mxu0 0.0
    %2077 = vmatpush1.msra.mxu0 0.0
    %2078 = vmatprep.subr.mxu0 0.0
    %2079 = vmatpush1.msra.mxu0 0.0
    %2080 = vmatprep.subr.mxu0 0.0
    %2081 = vmatpush1.msra.mxu0 0.0
    %2082 = vmatprep.subr.mxu0 0.0
    %2083 = vmatpush1.msra.mxu0 0.0
    %2084 = vmatprep.subr.mxu0 0.0
    %2085 = vmatpush1.msra.mxu0 0.0
    %2086 = vmatprep.subr.mxu0 0.0
    %2087 = vmatpush1.msra.mxu0 0.0
    %2088 = vmatprep.subr.mxu0 0.0
    %2089 = vmatpush1.msra.mxu0 0.0
    %2090 = vmatprep.subr.mxu0 0.0
    %2091 = vmatpush1.msra.mxu0 0.0
    %2092 = vmatprep.subr.mxu0 0.0
    %2093 = vmatpush1.msra.mxu0 0.0
    %2094 = vmatprep.subr.mxu0 0.0
    %2095 = vmatpush1.msra.mxu0 0.0
    %2096 = vmatprep.subr.mxu0 0.0
    %2097 = vmatpush1.msra.mxu0 0.0
    %2098 = vmatprep.subr.mxu0 0.0
    %2099 = vmatpush1.msra.mxu0 0.0
    %2100 = vmatprep.subr.mxu0 0.0
    %2101 = vmatpush1.msra.mxu0 0.0
    %2102 = vmatprep.subr.mxu0 0.0
    %2103 = vmatpush1.msra.mxu0 0.0
    %2104 = vmatprep.subr.mxu0 0.0
    %2105 = vmatpush1.msra.mxu0 0.0
    %2106 = vmatprep.subr.mxu0 0.0
    %2107 = vmatpush1.msra.mxu0 0.0
    %2108 = vmatprep.subr.mxu0 0.0
    %2109 = vmatpush1.msra.mxu0 0.0
    %2110 = vmatprep.subr.mxu0 0.0
    %2111 = vmatpush1.msra.mxu0 0.0
    %2112 = vmatprep.subr.mxu0 0.0
    %2113 = vmatpush1.msra.mxu0 0.0
    %2114 = vmatprep.subr.mxu0 0.0
    %2115 = vmatpush1.msra.mxu0 0.0
    %2116 = vmatprep.subr.mxu0 0.0
    %2117 = vmatpush1.msra.mxu0 0.0
    %2118 = vmatprep.subr.mxu0 0.0
    %2119 = vmatpush1.msra.mxu0 0.0
    %2120 = vmatprep.mubr.f32.mxu0 0.0
    %2121 = vmatmul.mubr.f32.gmra.mrb[0].mxu0 %v2054
    %v2122 = vpop.f32.mrb[0].mxu0
    %v2123 = vadd.f32 0.0, %v2122
    %v2124 = vpop.f32.mrb[0].mxu0
    %2125 = vdwg.mxu0
    %2127 = vrot.lane.b32.xlu0 %v1950, 96
    %v2128 = vpop.permute.xlu0 %2127
    %v2129 = vsel %vm131, %v2128, 0
    %2131 = vmatprep.subr.mxu0 0.0
    %2132 = vmatpush1.msra.mxu0 %v117
    %2133 = vmatprep.subr.mxu0 0.0
    %2134 = vmatpush1.msra.mxu0 %v118
    %2135 = vmatprep.subr.mxu0 0.0
    %2136 = vmatpush1.msra.mxu0 %v119
    %2137 = vmatprep.subr.mxu0 0.0
    %2138 = vmatpush1.msra.mxu0 %v120
    %2139 = vmatprep.subr.mxu0 0.0
    %2140 = vmatpush1.msra.mxu0 0.0
    %2141 = vmatprep.subr.mxu0 0.0
    %2142 = vmatpush1.msra.mxu0 0.0
    %2143 = vmatprep.subr.mxu0 0.0
    %2144 = vmatpush1.msra.mxu0 0.0
    %2145 = vmatprep.subr.mxu0 0.0
    %2146 = vmatpush1.msra.mxu0 0.0
    %2147 = vmatprep.subr.mxu0 0.0
    %2148 = vmatpush1.msra.mxu0 0.0
    %2149 = vmatprep.subr.mxu0 0.0
    %2150 = vmatpush1.msra.mxu0 0.0
    %2151 = vmatprep.subr.mxu0 0.0
    %2152 = vmatpush1.msra.mxu0 0.0
    %2153 = vmatprep.subr.mxu0 0.0
    %2154 = vmatpush1.msra.mxu0 0.0
    %2155 = vmatprep.subr.mxu0 0.0
    %2156 = vmatpush1.msra.mxu0 0.0
    %2157 = vmatprep.subr.mxu0 0.0
    %2158 = vmatpush1.msra.mxu0 0.0
    %2159 = vmatprep.subr.mxu0 0.0
    %2160 = vmatpush1.msra.mxu0 0.0
    %2161 = vmatprep.subr.mxu0 0.0
    %2162 = vmatpush1.msra.mxu0 0.0
    %2163 = vmatprep.subr.mxu0 0.0
    %2164 = vmatpush1.msra.mxu0 0.0
    %2165 = vmatprep.subr.mxu0 0.0
    %2166 = vmatpush1.msra.mxu0 0.0
    %2167 = vmatprep.subr.mxu0 0.0
    %2168 = vmatpush1.msra.mxu0 0.0
    %2169 = vmatprep.subr.mxu0 0.0
    %2170 = vmatpush1.msra.mxu0 0.0
    %2171 = vmatprep.subr.mxu0 0.0
    %2172 = vmatpush1.msra.mxu0 0.0
    %2173 = vmatprep.subr.mxu0 0.0
    %2174 = vmatpush1.msra.mxu0 0.0
    %2175 = vmatprep.subr.mxu0 0.0
    %2176 = vmatpush1.msra.mxu0 0.0
    %2177 = vmatprep.subr.mxu0 0.0
    %2178 = vmatpush1.msra.mxu0 0.0
    %2179 = vmatprep.subr.mxu0 0.0
    %2180 = vmatpush1.msra.mxu0 0.0
    %2181 = vmatprep.subr.mxu0 0.0
    %2182 = vmatpush1.msra.mxu0 0.0
    %2183 = vmatprep.subr.mxu0 0.0
    %2184 = vmatpush1.msra.mxu0 0.0
    %2185 = vmatprep.subr.mxu0 0.0
    %2186 = vmatpush1.msra.mxu0 0.0
    %2187 = vmatprep.subr.mxu0 0.0
    %2188 = vmatpush1.msra.mxu0 0.0
    %2189 = vmatprep.subr.mxu0 0.0
    %2190 = vmatpush1.msra.mxu0 0.0
    %2191 = vmatprep.subr.mxu0 0.0
    %2192 = vmatpush1.msra.mxu0 0.0
    %2193 = vmatprep.subr.mxu0 0.0
    %2194 = vmatpush1.msra.mxu0 0.0
    %2195 = vmatprep.mubr.f32.mxu0 0.0
    %2196 = vmatmul.mubr.f32.gmra.mrb[0].mxu0 %v2129
    %v2197 = vpop.f32.mrb[0].mxu0
    %v2198 = vadd.f32 0.0, %v2197
    %v2199 = vpop.f32.mrb[0].mxu0
    %2200 = vdwg.mxu0
    %v2201 = vadd.f32 %v2123, %v2198
    %v2202 = vadd.f32 %v2201, %v499
    %v2203 = vxor.u32 %v2202, 2147483648
    %v2204 = vmul.f32 %v2203, 1.442695
    %v2205 = vpow.pop %v2204
    %v2206 = vadd.f32 %v2205, 1.0
    %v2207 = vrcp.pop %v2206
    %v2208 = vmul.f32 1.0, %v2207
    %v2209 = vadd.f32 %v2123, %v512
    %v2210 = vadd.f32 %v2198, %v519
    %2212 = vrot.lane.b32.xlu0 %v2210, 64
    %v2213 = vpop.permute.xlu0 %2212
    %v2215 = vmul.f32 %v2208, %v2213
    %2217 = vrot.lane.b32.xlu0 %v2215, 64
    %v2218 = vpop.permute.xlu0 %2217
    %v2220 = vadd.f32 %v2209, %v2218
    %v2221 = vtanh.pop %v2220
    %v2222 = vsub.f32 1.0, %v2208
    %2224 = vrot.lane.b32.xlu0 %v2221, 96
    %v2225 = vpop.permute.xlu0 %2224
    %v2227 = vmul.f32 %v2222, %v2225
    %v2228 = vmul.f32 %v2208, %v1950
    %v2229 = vadd.f32 %v2227, %v2228
    %2230 = vmatprep.subr.mxu0 0.0
    %2231 = vmatpush1.msra.mxu0 %v109
    %2232 = vmatprep.subr.mxu0 0.0
    %2233 = vmatpush1.msra.mxu0 %v110
    %2234 = vmatprep.subr.mxu0 0.0
    %2235 = vmatpush1.msra.mxu0 %v111
    %2236 = vmatprep.subr.mxu0 0.0
    %2237 = vmatpush1.msra.mxu0 %v112
    %2238 = vmatprep.subr.mxu0 0.0
    %2239 = vmatpush1.msra.mxu0 0.0
    %2240 = vmatprep.subr.mxu0 0.0
    %2241 = vmatpush1.msra.mxu0 0.0
    %2242 = vmatprep.subr.mxu0 0.0
    %2243 = vmatpush1.msra.mxu0 0.0
    %2244 = vmatprep.subr.mxu0 0.0
    %2245 = vmatpush1.msra.mxu0 0.0
    %2246 = vmatprep.subr.mxu0 0.0
    %2247 = vmatpush1.msra.mxu0 0.0
    %2248 = vmatprep.subr.mxu0 0.0
    %2249 = vmatpush1.msra.mxu0 0.0
    %2250 = vmatprep.subr.mxu0 0.0
    %2251 = vmatpush1.msra.mxu0 0.0
    %2252 = vmatprep.subr.mxu0 0.0
    %2253 = vmatpush1.msra.mxu0 0.0
    %2254 = vmatprep.subr.mxu0 0.0
    %2255 = vmatpush1.msra.mxu0 0.0
    %2256 = vmatprep.subr.mxu0 0.0
    %2257 = vmatpush1.msra.mxu0 0.0
    %2258 = vmatprep.subr.mxu0 0.0
    %2259 = vmatpush1.msra.mxu0 0.0
    %2260 = vmatprep.subr.mxu0 0.0
    %2261 = vmatpush1.msra.mxu0 0.0
    %2262 = vmatprep.subr.mxu0 0.0
    %2263 = vmatpush1.msra.mxu0 0.0
    %2264 = vmatprep.subr.mxu0 0.0
    %2265 = vmatpush1.msra.mxu0 0.0
    %2266 = vmatprep.subr.mxu0 0.0
    %2267 = vmatpush1.msra.mxu0 0.0
    %2268 = vmatprep.subr.mxu0 0.0
    %2269 = vmatpush1.msra.mxu0 0.0
    %2270 = vmatprep.subr.mxu0 0.0
    %2271 = vmatpush1.msra.mxu0 0.0
    %2272 = vmatprep.subr.mxu0 0.0
    %2273 = vmatpush1.msra.mxu0 0.0
    %2274 = vmatprep.subr.mxu0 0.0
    %2275 = vmatpush1.msra.mxu0 0.0
    %2276 = vmatprep.subr.mxu0 0.0
    %2277 = vmatpush1.msra.mxu0 0.0
    %2278 = vmatprep.subr.mxu0 0.0
    %2279 = vmatpush1.msra.mxu0 0.0
    %2280 = vmatprep.subr.mxu0 0.0
    %2281 = vmatpush1.msra.mxu0 0.0
    %2282 = vmatprep.subr.mxu0 0.0
    %2283 = vmatpush1.msra.mxu0 0.0
    %2284 = vmatprep.subr.mxu0 0.0
    %2285 = vmatpush1.msra.mxu0 0.0
    %2286 = vmatprep.subr.mxu0 0.0
    %2287 = vmatpush1.msra.mxu0 0.0
    %2288 = vmatprep.subr.mxu0 0.0
    %2289 = vmatpush1.msra.mxu0 0.0
    %2290 = vmatprep.subr.mxu0 0.0
    %2291 = vmatpush1.msra.mxu0 0.0
    %2292 = vmatprep.subr.mxu0 0.0
    %2293 = vmatpush1.msra.mxu0 0.0
    %2294 = vmatprep.mubr.f32.mxu0 0.0
    %2295 = vmatmul.mubr.f32.gmra.mrb[0].mxu0 %v2054
    %v2296 = vpop.f32.mrb[0].mxu0
    %v2297 = vadd.f32 0.0, %v2296
    %v2298 = vpop.f32.mrb[0].mxu0
    %2299 = vdwg.mxu0
    %v2301 = vrot.slane %v2297, 4
    %v2303 = vadd.f32 %v226, %v2301
    %v2304 = vadd.f32 %v2303, %v307
    %v2305 = vxor.u32 %v2304, 2147483648
    %v2306 = vmul.f32 %v2305, 1.442695
    %v2307 = vpow.pop %v2306
    %v2308 = vadd.f32 %v2307, 1.0
    %v2309 = vrcp.pop %v2308
    %v2310 = vmul.f32 1.0, %v2309
    %v2311 = vadd.f32 %v2297, %v327
    %v2313 = vrot.slane %v2311, 4
    %2314 = vrot.lane.b32.xlu0 %v2313, 64
    %v2315 = vpop.permute.xlu0 %2314
    %v2317 = vmul.f32 %v2310, %v2315
    %2319 = vrot.lane.b32.xlu0 %v2317, 64
    %v2320 = vpop.permute.xlu0 %2319
    %v2322 = vadd.f32 %v2029, %v2320
    %v2323 = vtanh.pop %v2322
    %v2324 = vsub.f32 1.0, %v2310
    %2326 = vrot.lane.b32.xlu0 %v2323, 96
    %v2327 = vpop.permute.xlu0 %2326
    %v2329 = vmul.f32 %v2324, %v2327
    %v2330 = vrot.slane %v2050, 4
    %v2332 = vmul.f32 %v2310, %v2330
    %v2333 = vadd.f32 %v2329, %v2332
    %v2335 = vrot.slane %v2333, 4
    %2336 = vrot.lane.b32.xlu0 %v2335, 96
    %v2337 = vpop.permute.xlu0 %2336
    %v2338 = vsel %vm131, %v2337, 0
    %2340 = vmatprep.subr.mxu0 0.0
    %2341 = vmatpush1.msra.mxu0 %v113
    %2342 = vmatprep.subr.mxu0 0.0
    %2343 = vmatpush1.msra.mxu0 %v114
    %2344 = vmatprep.subr.mxu0 0.0
    %2345 = vmatpush1.msra.mxu0 %v115
    %2346 = vmatprep.subr.mxu0 0.0
    %2347 = vmatpush1.msra.mxu0 %v116
    %2348 = vmatprep.subr.mxu0 0.0
    %2349 = vmatpush1.msra.mxu0 0.0
    %2350 = vmatprep.subr.mxu0 0.0
    %2351 = vmatpush1.msra.mxu0 0.0
    %2352 = vmatprep.subr.mxu0 0.0
    %2353 = vmatpush1.msra.mxu0 0.0
    %2354 = vmatprep.subr.mxu0 0.0
    %2355 = vmatpush1.msra.mxu0 0.0
    %2356 = vmatprep.subr.mxu0 0.0
    %2357 = vmatpush1.msra.mxu0 0.0
    %2358 = vmatprep.subr.mxu0 0.0
    %2359 = vmatpush1.msra.mxu0 0.0
    %2360 = vmatprep.subr.mxu0 0.0
    %2361 = vmatpush1.msra.mxu0 0.0
    %2362 = vmatprep.subr.mxu0 0.0
    %2363 = vmatpush1.msra.mxu0 0.0
    %2364 = vmatprep.subr.mxu0 0.0
    %2365 = vmatpush1.msra.mxu0 0.0
    %2366 = vmatprep.subr.mxu0 0.0
    %2367 = vmatpush1.msra.mxu0 0.0
    %2368 = vmatprep.subr.mxu0 0.0
    %2369 = vmatpush1.msra.mxu0 0.0
    %2370 = vmatprep.subr.mxu0 0.0
    %2371 = vmatpush1.msra.mxu0 0.0
    %2372 = vmatprep.subr.mxu0 0.0
    %2373 = vmatpush1.msra.mxu0 0.0
    %2374 = vmatprep.subr.mxu0 0.0
    %2375 = vmatpush1.msra.mxu0 0.0
    %2376 = vmatprep.subr.mxu0 0.0
    %2377 = vmatpush1.msra.mxu0 0.0
    %2378 = vmatprep.subr.mxu0 0.0
    %2379 = vmatpush1.msra.mxu0 0.0
    %2380 = vmatprep.subr.mxu0 0.0
    %2381 = vmatpush1.msra.mxu0 0.0
    %2382 = vmatprep.subr.mxu0 0.0
    %2383 = vmatpush1.msra.mxu0 0.0
    %2384 = vmatprep.subr.mxu0 0.0
    %2385 = vmatpush1.msra.mxu0 0.0
    %2386 = vmatprep.subr.mxu0 0.0
    %2387 = vmatpush1.msra.mxu0 0.0
    %2388 = vmatprep.subr.mxu0 0.0
    %2389 = vmatpush1.msra.mxu0 0.0
    %2390 = vmatprep.subr.mxu0 0.0
    %2391 = vmatpush1.msra.mxu0 0.0
    %2392 = vmatprep.subr.mxu0 0.0
    %2393 = vmatpush1.msra.mxu0 0.0
    %2394 = vmatprep.subr.mxu0 0.0
    %2395 = vmatpush1.msra.mxu0 0.0
    %2396 = vmatprep.subr.mxu0 0.0
    %2397 = vmatpush1.msra.mxu0 0.0
    %2398 = vmatprep.subr.mxu0 0.0
    %2399 = vmatpush1.msra.mxu0 0.0
    %2400 = vmatprep.subr.mxu0 0.0
    %2401 = vmatpush1.msra.mxu0 0.0
    %2402 = vmatprep.subr.mxu0 0.0
    %2403 = vmatpush1.msra.mxu0 0.0
    %2404 = vmatprep.mubr.f32.mxu0 0.0
    %2405 = vmatmul.mubr.f32.gmra.mrb[0].mxu0 %v2338
    %v2406 = vpop.f32.mrb[0].mxu0
    %v2407 = vadd.f32 0.0, %v2406
    %v2408 = vpop.f32.mrb[0].mxu0
    %2409 = vdwg.mxu0
    %2411 = vrot.lane.b32.xlu0 %v2229, 96
    %v2412 = vpop.permute.xlu0 %2411
    %v2413 = vsel %vm131, %v2412, 0
    %2415 = vmatprep.subr.mxu0 0.0
    %2416 = vmatpush1.msra.mxu0 %v117
    %2417 = vmatprep.subr.mxu0 0.0
    %2418 = vmatpush1.msra.mxu0 %v118
    %2419 = vmatprep.subr.mxu0 0.0
    %2420 = vmatpush1.msra.mxu0 %v119
    %2421 = vmatprep.subr.mxu0 0.0
    %2422 = vmatpush1.msra.mxu0 %v120
    %2423 = vmatprep.subr.mxu0 0.0
    %2424 = vmatpush1.msra.mxu0 0.0
    %2425 = vmatprep.subr.mxu0 0.0
    %2426 = vmatpush1.msra.mxu0 0.0
    %2427 = vmatprep.subr.mxu0 0.0
    %2428 = vmatpush1.msra.mxu0 0.0
    %2429 = vmatprep.subr.mxu0 0.0
    %2430 = vmatpush1.msra.mxu0 0.0
    %2431 = vmatprep.subr.mxu0 0.0
    %2432 = vmatpush1.msra.mxu0 0.0
    %2433 = vmatprep.subr.mxu0 0.0
    %2434 = vmatpush1.msra.mxu0 0.0
    %2435 = vmatprep.subr.mxu0 0.0
    %2436 = vmatpush1.msra.mxu0 0.0
    %2437 = vmatprep.subr.mxu0 0.0
    %2438 = vmatpush1.msra.mxu0 0.0
    %2439 = vmatprep.subr.mxu0 0.0
    %2440 = vmatpush1.msra.mxu0 0.0
    %2441 = vmatprep.subr.mxu0 0.0
    %2442 = vmatpush1.msra.mxu0 0.0
    %2443 = vmatprep.subr.mxu0 0.0
    %2444 = vmatpush1.msra.mxu0 0.0
    %2445 = vmatprep.subr.mxu0 0.0
    %2446 = vmatpush1.msra.mxu0 0.0
    %2447 = vmatprep.subr.mxu0 0.0
    %2448 = vmatpush1.msra.mxu0 0.0
    %2449 = vmatprep.subr.mxu0 0.0
    %2450 = vmatpush1.msra.mxu0 0.0
    %2451 = vmatprep.subr.mxu0 0.0
    %2452 = vmatpush1.msra.mxu0 0.0
    %2453 = vmatprep.subr.mxu0 0.0
    %2454 = vmatpush1.msra.mxu0 0.0
    %2455 = vmatprep.subr.mxu0 0.0
    %2456 = vmatpush1.msra.mxu0 0.0
    %2457 = vmatprep.subr.mxu0 0.0
    %2458 = vmatpush1.msra.mxu0 0.0
    %2459 = vmatprep.subr.mxu0 0.0
    %2460 = vmatpush1.msra.mxu0 0.0
    %2461 = vmatprep.subr.mxu0 0.0
    %2462 = vmatpush1.msra.mxu0 0.0
    %2463 = vmatprep.subr.mxu0 0.0
    %2464 = vmatpush1.msra.mxu0 0.0
    %2465 = vmatprep.subr.mxu0 0.0
    %2466 = vmatpush1.msra.mxu0 0.0
    %2467 = vmatprep.subr.mxu0 0.0
    %2468 = vmatpush1.msra.mxu0 0.0
    %2469 = vmatprep.subr.mxu0 0.0
    %2470 = vmatpush1.msra.mxu0 0.0
    %2471 = vmatprep.subr.mxu0 0.0
    %2472 = vmatpush1.msra.mxu0 0.0
    %2473 = vmatprep.subr.mxu0 0.0
    %2474 = vmatpush1.msra.mxu0 0.0
    %2475 = vmatprep.subr.mxu0 0.0
    %2476 = vmatpush1.msra.mxu0 0.0
    %2477 = vmatprep.subr.mxu0 0.0
    %2478 = vmatpush1.msra.mxu0 0.0
    %2479 = vmatprep.mubr.f32.mxu0 0.0
    %2480 = vmatmul.mubr.f32.gmra.mrb[0].mxu0 %v2413
    %v2481 = vpop.f32.mrb[0].mxu0
    %v2482 = vadd.f32 0.0, %v2481
    %v2483 = vpop.f32.mrb[0].mxu0
    %2484 = vdwg.mxu0
    %v2485 = vadd.f32 %v2407, %v2482
    %v2486 = vadd.f32 %v2485, %v499
    %v2487 = vxor.u32 %v2486, 2147483648
    %v2488 = vmul.f32 %v2487, 1.442695
    %v2489 = vpow.pop %v2488
    %v2490 = vadd.f32 %v2489, 1.0
    %v2491 = vrcp.pop %v2490
    %v2492 = vmul.f32 1.0, %v2491
    %v2493 = vadd.f32 %v2407, %v512
    %v2494 = vadd.f32 %v2482, %v519
    %2496 = vrot.lane.b32.xlu0 %v2494, 64
    %v2497 = vpop.permute.xlu0 %2496
    %v2499 = vmul.f32 %v2492, %v2497
    %2501 = vrot.lane.b32.xlu0 %v2499, 64
    %v2502 = vpop.permute.xlu0 %2501
    %v2504 = vadd.f32 %v2493, %v2502
    %v2505 = vtanh.pop %v2504
    %v2506 = vsub.f32 1.0, %v2492
    %2508 = vrot.lane.b32.xlu0 %v2505, 96
    %v2509 = vpop.permute.xlu0 %2508
    %v2511 = vmul.f32 %v2506, %v2509
    %v2512 = vmul.f32 %v2492, %v2229
    %v2513 = vadd.f32 %v2511, %v2512
    %v2514 = vld [vmem:[%s9] sm:$0x1]
    %v2515 = vld [vmem:[%s10] sm:$0x1]
    %v2516 = vld [vmem:[%s11] sm:$0xff]
    %v2517 = vld [vmem:[%s11 + $0x8] sm:$0xff]
    %v2518 = vld [vmem:[%s11 + $0x10] sm:$0xff]
    %v2519 = vld [vmem:[%s11 + $0x18] sm:$0xff]
    %v2520 = vld [vmem:[%s12] sm:$0x1]
    %vm2521 = vcmask 517376
    %v2522 = vsel %vm2521, %v2513, 0.0
    %v2523 = vrot.slane %v2522, 4
    %v2524 = vadd.f32 %v2522, %v2523
    %v2525 = vrot.slane %v2524, 2
    %v2526 = vadd.f32 %v2524, %v2525
    %v2527 = vrot.slane %v2526, 1
    %v2528 = vadd.f32 %v2526, %v2527
    %v2529 = vrcp.pop 2.0
    %v2530 = vmul.f32 %v2528, %v2529
    %v2531 = vsub.f32 %v2513, %v2530
    %v2532 = vmul.f32 %v2531, %v2531
    %v2533 = vsel %vm2521, %v2532, 0.0
    %v2534 = vrot.slane %v2533, 4
    %v2535 = vadd.f32 %v2533, %v2534
    %v2536 = vrot.slane %v2535, 2
    %v2537 = vadd.f32 %v2535, %v2536
    %v2538 = vrot.slane %v2537, 1
    %v2539 = vadd.f32 %v2537, %v2538
    %v2540 = vmul.f32 %v2539, %v2529
    %v2541 = vadd.f32 %v2540, 1e-05
    %v2542 = vrsqrt.pop %v2541
    %v2543 = vmul.f32 %v2531, %v2542
    %v2545 = vlaneseq
    %v2546 = vshrl.u32 %v2545, 7
    %v2547 = vsub.s32 0, %v2546
    %v2548 = vrot.slane %v2514, %v2547
    %2549 = vrot.lane.b32.xlu0 %v2548, 32
    %v2550 = vpop.permute.xlu0 %2549
    %v2552 = vmul.f32 %v2543, %v2550
    %v2554 = vlaneseq
    %v2555 = vshrl.u32 %v2554, 7
    %v2556 = vsub.s32 0, %v2555
    %v2557 = vrot.slane %v2515, %v2556
    %2558 = vrot.lane.b32.xlu0 %v2557, 32
    %v2559 = vpop.permute.xlu0 %2558
    %v2561 = vadd.f32 %v2552, %v2559
    %v2563 = vlaneseq
    %v2564 = vshrl.u32 %v2563, 7
    %v2565 = vsub.s32 0, %v2564
    %v2566 = vrot.slane %v2520, %v2565
    %2569 = vrot.lane.b32.xlu0 %v2561, 96
    %v2570 = vpop.permute.xlu0 %2569
    %v2571 = vsel %vm131, %v2570, 0
    %2573 = vmatprep.subr.mxu0 0.0
    %2574 = vmatpush1.msra.mxu0 %v2516
    %2575 = vmatprep.subr.mxu0 0.0
    %2576 = vmatpush1.msra.mxu0 %v2517
    %2577 = vmatprep.subr.mxu0 0.0
    %2578 = vmatpush1.msra.mxu0 %v2518
    %2579 = vmatprep.subr.mxu0 0.0
    %2580 = vmatpush1.msra.mxu0 %v2519
    %2581 = vmatprep.subr.mxu0 0.0
    %2582 = vmatpush1.msra.mxu0 0.0
    %2583 = vmatprep.subr.mxu0 0.0
    %2584 = vmatpush1.msra.mxu0 0.0
    %2585 = vmatprep.subr.mxu0 0.0
    %2586 = vmatpush1.msra.mxu0 0.0
    %2587 = vmatprep.subr.mxu0 0.0
    %2588 = vmatpush1.msra.mxu0 0.0
    %2589 = vmatprep.subr.mxu0 0.0
    %2590 = vmatpush1.msra.mxu0 0.0
    %2591 = vmatprep.subr.mxu0 0.0
    %2592 = vmatpush1.msra.mxu0 0.0
    %2593 = vmatprep.subr.mxu0 0.0
    %2594 = vmatpush1.msra.mxu0 0.0
    %2595 = vmatprep.subr.mxu0 0.0
    %2596 = vmatpush1.msra.mxu0 0.0
    %2597 = vmatprep.subr.mxu0 0.0
    %2598 = vmatpush1.msra.mxu0 0.0
    %2599 = vmatprep.subr.mxu0 0.0
    %2600 = vmatpush1.msra.mxu0 0.0
    %2601 = vmatprep.subr.mxu0 0.0
    %2602 = vmatpush1.msra.mxu0 0.0
    %2603 = vmatprep.subr.mxu0 0.0
    %2604 = vmatpush1.msra.mxu0 0.0
    %2605 = vmatprep.subr.mxu0 0.0
    %2606 = vmatpush1.msra.mxu0 0.0
    %2607 = vmatprep.subr.mxu0 0.0
    %2608 = vmatpush1.msra.mxu0 0.0
    %2609 = vmatprep.subr.mxu0 0.0
    %2610 = vmatpush1.msra.mxu0 0.0
    %2611 = vmatprep.subr.mxu0 0.0
    %2612 = vmatpush1.msra.mxu0 0.0
    %2613 = vmatprep.subr.mxu0 0.0
    %2614 = vmatpush1.msra.mxu0 0.0
    %2615 = vmatprep.subr.mxu0 0.0
    %2616 = vmatpush1.msra.mxu0 0.0
    %2617 = vmatprep.subr.mxu0 0.0
    %2618 = vmatpush1.msra.mxu0 0.0
    %2619 = vmatprep.subr.mxu0 0.0
    %2620 = vmatpush1.msra.mxu0 0.0
    %2621 = vmatprep.subr.mxu0 0.0
    %2622 = vmatpush1.msra.mxu0 0.0
    %2623 = vmatprep.subr.mxu0 0.0
    %2624 = vmatpush1.msra.mxu0 0.0
    %2625 = vmatprep.subr.mxu0 0.0
    %2626 = vmatpush1.msra.mxu0 0.0
    %2627 = vmatprep.subr.mxu0 0.0
    %2628 = vmatpush1.msra.mxu0 0.0
    %2629 = vmatprep.subr.mxu0 0.0
    %2630 = vmatpush1.msra.mxu0 0.0
    %2631 = vmatprep.subr.mxu0 0.0
    %2632 = vmatpush1.msra.mxu0 0.0
    %2633 = vmatprep.subr.mxu0 0.0
    %2634 = vmatpush1.msra.mxu0 0.0
    %2635 = vmatprep.subr.mxu0 0.0
    %2636 = vmatpush1.msra.mxu0 0.0
    %2637 = vmatprep.mubr.f32.mxu0 0.0
    %2638 = vmatmul.mubr.f32.gmra.mrb[0].mxu0 %v2571
    %v2639 = vpop.f32.mrb[0].mxu0
    %v2640 = vadd.f32 %v2566, %v2639
    %v2641 = vpop.f32.mrb[0].mxu0
    %2642 = vdwg.mxu0
    %v2643 = vtanh.pop %v2640
    %v2645 = vrot.slane %v2513, 2
    %v2647 = vsel %vm2521, %v2645, 0.0
    %v2648 = vrot.slane %v2647, 4
    %v2649 = vadd.f32 %v2647, %v2648
    %v2650 = vrot.slane %v2649, 2
    %v2651 = vadd.f32 %v2649, %v2650
    %v2652 = vrot.slane %v2651, 1
    %v2653 = vadd.f32 %v2651, %v2652
    %v2654 = vmul.f32 %v2653, %v2529
    %v2655 = vsub.f32 %v2513, %v2654
    %v2656 = vmul.f32 %v2655, %v2655
    %v2658 = vrot.slane %v2656, 2
    %v2660 = vsel %vm2521, %v2658, 0.0
    %v2661 = vrot.slane %v2660, 4
    %v2662 = vadd.f32 %v2660, %v2661
    %v2663 = vrot.slane %v2662, 2
    %v2664 = vadd.f32 %v2662, %v2663
    %v2665 = vrot.slane %v2664, 1
    %v2666 = vadd.f32 %v2664, %v2665
    %v2667 = vmul.f32 %v2666, %v2529
    %v2668 = vadd.f32 %v2667, 1e-05
    %v2669 = vrsqrt.pop %v2668
    %v2670 = vmul.f32 %v2655, %v2669
    %v2671 = vmul.f32 %v2670, %v2550
    %v2672 = vadd.f32 %v2671, %v2559
    %v2674 = vrot.slane %v2672, 2
    %2675 = vrot.lane.b32.xlu0 %v2674, 96
    %v2676 = vpop.permute.xlu0 %2675
    %v2677 = vsel %vm131, %v2676, 0
    %2679 = vmatprep.subr.mxu0 0.0
    %2680 = vmatpush1.msra.mxu0 %v2516
    %2681 = vmatprep.subr.mxu0 0.0
    %2682 = vmatpush1.msra.mxu0 %v2517
    %2683 = vmatprep.subr.mxu0 0.0
    %2684 = vmatpush1.msra.mxu0 %v2518
    %2685 = vmatprep.subr.mxu0 0.0
    %2686 = vmatpush1.msra.mxu0 %v2519
    %2687 = vmatprep.subr.mxu0 0.0
    %2688 = vmatpush1.msra.mxu0 0.0
    %2689 = vmatprep.subr.mxu0 0.0
    %2690 = vmatpush1.msra.mxu0 0.0
    %2691 = vmatprep.subr.mxu0 0.0
    %2692 = vmatpush1.msra.mxu0 0.0
    %2693 = vmatprep.subr.mxu0 0.0
    %2694 = vmatpush1.msra.mxu0 0.0
    %2695 = vmatprep.subr.mxu0 0.0
    %2696 = vmatpush1.msra.mxu0 0.0
    %2697 = vmatprep.subr.mxu0 0.0
    %2698 = vmatpush1.msra.mxu0 0.0
    %2699 = vmatprep.subr.mxu0 0.0
    %2700 = vmatpush1.msra.mxu0 0.0
    %2701 = vmatprep.subr.mxu0 0.0
    %2702 = vmatpush1.msra.mxu0 0.0
    %2703 = vmatprep.subr.mxu0 0.0
    %2704 = vmatpush1.msra.mxu0 0.0
    %2705 = vmatprep.subr.mxu0 0.0
    %2706 = vmatpush1.msra.mxu0 0.0
    %2707 = vmatprep.subr.mxu0 0.0
    %2708 = vmatpush1.msra.mxu0 0.0
    %2709 = vmatprep.subr.mxu0 0.0
    %2710 = vmatpush1.msra.mxu0 0.0
    %2711 = vmatprep.subr.mxu0 0.0
    %2712 = vmatpush1.msra.mxu0 0.0
    %2713 = vmatprep.subr.mxu0 0.0
    %2714 = vmatpush1.msra.mxu0 0.0
    %2715 = vmatprep.subr.mxu0 0.0
    %2716 = vmatpush1.msra.mxu0 0.0
    %2717 = vmatprep.subr.mxu0 0.0
    %2718 = vmatpush1.msra.mxu0 0.0
    %2719 = vmatprep.subr.mxu0 0.0
    %2720 = vmatpush1.msra.mxu0 0.0
    %2721 = vmatprep.subr.mxu0 0.0
    %2722 = vmatpush1.msra.mxu0 0.0
    %2723 = vmatprep.subr.mxu0 0.0
    %2724 = vmatpush1.msra.mxu0 0.0
    %2725 = vmatprep.subr.mxu0 0.0
    %2726 = vmatpush1.msra.mxu0 0.0
    %2727 = vmatprep.subr.mxu0 0.0
    %2728 = vmatpush1.msra.mxu0 0.0
    %2729 = vmatprep.subr.mxu0 0.0
    %2730 = vmatpush1.msra.mxu0 0.0
    %2731 = vmatprep.subr.mxu0 0.0
    %2732 = vmatpush1.msra.mxu0 0.0
    %2733 = vmatprep.subr.mxu0 0.0
    %2734 = vmatpush1.msra.mxu0 0.0
    %2735 = vmatprep.subr.mxu0 0.0
    %2736 = vmatpush1.msra.mxu0 0.0
    %2737 = vmatprep.subr.mxu0 0.0
    %2738 = vmatpush1.msra.mxu0 0.0
    %2739 = vmatprep.subr.mxu0 0.0
    %2740 = vmatpush1.msra.mxu0 0.0
    %2741 = vmatprep.subr.mxu0 0.0
    %2742 = vmatpush1.msra.mxu0 0.0
    %2743 = vmatprep.mubr.f32.mxu0 0.0
    %2744 = vmatmul.mubr.f32.gmra.mrb[0].mxu0 %v2677
    %v2745 = vpop.f32.mrb[0].mxu0
    %v2746 = vadd.f32 %v2566, %v2745
    %v2747 = vpop.f32.mrb[0].mxu0
    %2748 = vdwg.mxu0
    %v2749 = vtanh.pop %v2746
    %v2750 = vmul.f32 %v2643, %v2749
    %vm2751 = vcmask 123904
    %v2752 = vsel %vm2751, %v2750, 0.0
    %2753 = vadd.xlane.f32.xlu0 %v2752
    %v2754 = vpop.xlane.xlu0 %2753
    %v2755 = vxor.u32 %v2754, 2147483648
    %v2756 = vmul.f32 %v2755, 1.442695
    %v2757 = vpow.pop %v2756
    %v2758 = vadd.f32 %v2757, 1.0
    %v2759 = vrcp.pop %v2758
    %v2760 = vmul.f32 1.0, %v2759
    %s2761 = sld [smem:[#allocation2]]
    %v2762 = vstv %s2761
    %v2763 = vmul.f32 %v2760, %v2762
    %s2764 = sld [smem:[#allocation3]]
    %v2765 = vstv %s2764
    %v2766 = vadd.f32 %v2763, %v2765
    %v2767 = vxor.u32 %v2766, 2147483648
    %v2768 = vmul.f32 %v2767, 1.442695
    %v2769 = vpow.pop %v2768
    %v2770 = vadd.f32 %v2769, 1.0
    %v2771 = vrcp.pop %v2770
    %v2772 = vmul.f32 1.0, %v2771
    %vm2773 = vcmask 1024
    %2774 = vst.msk [vmem:[%s15] sm:$0x3] %vm2773, %v2772
    // Predicated region
    $region78: #{tpu_custom_call.1} parent=1 // pred_check
      _
    $region79: #{tpu_custom_call.1} parent=1 // pred_check_branch
      %2776 = sbr.rel (0) target = $region81
    $region80: #{tpu_custom_call.1} parent=1 // pred_region
      _
    $region81: #{tpu_custom_call.1} parent=1 // pred_fallthru
      _
    // Predicated region
    $region82: #{tpu_custom_call.1} parent=1 // pred_check
      _
    $region83: #{tpu_custom_call.1} parent=1 // pred_check_branch
      %2778 = sbr.rel (0) target = $region85
    $region84: #{tpu_custom_call.1} parent=1 // pred_region
      _
    $region85: #{tpu_custom_call.1} parent=1 // pred_fallthru
      _
    %2779 = vsyncpa [#allocation5], 1
    %2780 = vsyncpa [#allocation7], 1
    %2781 = vsyncpa [#allocation10], 1

</llo_original>
